<compile_context>
chip_gen: v6e
topology: v6e:2x2x1
jax: 0.10.0
libtpu: 0.0.40
codegen_flags: <defaults>
</compile_context>

<pallas_src>
import jax
import jax.numpy as jnp
from jax.experimental import pallas as pl
from jax.experimental.pallas import tpu as pltpu

SELU_ALPHA = 1.6732632423543772848170429916717
SELU_SCALE = 1.0507009873554804934193349852946
BN_EPS = 1e-5
NEG_PAD = -1e30        # padded fc6 logit columns -> exp() underflows to exactly 0
LANE = 128             # lane width (last-dim alignment)
ROW_TILE = 16          # bf16 sublane packing (second-to-last-dim alignment)


def _round_up(n, m):
    return ((n + m - 1) // m) * m


def _selu_core(z_f32):
    """SELU with its output scale folded into the NEXT layer's weights.

    g(z) = z if z > 0 else alpha * (exp(z) - 1), computed in bf16: v6e/v7x
    VPU/EUP run bf16 at 2x packed throughput and the bf16 result feeds the
    next bf16 MXU matmul directly (no extra cast).  On v5e (MXU-bound here)
    the conversions are free filler under MXU time.
    """
    z = z_f32.astype(jnp.bfloat16)
    # NOTE: expm1 would save one VPU subtract; exp(z)-1 kept for guaranteed
    # Mosaic lowering support.
    return jnp.where(z > 0, z, SELU_ALPHA * (jnp.exp(z) - 1.0))


def _softmax_store(logits_f32, out_ref):
    m = jnp.max(logits_f32, axis=-1, keepdims=True)
    e = jnp.exp(logits_f32 - m)
    denom = jnp.sum(e, axis=-1, keepdims=True)
    # Exact reciprocal: approx=True (EUP) drifted row sums by ~1e-3 and broke
    # the "rows sum to 1" check; the exact divide on a (TB,1) tensor is cheap.
    out_ref[...] = e * pl.reciprocal(denom, approx=False)


# ---------------------------------------------------------------------------
# Kernel 1: batch-tiled grid, weights VMEM-resident across grid steps.
# ---------------------------------------------------------------------------
def tiny_audio_net_grid_kernel(
    x_ref,
    w1_ref, b1_ref, w2_ref, b2_ref, w3_ref, b3_ref,
    w4_ref, b4_ref, w5_ref, b5_ref, w6_ref, b6_ref,
    out_ref,
):
    h = x_ref[...]                     # bf16; BatchNorm already folded into w1/b1
    for w_ref, b_ref in ((w1_ref, b1_ref), (w2_ref, b2_ref), (w3_ref, b3_ref),
                         (w4_ref, b4_ref), (w5_ref, b5_ref)):
        z = jnp.dot(h, w_ref[...], preferred_element_type=jnp.float32) + b_ref[...]
        h = _selu_core(z)              # dropout is identity in eval mode
    logits = (jnp.dot(h, w6_ref[...], preferred_element_type=jnp.float32)
              + b6_ref[...])
    _softmax_store(logits, out_ref)


# ---------------------------------------------------------------------------
# Kernel 2: single grid step (small-batch latency regime).  Weights stay in
# HBM (memory_space=pl.ANY) and are hand-prefetched layer by layer so the
# w_{k+1} DMA overlaps layer k's matmul + SELU instead of being exposed
# up-front in the pipeline prologue.
# ---------------------------------------------------------------------------
def tiny_audio_net_prefetch_kernel(
    x_ref,
    w1_hbm, b1_ref, w2_hbm, b2_ref, w3_hbm, b3_ref,
    w4_hbm, b4_ref, w5_hbm, b5_ref, w6_hbm, b6_ref,
    out_ref,
    w1_buf, w2_buf, w3_buf, w4_buf, w5_buf, w6_buf,
    sems,
):
    hbm = (w1_hbm, w2_hbm, w3_hbm, w4_hbm, w5_hbm, w6_hbm)
    buf = (w1_buf, w2_buf, w3_buf, w4_buf, w5_buf, w6_buf)
    bias = (b1_ref, b2_ref, b3_ref, b4_ref, b5_ref, b6_ref)

    def start(i):
        pltpu.make_async_copy(hbm[i], buf[i], sems.at[i]).start()

    def wait(i):
        pltpu.make_async_copy(hbm[i], buf[i], sems.at[i]).wait()

    # Prefetch chain: at most two weight DMAs in flight; layer k+1's weights
    # stream in while layer k computes.
    start(0)
    start(1)

    h = x_ref[...]                     # bf16; BatchNorm already folded into w1/b1
    for k in range(5):                 # fc1..fc5 + SELU
        wait(k)
        if k + 2 < 6:
            start(k + 2)
        z = (jnp.dot(h, buf[k][...], preferred_element_type=jnp.float32)
             + bias[k][...])
        h = _selu_core(z)

    wait(5)
    logits = (jnp.dot(h, buf[5][...], preferred_element_type=jnp.float32)
              + bias[5][...])
    _softmax_store(logits, out_ref)


# ---------------------------------------------------------------------------
# Parameter construction / folding / padding.
# ---------------------------------------------------------------------------
def init_params(key, inputsize, outputsize):
    """Deterministic synthetic parameters matching the PyTorch module's shapes.

    nn.Linear weights are stored pre-transposed as (in, out).  BatchNorm1d
    (eval) is pre-folded into per-feature scale/shift:
      scale = gamma / sqrt(running_var + eps), shift = beta - running_mean*scale.
    """
    dims = [(inputsize, 512), (512, 512), (512, 512), (512, 512), (512, 256),
            (256, outputsize)]
    params = {}
    keys = jax.random.split(key, 2 * len(dims) + 2)
    for i, (din, dout) in enumerate(dims):
        wk, bk = keys[2 * i], keys[2 * i + 1]
        params[f"w{i + 1}"] = (jax.random.normal(wk, (din, dout), jnp.float32)
                               * (1.0 / jnp.sqrt(jnp.float32(din))))
        params[f"b{i + 1}"] = jax.random.normal(bk, (1, dout), jnp.float32) * 0.01
    mk, vk = keys[-2], keys[-1]
    running_mean = jax.random.normal(mk, (inputsize,), jnp.float32) * 0.1
    running_var = 1.0 + 0.1 * jax.random.uniform(vk, (inputsize,), jnp.float32)
    gamma = jnp.ones((inputsize,), jnp.float32)
    beta = jnp.zeros((inputsize,), jnp.float32)
    scale = gamma / jnp.sqrt(running_var + BN_EPS)
    shift = beta - running_mean * scale
    params["bn_scale"] = scale.reshape(1, inputsize)
    params["bn_shift"] = shift.reshape(1, inputsize)
    return params


def prepare_kernel_params(params, inputsize, outputsize):
    """Fold BN + SELU scale into weights, pad lane-dense, demote weights to bf16."""
    f_pad = _round_up(inputsize, LANE)
    out_pad = _round_up(outputsize, LANE)

    bn_scale = params["bn_scale"].reshape(1, inputsize)
    bn_shift = params["bn_shift"].reshape(1, inputsize)

    # Fold BatchNorm (eval) into fc1:
    #   (x*scale + shift) @ W1 + b1 == x @ (scale^T * W1) + (shift @ W1 + b1)
    w1 = bn_scale.reshape(inputsize, 1) * params["w1"]
    b1 = bn_shift @ params["w1"] + params["b1"]
    # Fold SELU's output scale of layer k into layer k+1's weights:
    #   (S * g(z_k)) @ W_{k+1} == g(z_k) @ (S * W_{k+1})
    w2, w3, w4, w5, w6 = (SELU_SCALE * params[f"w{i}"] for i in range(2, 7))

    def pad2(a, rows, cols, value=0.0):
        r, c = a.shape
        return jnp.pad(a, ((0, rows - r), (0, cols - c)), constant_values=value)

    # TODO(synk): optional v7x-only fp8 (e4m3) storage of w2..w5 with
    # per-output-channel scales for the weight-DMA-bound latency regime.
    kp = {
        "w1": pad2(w1, f_pad, 512).astype(jnp.bfloat16),   # pad K (zero rows)
        "w2": w2.astype(jnp.bfloat16),
        "w3": w3.astype(jnp.bfloat16),
        "w4": w4.astype(jnp.bfloat16),
        "w5": w5.astype(jnp.bfloat16),
        "w6": pad2(w6, 256, out_pad).astype(jnp.bfloat16),  # pad output columns
        "b1": b1,
        "b2": params["b2"],
        "b3": params["b3"],
        "b4": params["b4"],
        "b5": params["b5"],
        # Padded fc6 bias columns get NEG_PAD so their softmax weight is exactly 0.
        "b6": pad2(params["b6"], 1, out_pad, value=NEG_PAD),
        "inputsize": inputsize,
        "outputsize": outputsize,
        "f_pad": f_pad,
        "out_pad": out_pad,
    }
    return kp


# ---------------------------------------------------------------------------
# Wrapper.
# ---------------------------------------------------------------------------
def _pick_batch_tile(b_aligned, single_step_rows):
    if b_aligned <= single_step_rows:
        # Latency regime: one step, manual weight-prefetch kernel.  (Splitting
        # this across v7x's two cores would double the resident-weight DMA for
        # <0.2us of compute saved, so single-step is preferred here.)
        return b_aligned
    # >=2 grid steps so dimension_semantics=("parallel",) actually shards the
    # batch over both v7x TensorCores; capped at 256 rows to amortize per-step
    # overhead and the 256x256 MXU weight push/drain on v6e/v7x.
    return min(256, _round_up((b_aligned + 1) // 2, ROW_TILE))


def tiny_audio_net_forward(x, kp, *, batch_tile=None, single_step_rows=128):
    """x: (B, inputsize) f32.  kp: output of prepare_kernel_params."""
    B, F = x.shape
    f_pad, out_pad = kp["f_pad"], kp["out_pad"]
    outputsize = kp["outputsize"]

    weights = [kp[f"w{i}"] for i in range(1, 7)]
    biases = [kp[f"b{i}"] for i in range(1, 7)]
    wb = []
    for w, b in zip(weights, biases):
        wb += [w, b]

    b_aligned = _round_up(max(B, 1), ROW_TILE)
    if batch_tile is None:
        batch_tile = _pick_batch_tile(b_aligned, single_step_rows)
    else:
        batch_tile = _round_up(batch_tile, ROW_TILE)
    b_pad = _round_up(b_aligned, batch_tile)
    n_steps = b_pad // batch_tile

    # bf16 input: halves the only per-step HBM traffic that scales with batch;
    # the first matmul is bf16 anyway (BN is folded into w1/b1).
    x_p = jnp.pad(x, ((0, b_pad - B), (0, f_pad - F))).astype(jnp.bfloat16)

    layer_dims = [(f_pad, 512), (512, 512), (512, 512), (512, 512),
                  (512, 256), (256, out_pad)]
    cost = pl.CostEstimate(
        flops=2 * b_pad * sum(d1 * d2 for d1, d2 in layer_dims),
        transcendentals=b_pad * (512 * 4 + 256 + out_pad),
        bytes_accessed=(sum(int(a.size) * a.dtype.itemsize
                            for a in weights + biases)
                        + int(x_p.size) * x_p.dtype.itemsize
                        + b_pad * out_pad * 4))

    out_shape = jax.ShapeDtypeStruct((b_pad, out_pad), jnp.float32)

    if n_steps == 1:
        # Single-step latency path: weights in HBM, manual prefetch chain.
        in_specs = [pl.BlockSpec((batch_tile, f_pad), lambda i: (0, 0))]
        for w, b in zip(weights, biases):
            in_specs.append(pl.BlockSpec(memory_space=pl.ANY))      # weight: HBM
            in_specs.append(pl.BlockSpec(b.shape, lambda i: (0, 0)))  # bias: VMEM
        out_padded = pl.pallas_call(
            tiny_audio_net_prefetch_kernel,
            out_shape=out_shape,
            grid=(1,),
            in_specs=in_specs,
            out_specs=pl.BlockSpec((batch_tile, out_pad), lambda i: (0, 0)),
            scratch_shapes=[pltpu.VMEM(w.shape, jnp.bfloat16) for w in weights]
                         + [pltpu.SemaphoreType.DMA((6,))],
            compiler_params=pltpu.CompilerParams(
                dimension_semantics=("arbitrary",)),
            cost_estimate=cost,
        )(x_p, *wb)
    else:
        # Batch-tiled path: constant block index => weights fetched once and
        # VMEM-resident; x/out DMA pipelined under compute across grid steps.
        def resident(a):
            return pl.BlockSpec(a.shape, lambda i: (0,) * a.ndim)

        in_specs = [pl.BlockSpec((batch_tile, f_pad), lambda i: (i, 0))]
        for w, b in zip(weights, biases):
            in_specs.append(resident(w))
            in_specs.append(resident(b))
        out_padded = pl.pallas_call(
            tiny_audio_net_grid_kernel,
            out_shape=out_shape,
            grid=(n_steps,),
            in_specs=in_specs,
            out_specs=pl.BlockSpec((batch_tile, out_pad), lambda i: (i, 0)),
            compiler_params=pltpu.CompilerParams(
                dimension_semantics=("parallel",)),
            cost_estimate=cost,
        )(x_p, *wb)

    return out_padded[:B, :outputsize]


# ---------------------------------------------------------------------------
# References.
# ---------------------------------------------------------------------------
def reference_forward(x, kp):
    """Pure-JAX reference mirroring the kernel math exactly (folded, padded, bf16)."""
    B, F = x.shape
    h = jnp.pad(x, ((0, 0), (0, kp["f_pad"] - F))).astype(jnp.bfloat16)
    for i in range(1, 6):
        z = (jnp.dot(h, kp[f"w{i}"], preferred_element_type=jnp.float32)
             + kp[f"b{i}"])
        h = _selu_core(z)
    logits = (jnp.dot(h, kp["w6"], preferred_element_type=jnp.float32)
              + kp["b6"])
    return jax.nn.softmax(logits, axis=-1)[:, :kp["outputsize"]]


def reference_forward_f32(x, params):
    """Original-module semantics (un-folded, f32) for a loose parity check."""
    h = x * params["bn_scale"] + params["bn_shift"]
    for i in range(1, 6):
        z = h @ params[f"w{i}"] + params[f"b{i}"]
        h = SELU_SCALE * jnp.where(z > 0, z, SELU_ALPHA * (jnp.exp(z) - 1.0))
    logits = h @ params["w6"] + params["b6"]
    return jax.nn.softmax(logits, axis=-1)


if __name__ == "__main__":
    INPUTSIZE, OUTPUTSIZE = 64, 32
    key = jax.random.PRNGKey(0)
    kx, kparam = jax.random.split(key)

    params = init_params(kparam, INPUTSIZE, OUTPUTSIZE)
    kp = prepare_kernel_params(params, INPUTSIZE, OUTPUTSIZE)

    # Path 1: small batch -> single grid step with the manual weight-prefetch chain.
    B1 = 8
    x1 = jax.random.normal(kx, (B1, INPUTSIZE), jnp.float32)
    out1 = jax.block_until_ready(tiny_audio_net_forward(x1, kp))
    assert out1.shape == (B1, OUTPUTSIZE)
    ref1 = reference_forward(x1, kp)
    assert jnp.allclose(out1, ref1, atol=2e-3, rtol=2e-3)
    assert jnp.allclose(jnp.sum(out1, axis=-1), jnp.ones((B1,)), atol=1e-3)
    # Loose parity with the original f32 module (bf16 weights/activations).
    assert float(jnp.mean(jnp.abs(out1 - reference_forward_f32(x1, params)))) < 1e-2

    # Path 2: batch-tiled grid with VMEM-resident weights (>=2 grid steps).
    B2 = 64
    x2 = jax.random.normal(jax.random.fold_in(kx, 1), (B2, INPUTSIZE), jnp.float32)
    out2 = jax.block_until_ready(tiny_audio_net_forward(x2, kp, batch_tile=32))
    assert out2.shape == (B2, OUTPUTSIZE)
    ref2 = reference_forward(x2, kp)
    assert jnp.allclose(out2, ref2, atol=2e-3, rtol=2e-3)
    assert jnp.allclose(jnp.sum(out2, axis=-1), jnp.ones((B2,)), atol=1e-3)

    print("KERNEL_OK")
</pallas_src>

<mosaic_0001>
module attributes {stable_mosaic.version = 11 : i64} {
  func.func @tiny_audio_net_prefetch_kernel(%arg0: i32, %arg1: memref<16x128xbf16, #tpu.memory_space<vmem>>, %arg2: memref<128x512xbf16, #tpu.memory_space<any>>, %arg3: memref<1x512xf32, #tpu.memory_space<vmem>>, %arg4: memref<512x512xbf16, #tpu.memory_space<any>>, %arg5: memref<1x512xf32, #tpu.memory_space<vmem>>, %arg6: memref<512x512xbf16, #tpu.memory_space<any>>, %arg7: memref<1x512xf32, #tpu.memory_space<vmem>>, %arg8: memref<512x512xbf16, #tpu.memory_space<any>>, %arg9: memref<1x512xf32, #tpu.memory_space<vmem>>, %arg10: memref<512x256xbf16, #tpu.memory_space<any>>, %arg11: memref<1x256xf32, #tpu.memory_space<vmem>>, %arg12: memref<256x128xbf16, #tpu.memory_space<any>>, %arg13: memref<1x128xf32, #tpu.memory_space<vmem>>, %arg14: memref<16x128xf32, #tpu.memory_space<vmem>>, %arg15: memref<128x512xbf16, #tpu.memory_space<vmem>>, %arg16: memref<512x512xbf16, #tpu.memory_space<vmem>>, %arg17: memref<512x512xbf16, #tpu.memory_space<vmem>>, %arg18: memref<512x512xbf16, #tpu.memory_space<vmem>>, %arg19: memref<512x256xbf16, #tpu.memory_space<vmem>>, %arg20: memref<256x128xbf16, #tpu.memory_space<vmem>>, %arg21: memref<6x!tpu.dma_semaphore, #tpu.memory_space<semaphore_mem>>) attributes {dimension_semantics = [#tpu.dimension_semantics<arbitrary>], iteration_bounds = array<i64: 1>, scalar_prefetch = 0 : i64, scratch_operands = 7 : i64, tpu.core_type = #tpu.core_type<tc>, window_params = [{pipeline_mode = #tpu.pipeline_mode<synchronous>, transform_indices = @transform_0, window_bounds = array<i64: 16, 128>}, {}, {pipeline_mode = #tpu.pipeline_mode<synchronous>, transform_indices = @transform_2, window_bounds = array<i64: 1, 512>}, {}, {pipeline_mode = #tpu.pipeline_mode<synchronous>, transform_indices = @transform_4, window_bounds = array<i64: 1, 512>}, {}, {pipeline_mode = #tpu.pipeline_mode<synchronous>, transform_indices = @transform_6, window_bounds = array<i64: 1, 512>}, {}, {pipeline_mode = #tpu.pipeline_mode<synchronous>, transform_indices = @transform_8, window_bounds = array<i64: 1, 512>}, {}, {pipeline_mode = #tpu.pipeline_mode<synchronous>, transform_indices = @transform_10, window_bounds = array<i64: 1, 256>}, {}, {pipeline_mode = #tpu.pipeline_mode<synchronous>, transform_indices = @transform_12, window_bounds = array<i64: 1, 128>}, {pipeline_mode = #tpu.pipeline_mode<synchronous>, transform_indices = @transform_13, window_bounds = array<i64: 16, 128>}]} {
    %c0_i32 = arith.constant 0 : i32
    %0 = tpu.memref_slice %arg21[%c0_i32] : memref<6x!tpu.dma_semaphore, #tpu.memory_space<semaphore_mem>> -> memref<1x!tpu.dma_semaphore, #tpu.memory_space<semaphore_mem>>
    %1 = tpu.memref_squeeze %0 : memref<1x!tpu.dma_semaphore, #tpu.memory_space<semaphore_mem>> -> memref<!tpu.dma_semaphore, #tpu.memory_space<semaphore_mem>>
    tpu.enqueue_dma source(%arg2 : memref<128x512xbf16, #tpu.memory_space<any>>) target(%arg15 : memref<128x512xbf16, #tpu.memory_space<vmem>>) target_semaphore(%1 : memref<!tpu.dma_semaphore, #tpu.memory_space<semaphore_mem>>)
    %c1_i32 = arith.constant 1 : i32
    %2 = tpu.memref_slice %arg21[%c1_i32] : memref<6x!tpu.dma_semaphore, #tpu.memory_space<semaphore_mem>> -> memref<1x!tpu.dma_semaphore, #tpu.memory_space<semaphore_mem>>
    %3 = tpu.memref_squeeze %2 : memref<1x!tpu.dma_semaphore, #tpu.memory_space<semaphore_mem>> -> memref<!tpu.dma_semaphore, #tpu.memory_space<semaphore_mem>>
    tpu.enqueue_dma source(%arg4 : memref<512x512xbf16, #tpu.memory_space<any>>) target(%arg16 : memref<512x512xbf16, #tpu.memory_space<vmem>>) target_semaphore(%3 : memref<!tpu.dma_semaphore, #tpu.memory_space<semaphore_mem>>)
    %c0 = arith.constant 0 : index
    %c0_0 = arith.constant 0 : index
    %4 = vector.load %arg1[%c0, %c0_0] : memref<16x128xbf16, #tpu.memory_space<vmem>>, vector<16x128xbf16>
    %c0_i32_1 = arith.constant 0 : i32
    %5 = tpu.memref_slice %arg21[%c0_i32_1] : memref<6x!tpu.dma_semaphore, #tpu.memory_space<semaphore_mem>> -> memref<1x!tpu.dma_semaphore, #tpu.memory_space<semaphore_mem>>
    %6 = tpu.memref_squeeze %5 : memref<1x!tpu.dma_semaphore, #tpu.memory_space<semaphore_mem>> -> memref<!tpu.dma_semaphore, #tpu.memory_space<semaphore_mem>>
    tpu.wait_dma2 semaphore(%6 : memref<!tpu.dma_semaphore, #tpu.memory_space<semaphore_mem>>) src(%arg2 : memref<128x512xbf16, #tpu.memory_space<any>>) dst(%arg15 : memref<128x512xbf16, #tpu.memory_space<vmem>>)
    %c2_i32 = arith.constant 2 : i32
    %7 = tpu.memref_slice %arg21[%c2_i32] : memref<6x!tpu.dma_semaphore, #tpu.memory_space<semaphore_mem>> -> memref<1x!tpu.dma_semaphore, #tpu.memory_space<semaphore_mem>>
    %8 = tpu.memref_squeeze %7 : memref<1x!tpu.dma_semaphore, #tpu.memory_space<semaphore_mem>> -> memref<!tpu.dma_semaphore, #tpu.memory_space<semaphore_mem>>
    tpu.enqueue_dma source(%arg6 : memref<512x512xbf16, #tpu.memory_space<any>>) target(%arg17 : memref<512x512xbf16, #tpu.memory_space<vmem>>) target_semaphore(%8 : memref<!tpu.dma_semaphore, #tpu.memory_space<semaphore_mem>>)
    %c0_2 = arith.constant 0 : index
    %c0_3 = arith.constant 0 : index
    %9 = vector.load %arg15[%c0_2, %c0_3] : memref<128x512xbf16, #tpu.memory_space<vmem>>, vector<128x512xbf16>
    %cst = arith.constant dense<0.000000e+00> : vector<16x512xf32>
    %10 = tpu.matmul %4, %9, %cst {dimension_numbers = #tpu.dot_dimension_numbers<[1], [0], [0], [1], [0, 0, 1, 1], [], []>} : vector<16x128xbf16>, vector<128x512xbf16>, vector<16x512xf32> -> vector<16x512xf32>
    %c0_4 = arith.constant 0 : index
    %c0_5 = arith.constant 0 : index
    %11 = vector.load %arg3[%c0_4, %c0_5] : memref<1x512xf32, #tpu.memory_space<vmem>>, vector<1x512xf32>
    %12 = vector.broadcast %11 : vector<1x512xf32> to vector<16x512xf32>
    %13 = arith.addf %10, %12 : vector<16x512xf32>
    %14 = arith.truncf %13 : vector<16x512xf32> to vector<16x512xbf16>
    %cst_6 = arith.constant 0.000000e+00 : bf16
    %15 = vector.broadcast %cst_6 : bf16 to vector<16x512xbf16>
    %16 = arith.cmpf ogt, %14, %15 : vector<16x512xbf16>
    %17 = math.exp %14 : vector<16x512xbf16>
    %cst_7 = arith.constant 1.000000e+00 : bf16
    %18 = vector.broadcast %cst_7 : bf16 to vector<16x512xbf16>
    %19 = arith.subf %17, %18 : vector<16x512xbf16>
    %cst_8 = arith.constant 1.671880e+00 : bf16
    %20 = vector.broadcast %cst_8 : bf16 to vector<16x512xbf16>
    %21 = arith.mulf %20, %19 : vector<16x512xbf16>
    %22 = arith.select %16, %14, %21 : vector<16x512xi1>, vector<16x512xbf16>
    %c1_i32_9 = arith.constant 1 : i32
    %23 = tpu.memref_slice %arg21[%c1_i32_9] : memref<6x!tpu.dma_semaphore, #tpu.memory_space<semaphore_mem>> -> memref<1x!tpu.dma_semaphore, #tpu.memory_space<semaphore_mem>>
    %24 = tpu.memref_squeeze %23 : memref<1x!tpu.dma_semaphore, #tpu.memory_space<semaphore_mem>> -> memref<!tpu.dma_semaphore, #tpu.memory_space<semaphore_mem>>
    tpu.wait_dma2 semaphore(%24 : memref<!tpu.dma_semaphore, #tpu.memory_space<semaphore_mem>>) src(%arg4 : memref<512x512xbf16, #tpu.memory_space<any>>) dst(%arg16 : memref<512x512xbf16, #tpu.memory_space<vmem>>)
    %c3_i32 = arith.constant 3 : i32
    %25 = tpu.memref_slice %arg21[%c3_i32] : memref<6x!tpu.dma_semaphore, #tpu.memory_space<semaphore_mem>> -> memref<1x!tpu.dma_semaphore, #tpu.memory_space<semaphore_mem>>
    %26 = tpu.memref_squeeze %25 : memref<1x!tpu.dma_semaphore, #tpu.memory_space<semaphore_mem>> -> memref<!tpu.dma_semaphore, #tpu.memory_space<semaphore_mem>>
    tpu.enqueue_dma source(%arg8 : memref<512x512xbf16, #tpu.memory_space<any>>) target(%arg18 : memref<512x512xbf16, #tpu.memory_space<vmem>>) target_semaphore(%26 : memref<!tpu.dma_semaphore, #tpu.memory_space<semaphore_mem>>)
    %c0_10 = arith.constant 0 : index
    %c0_11 = arith.constant 0 : index
    %27 = vector.load %arg16[%c0_10, %c0_11] : memref<512x512xbf16, #tpu.memory_space<vmem>>, vector<512x512xbf16>
    %cst_12 = arith.constant dense<0.000000e+00> : vector<16x512xf32>
    %28 = tpu.matmul %22, %27, %cst_12 {dimension_numbers = #tpu.dot_dimension_numbers<[1], [0], [0], [1], [0, 0, 1, 1], [], []>} : vector<16x512xbf16>, vector<512x512xbf16>, vector<16x512xf32> -> vector<16x512xf32>
    %c0_13 = arith.constant 0 : index
    %c0_14 = arith.constant 0 : index
    %29 = vector.load %arg5[%c0_13, %c0_14] : memref<1x512xf32, #tpu.memory_space<vmem>>, vector<1x512xf32>
    %30 = vector.broadcast %29 : vector<1x512xf32> to vector<16x512xf32>
    %31 = arith.addf %28, %30 : vector<16x512xf32>
    %32 = arith.truncf %31 : vector<16x512xf32> to vector<16x512xbf16>
    %cst_15 = arith.constant 0.000000e+00 : bf16
    %33 = vector.broadcast %cst_15 : bf16 to vector<16x512xbf16>
    %34 = arith.cmpf ogt, %32, %33 : vector<16x512xbf16>
    %35 = math.exp %32 : vector<16x512xbf16>
    %cst_16 = arith.constant 1.000000e+00 : bf16
    %36 = vector.broadcast %cst_16 : bf16 to vector<16x512xbf16>
    %37 = arith.subf %35, %36 : vector<16x512xbf16>
    %cst_17 = arith.constant 1.671880e+00 : bf16
    %38 = vector.broadcast %cst_17 : bf16 to vector<16x512xbf16>
    %39 = arith.mulf %38, %37 : vector<16x512xbf16>
    %40 = arith.select %34, %32, %39 : vector<16x512xi1>, vector<16x512xbf16>
    %c2_i32_18 = arith.constant 2 : i32
    %41 = tpu.memref_slice %arg21[%c2_i32_18] : memref<6x!tpu.dma_semaphore, #tpu.memory_space<semaphore_mem>> -> memref<1x!tpu.dma_semaphore, #tpu.memory_space<semaphore_mem>>
    %42 = tpu.memref_squeeze %41 : memref<1x!tpu.dma_semaphore, #tpu.memory_space<semaphore_mem>> -> memref<!tpu.dma_semaphore, #tpu.memory_space<semaphore_mem>>
    tpu.wait_dma2 semaphore(%42 : memref<!tpu.dma_semaphore, #tpu.memory_space<semaphore_mem>>) src(%arg6 : memref<512x512xbf16, #tpu.memory_space<any>>) dst(%arg17 : memref<512x512xbf16, #tpu.memory_space<vmem>>)
    %c4_i32 = arith.constant 4 : i32
    %43 = tpu.memref_slice %arg21[%c4_i32] : memref<6x!tpu.dma_semaphore, #tpu.memory_space<semaphore_mem>> -> memref<1x!tpu.dma_semaphore, #tpu.memory_space<semaphore_mem>>
    %44 = tpu.memref_squeeze %43 : memref<1x!tpu.dma_semaphore, #tpu.memory_space<semaphore_mem>> -> memref<!tpu.dma_semaphore, #tpu.memory_space<semaphore_mem>>
    tpu.enqueue_dma source(%arg10 : memref<512x256xbf16, #tpu.memory_space<any>>) target(%arg19 : memref<512x256xbf16, #tpu.memory_space<vmem>>) target_semaphore(%44 : memref<!tpu.dma_semaphore, #tpu.memory_space<semaphore_mem>>)
    %c0_19 = arith.constant 0 : index
    %c0_20 = arith.constant 0 : index
    %45 = vector.load %arg17[%c0_19, %c0_20] : memref<512x512xbf16, #tpu.memory_space<vmem>>, vector<512x512xbf16>
    %cst_21 = arith.constant dense<0.000000e+00> : vector<16x512xf32>
    %46 = tpu.matmul %40, %45, %cst_21 {dimension_numbers = #tpu.dot_dimension_numbers<[1], [0], [0], [1], [0, 0, 1, 1], [], []>} : vector<16x512xbf16>, vector<512x512xbf16>, vector<16x512xf32> -> vector<16x512xf32>
    %c0_22 = arith.constant 0 : index
    %c0_23 = arith.constant 0 : index
    %47 = vector.load %arg7[%c0_22, %c0_23] : memref<1x512xf32, #tpu.memory_space<vmem>>, vector<1x512xf32>
    %48 = vector.broadcast %47 : vector<1x512xf32> to vector<16x512xf32>
    %49 = arith.addf %46, %48 : vector<16x512xf32>
    %50 = arith.truncf %49 : vector<16x512xf32> to vector<16x512xbf16>
    %cst_24 = arith.constant 0.000000e+00 : bf16
    %51 = vector.broadcast %cst_24 : bf16 to vector<16x512xbf16>
    %52 = arith.cmpf ogt, %50, %51 : vector<16x512xbf16>
    %53 = math.exp %50 : vector<16x512xbf16>
    %cst_25 = arith.constant 1.000000e+00 : bf16
    %54 = vector.broadcast %cst_25 : bf16 to vector<16x512xbf16>
    %55 = arith.subf %53, %54 : vector<16x512xbf16>
    %cst_26 = arith.constant 1.671880e+00 : bf16
    %56 = vector.broadcast %cst_26 : bf16 to vector<16x512xbf16>
    %57 = arith.mulf %56, %55 : vector<16x512xbf16>
    %58 = arith.select %52, %50, %57 : vector<16x512xi1>, vector<16x512xbf16>
    %c3_i32_27 = arith.constant 3 : i32
    %59 = tpu.memref_slice %arg21[%c3_i32_27] : memref<6x!tpu.dma_semaphore, #tpu.memory_space<semaphore_mem>> -> memref<1x!tpu.dma_semaphore, #tpu.memory_space<semaphore_mem>>
    %60 = tpu.memref_squeeze %59 : memref<1x!tpu.dma_semaphore, #tpu.memory_space<semaphore_mem>> -> memref<!tpu.dma_semaphore, #tpu.memory_space<semaphore_mem>>
    tpu.wait_dma2 semaphore(%60 : memref<!tpu.dma_semaphore, #tpu.memory_space<semaphore_mem>>) src(%arg8 : memref<512x512xbf16, #tpu.memory_space<any>>) dst(%arg18 : memref<512x512xbf16, #tpu.memory_space<vmem>>)
    %c5_i32 = arith.constant 5 : i32
    %61 = tpu.memref_slice %arg21[%c5_i32] : memref<6x!tpu.dma_semaphore, #tpu.memory_space<semaphore_mem>> -> memref<1x!tpu.dma_semaphore, #tpu.memory_space<semaphore_mem>>
    %62 = tpu.memref_squeeze %61 : memref<1x!tpu.dma_semaphore, #tpu.memory_space<semaphore_mem>> -> memref<!tpu.dma_semaphore, #tpu.memory_space<semaphore_mem>>
    tpu.enqueue_dma source(%arg12 : memref<256x128xbf16, #tpu.memory_space<any>>) target(%arg20 : memref<256x128xbf16, #tpu.memory_space<vmem>>) target_semaphore(%62 : memref<!tpu.dma_semaphore, #tpu.memory_space<semaphore_mem>>)
    %c0_28 = arith.constant 0 : index
    %c0_29 = arith.constant 0 : index
    %63 = vector.load %arg18[%c0_28, %c0_29] : memref<512x512xbf16, #tpu.memory_space<vmem>>, vector<512x512xbf16>
    %cst_30 = arith.constant dense<0.000000e+00> : vector<16x512xf32>
    %64 = tpu.matmul %58, %63, %cst_30 {dimension_numbers = #tpu.dot_dimension_numbers<[1], [0], [0], [1], [0, 0, 1, 1], [], []>} : vector<16x512xbf16>, vector<512x512xbf16>, vector<16x512xf32> -> vector<16x512xf32>
    %c0_31 = arith.constant 0 : index
    %c0_32 = arith.constant 0 : index
    %65 = vector.load %arg9[%c0_31, %c0_32] : memref<1x512xf32, #tpu.memory_space<vmem>>, vector<1x512xf32>
    %66 = vector.broadcast %65 : vector<1x512xf32> to vector<16x512xf32>
    %67 = arith.addf %64, %66 : vector<16x512xf32>
    %68 = arith.truncf %67 : vector<16x512xf32> to vector<16x512xbf16>
    %cst_33 = arith.constant 0.000000e+00 : bf16
    %69 = vector.broadcast %cst_33 : bf16 to vector<16x512xbf16>
    %70 = arith.cmpf ogt, %68, %69 : vector<16x512xbf16>
    %71 = math.exp %68 : vector<16x512xbf16>
    %cst_34 = arith.constant 1.000000e+00 : bf16
    %72 = vector.broadcast %cst_34 : bf16 to vector<16x512xbf16>
    %73 = arith.subf %71, %72 : vector<16x512xbf16>
    %cst_35 = arith.constant 1.671880e+00 : bf16
    %74 = vector.broadcast %cst_35 : bf16 to vector<16x512xbf16>
    %75 = arith.mulf %74, %73 : vector<16x512xbf16>
    %76 = arith.select %70, %68, %75 : vector<16x512xi1>, vector<16x512xbf16>
    %c4_i32_36 = arith.constant 4 : i32
    %77 = tpu.memref_slice %arg21[%c4_i32_36] : memref<6x!tpu.dma_semaphore, #tpu.memory_space<semaphore_mem>> -> memref<1x!tpu.dma_semaphore, #tpu.memory_space<semaphore_mem>>
    %78 = tpu.memref_squeeze %77 : memref<1x!tpu.dma_semaphore, #tpu.memory_space<semaphore_mem>> -> memref<!tpu.dma_semaphore, #tpu.memory_space<semaphore_mem>>
    tpu.wait_dma2 semaphore(%78 : memref<!tpu.dma_semaphore, #tpu.memory_space<semaphore_mem>>) src(%arg10 : memref<512x256xbf16, #tpu.memory_space<any>>) dst(%arg19 : memref<512x256xbf16, #tpu.memory_space<vmem>>)
    %c0_37 = arith.constant 0 : index
    %c0_38 = arith.constant 0 : index
    %79 = vector.load %arg19[%c0_37, %c0_38] : memref<512x256xbf16, #tpu.memory_space<vmem>>, vector<512x256xbf16>
    %cst_39 = arith.constant dense<0.000000e+00> : vector<16x256xf32>
    %80 = tpu.matmul %76, %79, %cst_39 {dimension_numbers = #tpu.dot_dimension_numbers<[1], [0], [0], [1], [0, 0, 1, 1], [], []>} : vector<16x512xbf16>, vector<512x256xbf16>, vector<16x256xf32> -> vector<16x256xf32>
    %c0_40 = arith.constant 0 : index
    %c0_41 = arith.constant 0 : index
    %81 = vector.load %arg11[%c0_40, %c0_41] : memref<1x256xf32, #tpu.memory_space<vmem>>, vector<1x256xf32>
    %82 = vector.broadcast %81 : vector<1x256xf32> to vector<16x256xf32>
    %83 = arith.addf %80, %82 : vector<16x256xf32>
    %84 = arith.truncf %83 : vector<16x256xf32> to vector<16x256xbf16>
    %cst_42 = arith.constant 0.000000e+00 : bf16
    %85 = vector.broadcast %cst_42 : bf16 to vector<16x256xbf16>
    %86 = arith.cmpf ogt, %84, %85 : vector<16x256xbf16>
    %87 = math.exp %84 : vector<16x256xbf16>
    %cst_43 = arith.constant 1.000000e+00 : bf16
    %88 = vector.broadcast %cst_43 : bf16 to vector<16x256xbf16>
    %89 = arith.subf %87, %88 : vector<16x256xbf16>
    %cst_44 = arith.constant 1.671880e+00 : bf16
    %90 = vector.broadcast %cst_44 : bf16 to vector<16x256xbf16>
    %91 = arith.mulf %90, %89 : vector<16x256xbf16>
    %92 = arith.select %86, %84, %91 : vector<16x256xi1>, vector<16x256xbf16>
    %c5_i32_45 = arith.constant 5 : i32
    %93 = tpu.memref_slice %arg21[%c5_i32_45] : memref<6x!tpu.dma_semaphore, #tpu.memory_space<semaphore_mem>> -> memref<1x!tpu.dma_semaphore, #tpu.memory_space<semaphore_mem>>
    %94 = tpu.memref_squeeze %93 : memref<1x!tpu.dma_semaphore, #tpu.memory_space<semaphore_mem>> -> memref<!tpu.dma_semaphore, #tpu.memory_space<semaphore_mem>>
    tpu.wait_dma2 semaphore(%94 : memref<!tpu.dma_semaphore, #tpu.memory_space<semaphore_mem>>) src(%arg12 : memref<256x128xbf16, #tpu.memory_space<any>>) dst(%arg20 : memref<256x128xbf16, #tpu.memory_space<vmem>>)
    %c0_46 = arith.constant 0 : index
    %c0_47 = arith.constant 0 : index
    %95 = vector.load %arg20[%c0_46, %c0_47] : memref<256x128xbf16, #tpu.memory_space<vmem>>, vector<256x128xbf16>
    %cst_48 = arith.constant dense<0.000000e+00> : vector<16x128xf32>
    %96 = tpu.matmul %92, %95, %cst_48 {dimension_numbers = #tpu.dot_dimension_numbers<[1], [0], [0], [1], [0, 0, 1, 1], [], []>} : vector<16x256xbf16>, vector<256x128xbf16>, vector<16x128xf32> -> vector<16x128xf32>
    %c0_49 = arith.constant 0 : index
    %c0_50 = arith.constant 0 : index
    %97 = vector.load %arg13[%c0_49, %c0_50] : memref<1x128xf32, #tpu.memory_space<vmem>>, vector<1x128xf32>
    %98 = vector.broadcast %97 : vector<1x128xf32> to vector<16x128xf32>
    %99 = arith.addf %96, %98 : vector<16x128xf32>
    %cst_51 = arith.constant dense<0xFF800000> : vector<16xf32>
    %100 = vector.multi_reduction <maximumf>, %99, %cst_51 [1] : vector<16x128xf32> to vector<16xf32>
    %101 = vector.shape_cast %100 : vector<16xf32> to vector<16x1xf32>
    %102 = vector.broadcast %101 : vector<16x1xf32> to vector<16x128xf32>
    %103 = arith.subf %99, %102 : vector<16x128xf32>
    %104 = math.exp %103 : vector<16x128xf32>
    %cst_52 = arith.constant dense<0.000000e+00> : vector<16xf32>
    %105 = vector.multi_reduction <add>, %104, %cst_52 [1] : vector<16x128xf32> to vector<16xf32>
    %106 = vector.shape_cast %105 : vector<16xf32> to vector<16x1xf32>
    %107 = tpu.reciprocal %106 : vector<16x1xf32> -> vector<16x1xf32>
    %108 = vector.broadcast %107 : vector<16x1xf32> to vector<16x128xf32>
    %109 = arith.mulf %104, %108 : vector<16x128xf32>
    %c0_53 = arith.constant 0 : index
    %c0_54 = arith.constant 0 : index
    %110 = vector.load %arg14[%c0_53, %c0_54] : memref<16x128xf32, #tpu.memory_space<vmem>>, vector<16x128xf32>
    tpu.vector_store %arg14[%c0_53, %c0_54], %109 {strides = array<i32>} : memref<16x128xf32, #tpu.memory_space<vmem>>, vector<16x128xf32>,
    return
  }
  func.func @transform_0(%arg0: i32) -> (i32, i32) {
    %c0_i32 = arith.constant 0 : i32
    %c0_i32_0 = arith.constant 0 : i32
    %c0_i32_1 = arith.constant 0 : i32
    return %c0_i32, %c0_i32_0 : i32, i32
  }
  func.func @transform_2(%arg0: i32) -> (i32, i32) {
    %c0_i32 = arith.constant 0 : i32
    %c0_i32_0 = arith.constant 0 : i32
    %c0_i32_1 = arith.constant 0 : i32
    return %c0_i32, %c0_i32_0 : i32, i32
  }
  func.func @transform_4(%arg0: i32) -> (i32, i32) {
    %c0_i32 = arith.constant 0 : i32
    %c0_i32_0 = arith.constant 0 : i32
    %c0_i32_1 = arith.constant 0 : i32
    return %c0_i32, %c0_i32_0 : i32, i32
  }
  func.func @transform_6(%arg0: i32) -> (i32, i32) {
    %c0_i32 = arith.constant 0 : i32
    %c0_i32_0 = arith.constant 0 : i32
    %c0_i32_1 = arith.constant 0 : i32
    return %c0_i32, %c0_i32_0 : i32, i32
  }
  func.func @transform_8(%arg0: i32) -> (i32, i32) {
    %c0_i32 = arith.constant 0 : i32
    %c0_i32_0 = arith.constant 0 : i32
    %c0_i32_1 = arith.constant 0 : i32
    return %c0_i32, %c0_i32_0 : i32, i32
  }
  func.func @transform_10(%arg0: i32) -> (i32, i32) {
    %c0_i32 = arith.constant 0 : i32
    %c0_i32_0 = arith.constant 0 : i32
    %c0_i32_1 = arith.constant 0 : i32
    return %c0_i32, %c0_i32_0 : i32, i32
  }
  func.func @transform_12(%arg0: i32) -> (i32, i32) {
    %c0_i32 = arith.constant 0 : i32
    %c0_i32_0 = arith.constant 0 : i32
    %c0_i32_1 = arith.constant 0 : i32
    return %c0_i32, %c0_i32_0 : i32, i32
  }
  func.func @transform_13(%arg0: i32) -> (i32, i32) {
    %c0_i32 = arith.constant 0 : i32
    %c0_i32_0 = arith.constant 0 : i32
    %c0_i32_1 = arith.constant 0 : i32
    return %c0_i32, %c0_i32_0 : i32, i32
  }
}

</mosaic_0001>

<llo_original>
// kernel: tpu_custom_call.1
$region0: #{tpu_custom_call.1}
  #allocation0 [shape = 'u32[]', space=smem, size = 0x4, offset = 0x4, fixed_abs, tag = 'smem constant byte address 0x4 - core index']
  #allocation1 [shape = 'u32[144,128]{1,0:T(1,128)}', space=vmem, size = 0x12000, scoped, tag = 'internal scratch']
  #allocation2 [shape = 'bf16[128,512]{1,0:T(8,128)(2,1)}', space=vmem, size = 0x20000, scoped, tag = 'scratch operand']
  #allocation3 [shape = 'bf16[512,512]{1,0:T(8,128)(2,1)}', space=vmem, size = 0x80000, scoped, tag = 'scratch operand']
  #allocation4 [shape = 'bf16[512,512]{1,0:T(8,128)(2,1)}', space=vmem, size = 0x80000, scoped, tag = 'scratch operand']
  #allocation5 [shape = 'bf16[512,512]{1,0:T(8,128)(2,1)}', space=vmem, size = 0x80000, scoped, tag = 'scratch operand']
  #allocation6 [shape = 'bf16[512,256]{1,0:T(8,128)(2,1)}', space=vmem, size = 0x40000, scoped, tag = 'scratch operand']
  #allocation7 [shape = 'bf16[256,128]{1,0:T(8,128)(2,1)}', space=vmem, size = 0x10000, scoped, tag = 'scratch operand']
  #allocation8 [shape = 's32[6]{0}', space=sflag, size = 0x18, scoped, tag = 'scratch operand']
  #allocation15 [shape = 's32[]', space=sflag, size = 0x4, offset = 0, fixed_abs, tag = 'sflag constant byte address 0x0 - dummy sync flag']
  #allocation16 [shape = 's32[]', space=sflag, size = 0x4, offset = 0, fixed_abs, tag = 'sflag constant byte address 0x0 - dummy sync flag']
  #allocation17 [shape = 'u32[]', space=smem, size = 0x4, offset = 0x44, fixed_abs, tag = 'smem constant byte address 0x44 - assertion arg 0']
  #allocation18 [shape = 'u32[]', space=smem, size = 0x4, offset = 0x48, fixed_abs, tag = 'smem constant byte address 0x48 - assertion arg 1']
  #allocation19 [shape = 's32[]', space=sflag, size = 0x4, offset = 0, fixed_abs, tag = 'sflag constant byte address 0x0 - dummy sync flag']
  #allocation20 [shape = 's32[]', space=sflag, size = 0x4, offset = 0, fixed_abs, tag = 'sflag constant byte address 0x0 - dummy sync flag']
  #allocation21 [shape = 's32[]', space=sflag, size = 0x4, offset = 0, fixed_abs, tag = 'sflag constant byte address 0x0 - dummy sync flag']
  #allocation22 [shape = 's32[]', space=sflag, size = 0x4, offset = 0, fixed_abs, tag = 'sflag constant byte address 0x0 - dummy sync flag']
  #allocation23 [shape = 's32[]', space=sflag, size = 0x4, offset = 0, fixed_abs, tag = 'sflag constant byte address 0x0 - dummy sync flag']
  #allocation24 [shape = 's32[]', space=sflag, size = 0x4, offset = 0, fixed_abs, tag = 'sflag constant byte address 0x0 - dummy sync flag']
  #allocation25 [shape = 's32[]', space=sflag, size = 0x4, offset = 0, fixed_abs, tag = 'sflag constant byte address 0x0 - dummy sync flag']
  #allocation26 [shape = 's32[]', space=sflag, size = 0x4, offset = 0, fixed_abs, tag = 'sflag constant byte address 0x0 - dummy sync flag']
  #allocation27 [shape = 's32[]', space=sflag, size = 0x4, offset = 0, fixed_abs, tag = 'sflag constant byte address 0x0 - dummy sync flag']
  #allocation28 [shape = 's32[]', space=sflag, size = 0x4, offset = 0, fixed_abs, tag = 'sflag constant byte address 0x0 - dummy sync flag']
  %s0 = inlined_call_operand.hbm [shape: bf16[16,128], index: 0, kind: input, shape index: {}]
  %s1 = inlined_call_operand.hbm [shape: bf16[128,512], index: 1, kind: input, shape index: {}]
  %s2 = inlined_call_operand.hbm [shape: f32[1,512], index: 2, kind: input, shape index: {}]
  %s3 = inlined_call_operand.hbm [shape: bf16[512,512], index: 3, kind: input, shape index: {}]
  %s4 = inlined_call_operand.vmem [shape: f32[1,512], index: 4, kind: input, shape index: {}]
  %s5 = inlined_call_operand.hbm [shape: bf16[512,512], index: 5, kind: input, shape index: {}]
  %s6 = inlined_call_operand.vmem [shape: f32[1,512], index: 6, kind: input, shape index: {}]
  %s7 = inlined_call_operand.hbm [shape: bf16[512,512], index: 7, kind: input, shape index: {}]
  %s8 = inlined_call_operand.vmem [shape: f32[1,512], index: 8, kind: input, shape index: {}]
  %s9 = inlined_call_operand.hbm [shape: bf16[512,256], index: 9, kind: input, shape index: {}]
  %s10 = inlined_call_operand.vmem [shape: f32[1,256], index: 10, kind: input, shape index: {}]
  %s11 = inlined_call_operand.hbm [shape: bf16[256,128], index: 11, kind: input, shape index: {}]
  %s12 = inlined_call_operand.vmem [shape: f32[1,128], index: 12, kind: input, shape index: {}]
  %s13 = inlined_call_operand.hbm [shape: f32[16,128], index: 13, kind: output, shape index: {}]
  %s14 = sld [smem:[#allocation0]]
  $region70: #{tpu_custom_call.1} parent=0
    _
  %s16 = ssub.s32 1, %s14
  %s17 = scalar_select 0, %s16, %s14
  $region1: #{tpu_custom_call.1} parent=0
    #allocation9 [shape = 'u8[4096]{0}', space=vmem, size = 0x1000, scoped, tag = 'input window, operand 0, single buffered']
    #allocation10 [shape = 's32[1]{0}', space=sflag, size = 0x4, scoped, tag = 'scoped memory for tpu_custom_call.1']
    #allocation11 [shape = 's32[1]{0}', space=sflag, size = 0x4, scoped, tag = 'scoped memory for tpu_custom_call.1']
    #allocation12 [shape = 'u8[2048]{0}', space=vmem, size = 0x800, scoped, tag = 'input window, operand 2, single buffered']
    #allocation13 [shape = 's32[1]{0}', space=sflag, size = 0x4, scoped, tag = 'scoped memory for tpu_custom_call.1']
    #allocation14 [shape = 'u8[8192]{0}', space=vmem, size = 0x2000, scoped, tag = 'output window, operand 0, single buffered']
    %18 = vsyncpa [#allocation10], 0
    %19 = vsyncpa [#allocation13], 0
    %20 = vsyncpa [#allocation11], 0
    // Predicated region
    $region2: #{tpu_custom_call.1} parent=1 // pred_check
      _
    $region3: #{tpu_custom_call.1} parent=1 // pred_check_branch
      %22 = sbr.rel (0) target = $region5
    $region4: #{tpu_custom_call.1} parent=1 // pred_region
      %s24 = ssub.s32 128, 128
      %25 = vsyncadd [#allocation10], %s24
      %s26 = sshll.u32 [#allocation9], 4
      %s27 = int_to_ptr.vmem [resolvable:$true] %s26
      %32 = dma.hbm_to_vmem [thread:$0]  %s0, 128, %s27, [#allocation10], 64, 64, 4
    $region5: #{tpu_custom_call.1} parent=1 // pred_fallthru
      _
    // Predicated region
    $region6: #{tpu_custom_call.1} parent=1 // pred_check
      _
    $region7: #{tpu_custom_call.1} parent=1 // pred_check_branch
      %34 = sbr.rel (0) target = $region9
    $region8: #{tpu_custom_call.1} parent=1 // pred_region
      %s36 = ssub.s32 64, 64
      %37 = vsyncadd [#allocation13], %s36
      %s39 = sshll.u32 [#allocation12], 4
      %s40 = int_to_ptr.vmem [resolvable:$true] %s39
      %42 = dma.hbm_to_vmem [thread:$0]  %s2, 64, %s40, [#allocation13]
    $region9: #{tpu_custom_call.1} parent=1 // pred_fallthru
      _
    // Predicated region
    $region10: #{tpu_custom_call.1} parent=1 // pred_check
      _
    $region11: #{tpu_custom_call.1} parent=1 // pred_check_branch
      %44 = sbr.rel (0) target = $region13
    $region12: #{tpu_custom_call.1} parent=1 // pred_region
      _
    $region13: #{tpu_custom_call.1} parent=1 // pred_fallthru
      _
    // Predicated region
    $region14: #{tpu_custom_call.1} parent=1 // pred_check
      _
    $region15: #{tpu_custom_call.1} parent=1 // pred_check_branch
      %46 = sbr.rel (0) target = $region17
    $region16: #{tpu_custom_call.1} parent=1 // pred_region
      _
    $region17: #{tpu_custom_call.1} parent=1 // pred_fallthru
      _
    // Predicated region
    $region18: #{tpu_custom_call.1} parent=1 // pred_check
      _
    $region19: #{tpu_custom_call.1} parent=1 // pred_check_branch
      %48 = sbr.rel (0) target = $region21
    $region20: #{tpu_custom_call.1} parent=1 // pred_region
      _
    $region21: #{tpu_custom_call.1} parent=1 // pred_fallthru
      _
    // Predicated region
    $region22: #{tpu_custom_call.1} parent=1 // pred_check
      _
    $region23: #{tpu_custom_call.1} parent=1 // pred_check_branch
      %50 = sbr.rel (0) target = $region25
    $region24: #{tpu_custom_call.1} parent=1 // pred_region
      _
    $region25: #{tpu_custom_call.1} parent=1 // pred_fallthru
      _
    // Predicated region
    $region26: #{tpu_custom_call.1} parent=1 // pred_check
      _
    $region27: #{tpu_custom_call.1} parent=1 // pred_check_branch
      %52 = sbr.rel (0) target = $region29
    $region28: #{tpu_custom_call.1} parent=1 // pred_region
      _
    $region29: #{tpu_custom_call.1} parent=1 // pred_fallthru
      _
    // Predicated region
    $region30: #{tpu_custom_call.1} parent=1 // pred_check
      _
    $region31: #{tpu_custom_call.1} parent=1 // pred_check_branch
      %54 = sbr.rel (0) target = $region33
    $region32: #{tpu_custom_call.1} parent=1 // pred_region
      %55 = dma.done [#allocation10], 128
    $region33: #{tpu_custom_call.1} parent=1 // pred_fallthru
      _
    // Predicated region
    $region34: #{tpu_custom_call.1} parent=1 // pred_check
      _
    $region35: #{tpu_custom_call.1} parent=1 // pred_check_branch
      %57 = sbr.rel (0) target = $region37
    $region36: #{tpu_custom_call.1} parent=1 // pred_region
      %58 = dma.done [#allocation13], 64
    $region37: #{tpu_custom_call.1} parent=1 // pred_fallthru
      _
    // Predicated region
    $region38: #{tpu_custom_call.1} parent=1 // pred_check
      _
    $region39: #{tpu_custom_call.1} parent=1 // pred_check_branch
      %63 = sbr.rel target = $region41
    $region40: #{tpu_custom_call.1} parent=1 // pred_region
      %64 = sst [smem:[#allocation17]] [#allocation16]
      %65 = sst [smem:[#allocation18]] [#allocation15]
    $region41: #{tpu_custom_call.1} parent=1 // pred_fallthru
      _
    %67 = shalt.err (0)
    %s69 = sshll.u32 [#allocation2], 4
    %s70 = int_to_ptr.vmem [resolvable:$true] %s69
    %72 = dma.hbm_to_vmem [thread:$0]  %s1, 4096, %s70, [#allocation8]
    %s73 = scalar_lea.sflag [#allocation8], 1
    // Predicated region
    $region42: #{tpu_custom_call.1} parent=1 // pred_check
      _
    $region43: #{tpu_custom_call.1} parent=1 // pred_check_branch
      %75 = sbr.rel target = $region45
    $region44: #{tpu_custom_call.1} parent=1 // pred_region
      %76 = sst [smem:[#allocation17]] [#allocation20]
      %77 = sst [smem:[#allocation18]] [#allocation19]
    $region45: #{tpu_custom_call.1} parent=1 // pred_fallthru
      _
    %79 = shalt.err (0)
    %s81 = sshll.u32 [#allocation3], 4
    %s82 = int_to_ptr.vmem [resolvable:$true] %s81
    %84 = dma.hbm_to_vmem [thread:$0]  %s3, 16384, %s82, %s73
    %v85 = vld [vmem:[#allocation9] sm:$0xf]
    %v86 = vld [vmem:[#allocation9 + $0x4] sm:$0xf]
    %s87 = smul.u32 4, 16
    %s88 = smul.u32 %s87, 4
    %s89 = sshll.u32 %s88, 4
    %90 = dma.done [#allocation8], %s89
    %s91 = scalar_lea.sflag [#allocation8], 2
    // Predicated region
    $region46: #{tpu_custom_call.1} parent=1 // pred_check
      _
    $region47: #{tpu_custom_call.1} parent=1 // pred_check_branch
      %93 = sbr.rel target = $region49
    $region48: #{tpu_custom_call.1} parent=1 // pred_region
      %94 = sst [smem:[#allocation17]] [#allocation22]
      %95 = sst [smem:[#allocation18]] [#allocation21]
    $region49: #{tpu_custom_call.1} parent=1 // pred_fallthru
      _
    %97 = shalt.err (0)
    %s99 = sshll.u32 [#allocation4], 4
    %s100 = int_to_ptr.vmem [resolvable:$true] %s99
    %102 = dma.hbm_to_vmem [thread:$0]  %s5, 16384, %s100, %s91
    %v103 = vld [vmem:[#allocation2] sm:$0xff]
    %v104 = vld [vmem:[#allocation2 + $0x8] sm:$0xff]
    %v105 = vld [vmem:[#allocation2 + $0x10] sm:$0xff]
    %v106 = vld [vmem:[#allocation2 + $0x18] sm:$0xff]
    %v107 = vld [vmem:[#allocation2 + $0x20] sm:$0xff]
    %v108 = vld [vmem:[#allocation2 + $0x28] sm:$0xff]
    %v109 = vld [vmem:[#allocation2 + $0x30] sm:$0xff]
    %v110 = vld [vmem:[#allocation2 + $0x38] sm:$0xff]
    %v111 = vld [vmem:[#allocation2 + $0x40] sm:$0xff]
    %v112 = vld [vmem:[#allocation2 + $0x48] sm:$0xff]
    %v113 = vld [vmem:[#allocation2 + $0x50] sm:$0xff]
    %v114 = vld [vmem:[#allocation2 + $0x58] sm:$0xff]
    %v115 = vld [vmem:[#allocation2 + $0x60] sm:$0xff]
    %v116 = vld [vmem:[#allocation2 + $0x68] sm:$0xff]
    %v117 = vld [vmem:[#allocation2 + $0x70] sm:$0xff]
    %v118 = vld [vmem:[#allocation2 + $0x78] sm:$0xff]
    %v119 = vld [vmem:[#allocation2 + $0x80] sm:$0xff]
    %v120 = vld [vmem:[#allocation2 + $0x88] sm:$0xff]
    %v121 = vld [vmem:[#allocation2 + $0x90] sm:$0xff]
    %v122 = vld [vmem:[#allocation2 + $0x98] sm:$0xff]
    %v123 = vld [vmem:[#allocation2 + $0xa0] sm:$0xff]
    %v124 = vld [vmem:[#allocation2 + $0xa8] sm:$0xff]
    %v125 = vld [vmem:[#allocation2 + $0xb0] sm:$0xff]
    %v126 = vld [vmem:[#allocation2 + $0xb8] sm:$0xff]
    %v127 = vld [vmem:[#allocation2 + $0xc0] sm:$0xff]
    %v128 = vld [vmem:[#allocation2 + $0xc8] sm:$0xff]
    %v129 = vld [vmem:[#allocation2 + $0xd0] sm:$0xff]
    %v130 = vld [vmem:[#allocation2 + $0xd8] sm:$0xff]
    %v131 = vld [vmem:[#allocation2 + $0xe0] sm:$0xff]
    %v132 = vld [vmem:[#allocation2 + $0xe8] sm:$0xff]
    %v133 = vld [vmem:[#allocation2 + $0xf0] sm:$0xff]
    %v134 = vld [vmem:[#allocation2 + $0xf8] sm:$0xff]
    %v135 = vld [vmem:[#allocation12] sm:$0xf]
    %v137 = vlaneseq
    %v138 = vshrl.u32 %v137, 7
    %v139 = vsub.s32 0, %v138
    %v140 = vrot.slane %v135, %v139
    %v141 = vlaneseq
    %v142 = vshrl.u32 %v141, 7
    %v143 = vsub.s32 1, %v142
    %v144 = vrot.slane %v135, %v143
    %v145 = vlaneseq
    %v146 = vshrl.u32 %v145, 7
    %v147 = vsub.s32 2, %v146
    %v148 = vrot.slane %v135, %v147
    %v149 = vlaneseq
    %v150 = vshrl.u32 %v149, 7
    %v151 = vsub.s32 3, %v150
    %v152 = vrot.slane %v135, %v151
    %v159 = vunpack.c.l.b16 %v85
    %v160 = vunpack.c.l.b16 %v86
    %v161 = vpack.c.b16 %v160, %v159
    %v195 = vunpack.c.l.b16 %v103
    %v196 = vunpack.c.h.b16 %v103
    %v197 = vunpack.c.l.b16 %v104
    %v198 = vunpack.c.h.b16 %v104
    %v199 = vunpack.c.l.b16 %v105
    %v200 = vunpack.c.h.b16 %v105
    %v201 = vunpack.c.l.b16 %v106
    %v202 = vunpack.c.h.b16 %v106
    %v203 = vunpack.c.l.b16 %v107
    %v204 = vunpack.c.h.b16 %v107
    %v205 = vunpack.c.l.b16 %v108
    %v206 = vunpack.c.h.b16 %v108
    %v207 = vunpack.c.l.b16 %v109
    %v208 = vunpack.c.h.b16 %v109
    %v209 = vunpack.c.l.b16 %v110
    %v210 = vunpack.c.h.b16 %v110
    %v211 = vunpack.c.l.b16 %v111
    %v212 = vunpack.c.h.b16 %v111
    %v213 = vunpack.c.l.b16 %v112
    %v214 = vunpack.c.h.b16 %v112
    %v215 = vunpack.c.l.b16 %v113
    %v216 = vunpack.c.h.b16 %v113
    %v217 = vunpack.c.l.b16 %v114
    %v218 = vunpack.c.h.b16 %v114
    %v219 = vunpack.c.l.b16 %v115
    %v220 = vunpack.c.h.b16 %v115
    %v221 = vunpack.c.l.b16 %v116
    %v222 = vunpack.c.h.b16 %v116
    %v223 = vunpack.c.l.b16 %v117
    %v224 = vunpack.c.h.b16 %v117
    %v225 = vunpack.c.l.b16 %v118
    %v226 = vunpack.c.h.b16 %v118
    %v227 = vunpack.c.l.b16 %v119
    %v228 = vunpack.c.h.b16 %v119
    %v229 = vunpack.c.l.b16 %v120
    %v230 = vunpack.c.h.b16 %v120
    %v231 = vunpack.c.l.b16 %v121
    %v232 = vunpack.c.h.b16 %v121
    %v233 = vunpack.c.l.b16 %v122
    %v234 = vunpack.c.h.b16 %v122
    %v235 = vunpack.c.l.b16 %v123
    %v236 = vunpack.c.h.b16 %v123
    %v237 = vunpack.c.l.b16 %v124
    %v238 = vunpack.c.h.b16 %v124
    %v239 = vunpack.c.l.b16 %v125
    %v240 = vunpack.c.h.b16 %v125
    %v241 = vunpack.c.l.b16 %v126
    %v242 = vunpack.c.h.b16 %v126
    %v243 = vunpack.c.l.b16 %v127
    %v244 = vunpack.c.h.b16 %v127
    %v245 = vunpack.c.l.b16 %v128
    %v246 = vunpack.c.h.b16 %v128
    %v247 = vunpack.c.l.b16 %v129
    %v248 = vunpack.c.h.b16 %v129
    %v249 = vunpack.c.l.b16 %v130
    %v250 = vunpack.c.h.b16 %v130
    %v251 = vunpack.c.l.b16 %v131
    %v252 = vunpack.c.h.b16 %v131
    %v253 = vunpack.c.l.b16 %v132
    %v254 = vunpack.c.h.b16 %v132
    %v255 = vunpack.c.l.b16 %v133
    %v256 = vunpack.c.h.b16 %v133
    %v257 = vunpack.c.l.b16 %v134
    %v258 = vunpack.c.h.b16 %v134
    %v259 = vpack.c.b16 %v199, %v195
    %v260 = vpack.c.b16 %v200, %v196
    %v261 = vpack.c.b16 %v201, %v197
    %v262 = vpack.c.b16 %v202, %v198
    %v263 = vpack.c.b16 %v207, %v203
    %v264 = vpack.c.b16 %v208, %v204
    %v265 = vpack.c.b16 %v209, %v205
    %v266 = vpack.c.b16 %v210, %v206
    %v267 = vpack.c.b16 %v215, %v211
    %v268 = vpack.c.b16 %v216, %v212
    %v269 = vpack.c.b16 %v217, %v213
    %v270 = vpack.c.b16 %v218, %v214
    %v271 = vpack.c.b16 %v223, %v219
    %v272 = vpack.c.b16 %v224, %v220
    %v273 = vpack.c.b16 %v225, %v221
    %v274 = vpack.c.b16 %v226, %v222
    %v275 = vpack.c.b16 %v231, %v227
    %v276 = vpack.c.b16 %v232, %v228
    %v277 = vpack.c.b16 %v233, %v229
    %v278 = vpack.c.b16 %v234, %v230
    %v279 = vpack.c.b16 %v239, %v235
    %v280 = vpack.c.b16 %v240, %v236
    %v281 = vpack.c.b16 %v241, %v237
    %v282 = vpack.c.b16 %v242, %v238
    %v283 = vpack.c.b16 %v247, %v243
    %v284 = vpack.c.b16 %v248, %v244
    %v285 = vpack.c.b16 %v249, %v245
    %v286 = vpack.c.b16 %v250, %v246
    %v287 = vpack.c.b16 %v255, %v251
    %v288 = vpack.c.b16 %v256, %v252
    %v289 = vpack.c.b16 %v257, %v253
    %v290 = vpack.c.b16 %v258, %v254
    %323 = vmatprep.subr.bf16.mxu0 %v288
    %324 = vmatpush1.bf16.msra.mxu0 %v287
    %325 = vmatprep.subr.bf16.mxu0 %v284
    %326 = vmatpush1.bf16.msra.mxu0 %v283
    %327 = vmatprep.subr.bf16.mxu0 %v280
    %328 = vmatpush1.bf16.msra.mxu0 %v279
    %329 = vmatprep.subr.bf16.mxu0 %v276
    %330 = vmatpush1.bf16.msra.mxu0 %v275
    %331 = vmatprep.subr.bf16.mxu0 %v272
    %332 = vmatpush1.bf16.msra.mxu0 %v271
    %333 = vmatprep.subr.bf16.mxu0 %v268
    %334 = vmatpush1.bf16.msra.mxu0 %v267
    %335 = vmatprep.subr.bf16.mxu0 %v264
    %336 = vmatpush1.bf16.msra.mxu0 %v263
    %337 = vmatprep.subr.bf16.mxu0 %v260
    %338 = vmatpush1.bf16.msra.mxu0 %v259
    %339 = vmatprep.subr.bf16.mxu0 0
    %340 = vmatpush2.bf16.msra.mxu0 0
    %341 = vmatprep.subr.bf16.mxu0 0
    %342 = vmatpush2.bf16.msra.mxu0 0
    %343 = vmatprep.subr.bf16.mxu0 0
    %344 = vmatpush2.bf16.msra.mxu0 0
    %345 = vmatprep.subr.bf16.mxu0 0
    %346 = vmatpush2.bf16.msra.mxu0 0
    %347 = vmatprep.subr.bf16.mxu0 0
    %348 = vmatpush2.bf16.msra.mxu0 0
    %349 = vmatprep.subr.bf16.mxu0 0
    %350 = vmatpush2.bf16.msra.mxu0 0
    %351 = vmatprep.subr.bf16.mxu0 0
    %352 = vmatpush2.bf16.msra.mxu0 0
    %353 = vmatprep.subr.bf16.mxu0 0
    %354 = vmatpush2.bf16.msra.mxu0 0
    %355 = vmatprep.mubr.bf16.mxu0 0
    %356 = vmatmul.mubr.bf16.gmra.mxu0 %v161
    %v357 = vpop.f32.mrf.mxu0
    %v358 = vadd.f32 %v140, %v357
    %v359 = vpop.f32.mrf.mxu0
    %v360 = vadd.f32 %v144, %v359
    %v361 = vpop.f32.mrf.mxu0
    %v362 = vadd.f32 %v140, %v361
    %v363 = vpop.f32.mrf.mxu0
    %v364 = vadd.f32 %v144, %v363
    %365 = vdwg.mxu0
    %366 = vmatprep.subr.bf16.mxu0 %v290
    %367 = vmatpush1.bf16.msra.mxu0 %v289
    %368 = vmatprep.subr.bf16.mxu0 %v286
    %369 = vmatpush1.bf16.msra.mxu0 %v285
    %370 = vmatprep.subr.bf16.mxu0 %v282
    %371 = vmatpush1.bf16.msra.mxu0 %v281
    %372 = vmatprep.subr.bf16.mxu0 %v278
    %373 = vmatpush1.bf16.msra.mxu0 %v277
    %374 = vmatprep.subr.bf16.mxu0 %v274
    %375 = vmatpush1.bf16.msra.mxu0 %v273
    %376 = vmatprep.subr.bf16.mxu0 %v270
    %377 = vmatpush1.bf16.msra.mxu0 %v269
    %378 = vmatprep.subr.bf16.mxu0 %v266
    %379 = vmatpush1.bf16.msra.mxu0 %v265
    %380 = vmatprep.subr.bf16.mxu0 %v262
    %381 = vmatpush1.bf16.msra.mxu0 %v261
    %382 = vmatprep.subr.bf16.mxu0 0
    %383 = vmatpush2.bf16.msra.mxu0 0
    %384 = vmatprep.subr.bf16.mxu0 0
    %385 = vmatpush2.bf16.msra.mxu0 0
    %386 = vmatprep.subr.bf16.mxu0 0
    %387 = vmatpush2.bf16.msra.mxu0 0
    %388 = vmatprep.subr.bf16.mxu0 0
    %389 = vmatpush2.bf16.msra.mxu0 0
    %390 = vmatprep.subr.bf16.mxu0 0
    %391 = vmatpush2.bf16.msra.mxu0 0
    %392 = vmatprep.subr.bf16.mxu0 0
    %393 = vmatpush2.bf16.msra.mxu0 0
    %394 = vmatprep.subr.bf16.mxu0 0
    %395 = vmatpush2.bf16.msra.mxu0 0
    %396 = vmatprep.subr.bf16.mxu0 0
    %397 = vmatpush2.bf16.msra.mxu0 0
    %398 = vmatprep.mubr.bf16.mxu0 0
    %399 = vmatmul.mubr.bf16.gmra.mxu0 %v161
    %v400 = vpop.f32.mrf.mxu0
    %v401 = vadd.f32 %v148, %v400
    %v402 = vpop.f32.mrf.mxu0
    %v403 = vadd.f32 %v152, %v402
    %v404 = vpop.f32.mrf.mxu0
    %v405 = vadd.f32 %v148, %v404
    %v406 = vpop.f32.mrf.mxu0
    %v407 = vadd.f32 %v152, %v406
    %408 = vdwg.mxu0
    %v409 = vpack.c.bf16 %v362, %v358
    %v410 = vpack.c.bf16 %v364, %v360
    %v411 = vpack.c.bf16 %v405, %v401
    %v412 = vpack.c.bf16 %v407, %v403
    %vm413 = vcmp.gt.bf16.partialorder %v409, 0
    %vm414 = vcmp.gt.bf16.partialorder %v410, 0
    %vm415 = vcmp.gt.bf16.partialorder %v411, 0
    %vm416 = vcmp.gt.bf16.partialorder %v412, 0
    %v418 = vmul.bf16 %v409, 1069105081
    %v419 = vpow.bf16.pop %v418
    %v421 = vmul.bf16 %v410, 1069105081
    %v422 = vpow.bf16.pop %v421
    %v424 = vmul.bf16 %v411, 1069105081
    %v425 = vpow.bf16.pop %v424
    %v427 = vmul.bf16 %v412, 1069105081
    %v428 = vpow.bf16.pop %v427
    %v429 = vsub.bf16 %v419, 1065369472
    %v430 = vsub.bf16 %v422, 1065369472
    %v431 = vsub.bf16 %v425, 1065369472
    %v432 = vsub.bf16 %v428, 1065369472
    %v433 = vmul.bf16 %v429, 1071005654
    %v434 = vmul.bf16 %v430, 1071005654
    %v435 = vmul.bf16 %v431, 1071005654
    %v436 = vmul.bf16 %v432, 1071005654
    %v437 = vsel %vm413, %v409, %v433
    %v438 = vsel %vm414, %v410, %v434
    %v439 = vsel %vm415, %v411, %v435
    %v440 = vsel %vm416, %v412, %v436
    %s441 = smul.u32 4, 64
    %s442 = smul.u32 %s441, 4
    %s443 = sshll.u32 %s442, 4
    %444 = dma.done %s73, %s443
    %s445 = scalar_lea.sflag [#allocation8], 3
    // Predicated region
    $region50: #{tpu_custom_call.1} parent=1 // pred_check
      _
    $region51: #{tpu_custom_call.1} parent=1 // pred_check_branch
      %447 = sbr.rel target = $region53
    $region52: #{tpu_custom_call.1} parent=1 // pred_region
      %448 = sst [smem:[#allocation17]] [#allocation24]
      %449 = sst [smem:[#allocation18]] [#allocation23]
    $region53: #{tpu_custom_call.1} parent=1 // pred_fallthru
      _
    %451 = shalt.err (0)
    %s453 = sshll.u32 [#allocation5], 4
    %s454 = int_to_ptr.vmem [resolvable:$true] %s453
    %456 = dma.hbm_to_vmem [thread:$0]  %s7, 16384, %s454, %s445
    %v457 = vld [vmem:[#allocation3] sm:$0xff]
    %v458 = vld [vmem:[#allocation3 + $0x8] sm:$0xff]
    %v459 = vld [vmem:[#allocation3 + $0x10] sm:$0xff]
    %v460 = vld [vmem:[#allocation3 + $0x18] sm:$0xff]
    %v461 = vld [vmem:[#allocation3 + $0x20] sm:$0xff]
    %v462 = vld [vmem:[#allocation3 + $0x28] sm:$0xff]
    %v463 = vld [vmem:[#allocation3 + $0x30] sm:$0xff]
    %v464 = vld [vmem:[#allocation3 + $0x38] sm:$0xff]
    %v465 = vld [vmem:[#allocation3 + $0x40] sm:$0xff]
    %v466 = vld [vmem:[#allocation3 + $0x48] sm:$0xff]
    %v467 = vld [vmem:[#allocation3 + $0x50] sm:$0xff]
    %v468 = vld [vmem:[#allocation3 + $0x58] sm:$0xff]
    %v469 = vld [vmem:[#allocation3 + $0x60] sm:$0xff]
    %v470 = vld [vmem:[#allocation3 + $0x68] sm:$0xff]
    %v471 = vld [vmem:[#allocation3 + $0x70] sm:$0xff]
    %v472 = vld [vmem:[#allocation3 + $0x78] sm:$0xff]
    %v473 = vld [vmem:[#allocation3 + $0x80] sm:$0xff]
    %v474 = vld [vmem:[#allocation3 + $0x88] sm:$0xff]
    %v475 = vld [vmem:[#allocation3 + $0x90] sm:$0xff]
    %v476 = vld [vmem:[#allocation3 + $0x98] sm:$0xff]
    %v477 = vld [vmem:[#allocation3 + $0xa0] sm:$0xff]
    %v478 = vld [vmem:[#allocation3 + $0xa8] sm:$0xff]
    %v479 = vld [vmem:[#allocation3 + $0xb0] sm:$0xff]
    %v480 = vld [vmem:[#allocation3 + $0xb8] sm:$0xff]
    %v481 = vld [vmem:[#allocation3 + $0xc0] sm:$0xff]
    %v482 = vld [vmem:[#allocation3 + $0xc8] sm:$0xff]
    %v483 = vld [vmem:[#allocation3 + $0xd0] sm:$0xff]
    %v484 = vld [vmem:[#allocation3 + $0xd8] sm:$0xff]
    %v485 = vld [vmem:[#allocation3 + $0xe0] sm:$0xff]
    %v486 = vld [vmem:[#allocation3 + $0xe8] sm:$0xff]
    %v487 = vld [vmem:[#allocation3 + $0xf0] sm:$0xff]
    %v488 = vld [vmem:[#allocation3 + $0xf8] sm:$0xff]
    %v489 = vld [vmem:[#allocation3 + $0x100] sm:$0xff]
    %v490 = vld [vmem:[#allocation3 + $0x108] sm:$0xff]
    %v491 = vld [vmem:[#allocation3 + $0x110] sm:$0xff]
    %v492 = vld [vmem:[#allocation3 + $0x118] sm:$0xff]
    %v493 = vld [vmem:[#allocation3 + $0x120] sm:$0xff]
    %v494 = vld [vmem:[#allocation3 + $0x128] sm:$0xff]
    %v495 = vld [vmem:[#allocation3 + $0x130] sm:$0xff]
    %v496 = vld [vmem:[#allocation3 + $0x138] sm:$0xff]
    %v497 = vld [vmem:[#allocation3 + $0x140] sm:$0xff]
    %v498 = vld [vmem:[#allocation3 + $0x148] sm:$0xff]
    %v499 = vld [vmem:[#allocation3 + $0x150] sm:$0xff]
    %v500 = vld [vmem:[#allocation3 + $0x158] sm:$0xff]
    %v501 = vld [vmem:[#allocation3 + $0x160] sm:$0xff]
    %v502 = vld [vmem:[#allocation3 + $0x168] sm:$0xff]
    %v503 = vld [vmem:[#allocation3 + $0x170] sm:$0xff]
    %v504 = vld [vmem:[#allocation3 + $0x178] sm:$0xff]
    %v505 = vld [vmem:[#allocation3 + $0x180] sm:$0xff]
    %v506 = vld [vmem:[#allocation3 + $0x188] sm:$0xff]
    %v507 = vld [vmem:[#allocation3 + $0x190] sm:$0xff]
    %v508 = vld [vmem:[#allocation3 + $0x198] sm:$0xff]
    %v509 = vld [vmem:[#allocation3 + $0x1a0] sm:$0xff]
    %v510 = vld [vmem:[#allocation3 + $0x1a8] sm:$0xff]
    %v511 = vld [vmem:[#allocation3 + $0x1b0] sm:$0xff]
    %v512 = vld [vmem:[#allocation3 + $0x1b8] sm:$0xff]
    %v513 = vld [vmem:[#allocation3 + $0x1c0] sm:$0xff]
    %v514 = vld [vmem:[#allocation3 + $0x1c8] sm:$0xff]
    %v515 = vld [vmem:[#allocation3 + $0x1d0] sm:$0xff]
    %v516 = vld [vmem:[#allocation3 + $0x1d8] sm:$0xff]
    %v517 = vld [vmem:[#allocation3 + $0x1e0] sm:$0xff]
    %v518 = vld [vmem:[#allocation3 + $0x1e8] sm:$0xff]
    %v519 = vld [vmem:[#allocation3 + $0x1f0] sm:$0xff]
    %v520 = vld [vmem:[#allocation3 + $0x1f8] sm:$0xff]
    %v521 = vld [vmem:[#allocation3 + $0x200] sm:$0xff]
    %v522 = vld [vmem:[#allocation3 + $0x208] sm:$0xff]
    %v523 = vld [vmem:[#allocation3 + $0x210] sm:$0xff]
    %v524 = vld [vmem:[#allocation3 + $0x218] sm:$0xff]
    %v525 = vld [vmem:[#allocation3 + $0x220] sm:$0xff]
    %v526 = vld [vmem:[#allocation3 + $0x228] sm:$0xff]
    %v527 = vld [vmem:[#allocation3 + $0x230] sm:$0xff]
    %v528 = vld [vmem:[#allocation3 + $0x238] sm:$0xff]
    %v529 = vld [vmem:[#allocation3 + $0x240] sm:$0xff]
    %v530 = vld [vmem:[#allocation3 + $0x248] sm:$0xff]
    %v531 = vld [vmem:[#allocation3 + $0x250] sm:$0xff]
    %v532 = vld [vmem:[#allocation3 + $0x258] sm:$0xff]
    %v533 = vld [vmem:[#allocation3 + $0x260] sm:$0xff]
    %v534 = vld [vmem:[#allocation3 + $0x268] sm:$0xff]
    %v535 = vld [vmem:[#allocation3 + $0x270] sm:$0xff]
    %v536 = vld [vmem:[#allocation3 + $0x278] sm:$0xff]
    %v537 = vld [vmem:[#allocation3 + $0x280] sm:$0xff]
    %v538 = vld [vmem:[#allocation3 + $0x288] sm:$0xff]
    %v539 = vld [vmem:[#allocation3 + $0x290] sm:$0xff]
    %v540 = vld [vmem:[#allocation3 + $0x298] sm:$0xff]
    %v541 = vld [vmem:[#allocation3 + $0x2a0] sm:$0xff]
    %v542 = vld [vmem:[#allocation3 + $0x2a8] sm:$0xff]
    %v543 = vld [vmem:[#allocation3 + $0x2b0] sm:$0xff]
    %v544 = vld [vmem:[#allocation3 + $0x2b8] sm:$0xff]
    %v545 = vld [vmem:[#allocation3 + $0x2c0] sm:$0xff]
    %v546 = vld [vmem:[#allocation3 + $0x2c8] sm:$0xff]
    %v547 = vld [vmem:[#allocation3 + $0x2d0] sm:$0xff]
    %v548 = vld [vmem:[#allocation3 + $0x2d8] sm:$0xff]
    %v549 = vld [vmem:[#allocation3 + $0x2e0] sm:$0xff]
    %v550 = vld [vmem:[#allocation3 + $0x2e8] sm:$0xff]
    %v551 = vld [vmem:[#allocation3 + $0x2f0] sm:$0xff]
    %v552 = vld [vmem:[#allocation3 + $0x2f8] sm:$0xff]
    %v553 = vld [vmem:[#allocation3 + $0x300] sm:$0xff]
    %v554 = vld [vmem:[#allocation3 + $0x308] sm:$0xff]
    %v555 = vld [vmem:[#allocation3 + $0x310] sm:$0xff]
    %v556 = vld [vmem:[#allocation3 + $0x318] sm:$0xff]
    %v557 = vld [vmem:[#allocation3 + $0x320] sm:$0xff]
    %v558 = vld [vmem:[#allocation3 + $0x328] sm:$0xff]
    %v559 = vld [vmem:[#allocation3 + $0x330] sm:$0xff]
    %v560 = vld [vmem:[#allocation3 + $0x338] sm:$0xff]
    %v561 = vld [vmem:[#allocation3 + $0x340] sm:$0xff]
    %v562 = vld [vmem:[#allocation3 + $0x348] sm:$0xff]
    %v563 = vld [vmem:[#allocation3 + $0x350] sm:$0xff]
    %v564 = vld [vmem:[#allocation3 + $0x358] sm:$0xff]
    %v565 = vld [vmem:[#allocation3 + $0x360] sm:$0xff]
    %v566 = vld [vmem:[#allocation3 + $0x368] sm:$0xff]
    %v567 = vld [vmem:[#allocation3 + $0x370] sm:$0xff]
    %v568 = vld [vmem:[#allocation3 + $0x378] sm:$0xff]
    %v569 = vld [vmem:[#allocation3 + $0x380] sm:$0xff]
    %v570 = vld [vmem:[#allocation3 + $0x388] sm:$0xff]
    %v571 = vld [vmem:[#allocation3 + $0x390] sm:$0xff]
    %v572 = vld [vmem:[#allocation3 + $0x398] sm:$0xff]
    %v573 = vld [vmem:[#allocation3 + $0x3a0] sm:$0xff]
    %v574 = vld [vmem:[#allocation3 + $0x3a8] sm:$0xff]
    %v575 = vld [vmem:[#allocation3 + $0x3b0] sm:$0xff]
    %v576 = vld [vmem:[#allocation3 + $0x3b8] sm:$0xff]
    %v577 = vld [vmem:[#allocation3 + $0x3c0] sm:$0xff]
    %v578 = vld [vmem:[#allocation3 + $0x3c8] sm:$0xff]
    %v579 = vld [vmem:[#allocation3 + $0x3d0] sm:$0xff]
    %v580 = vld [vmem:[#allocation3 + $0x3d8] sm:$0xff]
    %v581 = vld [vmem:[#allocation3 + $0x3e0] sm:$0xff]
    %v582 = vld [vmem:[#allocation3 + $0x3e8] sm:$0xff]
    %v583 = vld [vmem:[#allocation3 + $0x3f0] sm:$0xff]
    %v584 = vld [vmem:[#allocation3 + $0x3f8] sm:$0xff]
    %v585 = vld [vmem:[%s4] sm:$0xf]
    %v587 = vlaneseq
    %v588 = vshrl.u32 %v587, 7
    %v589 = vsub.s32 0, %v588
    %v590 = vrot.slane %v585, %v589
    %v591 = vlaneseq
    %v592 = vshrl.u32 %v591, 7
    %v593 = vsub.s32 1, %v592
    %v594 = vrot.slane %v585, %v593
    %v595 = vlaneseq
    %v596 = vshrl.u32 %v595, 7
    %v597 = vsub.s32 2, %v596
    %v598 = vrot.slane %v585, %v597
    %v599 = vlaneseq
    %v600 = vshrl.u32 %v599, 7
    %v601 = vsub.s32 3, %v600
    %v602 = vrot.slane %v585, %v601
    %v735 = vunpack.c.l.b16 %v457
    %v736 = vunpack.c.h.b16 %v457
    %v737 = vunpack.c.l.b16 %v458
    %v738 = vunpack.c.h.b16 %v458
    %v739 = vunpack.c.l.b16 %v459
    %v740 = vunpack.c.h.b16 %v459
    %v741 = vunpack.c.l.b16 %v460
    %v742 = vunpack.c.h.b16 %v460
    %v743 = vunpack.c.l.b16 %v461
    %v744 = vunpack.c.h.b16 %v461
    %v745 = vunpack.c.l.b16 %v462
    %v746 = vunpack.c.h.b16 %v462
    %v747 = vunpack.c.l.b16 %v463
    %v748 = vunpack.c.h.b16 %v463
    %v749 = vunpack.c.l.b16 %v464
    %v750 = vunpack.c.h.b16 %v464
    %v751 = vunpack.c.l.b16 %v465
    %v752 = vunpack.c.h.b16 %v465
    %v753 = vunpack.c.l.b16 %v466
    %v754 = vunpack.c.h.b16 %v466
    %v755 = vunpack.c.l.b16 %v467
    %v756 = vunpack.c.h.b16 %v467
    %v757 = vunpack.c.l.b16 %v468
    %v758 = vunpack.c.h.b16 %v468
    %v759 = vunpack.c.l.b16 %v469
    %v760 = vunpack.c.h.b16 %v469
    %v761 = vunpack.c.l.b16 %v470
    %v762 = vunpack.c.h.b16 %v470
    %v763 = vunpack.c.l.b16 %v471
    %v764 = vunpack.c.h.b16 %v471
    %v765 = vunpack.c.l.b16 %v472
    %v766 = vunpack.c.h.b16 %v472
    %v767 = vunpack.c.l.b16 %v473
    %v768 = vunpack.c.h.b16 %v473
    %v769 = vunpack.c.l.b16 %v474
    %v770 = vunpack.c.h.b16 %v474
    %v771 = vunpack.c.l.b16 %v475
    %v772 = vunpack.c.h.b16 %v475
    %v773 = vunpack.c.l.b16 %v476
    %v774 = vunpack.c.h.b16 %v476
    %v775 = vunpack.c.l.b16 %v477
    %v776 = vunpack.c.h.b16 %v477
    %v777 = vunpack.c.l.b16 %v478
    %v778 = vunpack.c.h.b16 %v478
    %v779 = vunpack.c.l.b16 %v479
    %v780 = vunpack.c.h.b16 %v479
    %v781 = vunpack.c.l.b16 %v480
    %v782 = vunpack.c.h.b16 %v480
    %v783 = vunpack.c.l.b16 %v481
    %v784 = vunpack.c.h.b16 %v481
    %v785 = vunpack.c.l.b16 %v482
    %v786 = vunpack.c.h.b16 %v482
    %v787 = vunpack.c.l.b16 %v483
    %v788 = vunpack.c.h.b16 %v483
    %v789 = vunpack.c.l.b16 %v484
    %v790 = vunpack.c.h.b16 %v484
    %v791 = vunpack.c.l.b16 %v485
    %v792 = vunpack.c.h.b16 %v485
    %v793 = vunpack.c.l.b16 %v486
    %v794 = vunpack.c.h.b16 %v486
    %v795 = vunpack.c.l.b16 %v487
    %v796 = vunpack.c.h.b16 %v487
    %v797 = vunpack.c.l.b16 %v488
    %v798 = vunpack.c.h.b16 %v488
    %v799 = vunpack.c.l.b16 %v489
    %v800 = vunpack.c.h.b16 %v489
    %v801 = vunpack.c.l.b16 %v490
    %v802 = vunpack.c.h.b16 %v490
    %v803 = vunpack.c.l.b16 %v491
    %v804 = vunpack.c.h.b16 %v491
    %v805 = vunpack.c.l.b16 %v492
    %v806 = vunpack.c.h.b16 %v492
    %v807 = vunpack.c.l.b16 %v493
    %v808 = vunpack.c.h.b16 %v493
    %v809 = vunpack.c.l.b16 %v494
    %v810 = vunpack.c.h.b16 %v494
    %v811 = vunpack.c.l.b16 %v495
    %v812 = vunpack.c.h.b16 %v495
    %v813 = vunpack.c.l.b16 %v496
    %v814 = vunpack.c.h.b16 %v496
    %v815 = vunpack.c.l.b16 %v497
    %v816 = vunpack.c.h.b16 %v497
    %v817 = vunpack.c.l.b16 %v498
    %v818 = vunpack.c.h.b16 %v498
    %v819 = vunpack.c.l.b16 %v499
    %v820 = vunpack.c.h.b16 %v499
    %v821 = vunpack.c.l.b16 %v500
    %v822 = vunpack.c.h.b16 %v500
    %v823 = vunpack.c.l.b16 %v501
    %v824 = vunpack.c.h.b16 %v501
    %v825 = vunpack.c.l.b16 %v502
    %v826 = vunpack.c.h.b16 %v502
    %v827 = vunpack.c.l.b16 %v503
    %v828 = vunpack.c.h.b16 %v503
    %v829 = vunpack.c.l.b16 %v504
    %v830 = vunpack.c.h.b16 %v504
    %v831 = vunpack.c.l.b16 %v505
    %v832 = vunpack.c.h.b16 %v505
    %v833 = vunpack.c.l.b16 %v506
    %v834 = vunpack.c.h.b16 %v506
    %v835 = vunpack.c.l.b16 %v507
    %v836 = vunpack.c.h.b16 %v507
    %v837 = vunpack.c.l.b16 %v508
    %v838 = vunpack.c.h.b16 %v508
    %v839 = vunpack.c.l.b16 %v509
    %v840 = vunpack.c.h.b16 %v509
    %v841 = vunpack.c.l.b16 %v510
    %v842 = vunpack.c.h.b16 %v510
    %v843 = vunpack.c.l.b16 %v511
    %v844 = vunpack.c.h.b16 %v511
    %v845 = vunpack.c.l.b16 %v512
    %v846 = vunpack.c.h.b16 %v512
    %v847 = vunpack.c.l.b16 %v513
    %v848 = vunpack.c.h.b16 %v513
    %v849 = vunpack.c.l.b16 %v514
    %v850 = vunpack.c.h.b16 %v514
    %v851 = vunpack.c.l.b16 %v515
    %v852 = vunpack.c.h.b16 %v515
    %v853 = vunpack.c.l.b16 %v516
    %v854 = vunpack.c.h.b16 %v516
    %v855 = vunpack.c.l.b16 %v517
    %v856 = vunpack.c.h.b16 %v517
    %v857 = vunpack.c.l.b16 %v518
    %v858 = vunpack.c.h.b16 %v518
    %v859 = vunpack.c.l.b16 %v519
    %v860 = vunpack.c.h.b16 %v519
    %v861 = vunpack.c.l.b16 %v520
    %v862 = vunpack.c.h.b16 %v520
    %v863 = vunpack.c.l.b16 %v521
    %v864 = vunpack.c.h.b16 %v521
    %v865 = vunpack.c.l.b16 %v522
    %v866 = vunpack.c.h.b16 %v522
    %v867 = vunpack.c.l.b16 %v523
    %v868 = vunpack.c.h.b16 %v523
    %v869 = vunpack.c.l.b16 %v524
    %v870 = vunpack.c.h.b16 %v524
    %v871 = vunpack.c.l.b16 %v525
    %v872 = vunpack.c.h.b16 %v525
    %v873 = vunpack.c.l.b16 %v526
    %v874 = vunpack.c.h.b16 %v526
    %v875 = vunpack.c.l.b16 %v527
    %v876 = vunpack.c.h.b16 %v527
    %v877 = vunpack.c.l.b16 %v528
    %v878 = vunpack.c.h.b16 %v528
    %v879 = vunpack.c.l.b16 %v529
    %v880 = vunpack.c.h.b16 %v529
    %v881 = vunpack.c.l.b16 %v530
    %v882 = vunpack.c.h.b16 %v530
    %v883 = vunpack.c.l.b16 %v531
    %v884 = vunpack.c.h.b16 %v531
    %v885 = vunpack.c.l.b16 %v532
    %v886 = vunpack.c.h.b16 %v532
    %v887 = vunpack.c.l.b16 %v533
    %v888 = vunpack.c.h.b16 %v533
    %v889 = vunpack.c.l.b16 %v534
    %v890 = vunpack.c.h.b16 %v534
    %v891 = vunpack.c.l.b16 %v535
    %v892 = vunpack.c.h.b16 %v535
    %v893 = vunpack.c.l.b16 %v536
    %v894 = vunpack.c.h.b16 %v536
    %v895 = vunpack.c.l.b16 %v537
    %v896 = vunpack.c.h.b16 %v537
    %v897 = vunpack.c.l.b16 %v538
    %v898 = vunpack.c.h.b16 %v538
    %v899 = vunpack.c.l.b16 %v539
    %v900 = vunpack.c.h.b16 %v539
    %v901 = vunpack.c.l.b16 %v540
    %v902 = vunpack.c.h.b16 %v540
    %v903 = vunpack.c.l.b16 %v541
    %v904 = vunpack.c.h.b16 %v541
    %v905 = vunpack.c.l.b16 %v542
    %v906 = vunpack.c.h.b16 %v542
    %v907 = vunpack.c.l.b16 %v543
    %v908 = vunpack.c.h.b16 %v543
    %v909 = vunpack.c.l.b16 %v544
    %v910 = vunpack.c.h.b16 %v544
    %v911 = vunpack.c.l.b16 %v545
    %v912 = vunpack.c.h.b16 %v545
    %v913 = vunpack.c.l.b16 %v546
    %v914 = vunpack.c.h.b16 %v546
    %v915 = vunpack.c.l.b16 %v547
    %v916 = vunpack.c.h.b16 %v547
    %v917 = vunpack.c.l.b16 %v548
    %v918 = vunpack.c.h.b16 %v548
    %v919 = vunpack.c.l.b16 %v549
    %v920 = vunpack.c.h.b16 %v549
    %v921 = vunpack.c.l.b16 %v550
    %v922 = vunpack.c.h.b16 %v550
    %v923 = vunpack.c.l.b16 %v551
    %v924 = vunpack.c.h.b16 %v551
    %v925 = vunpack.c.l.b16 %v552
    %v926 = vunpack.c.h.b16 %v552
    %v927 = vunpack.c.l.b16 %v553
    %v928 = vunpack.c.h.b16 %v553
    %v929 = vunpack.c.l.b16 %v554
    %v930 = vunpack.c.h.b16 %v554
    %v931 = vunpack.c.l.b16 %v555
    %v932 = vunpack.c.h.b16 %v555
    %v933 = vunpack.c.l.b16 %v556
    %v934 = vunpack.c.h.b16 %v556
    %v935 = vunpack.c.l.b16 %v557
    %v936 = vunpack.c.h.b16 %v557
    %v937 = vunpack.c.l.b16 %v558
    %v938 = vunpack.c.h.b16 %v558
    %v939 = vunpack.c.l.b16 %v559
    %v940 = vunpack.c.h.b16 %v559
    %v941 = vunpack.c.l.b16 %v560
    %v942 = vunpack.c.h.b16 %v560
    %v943 = vunpack.c.l.b16 %v561
    %v944 = vunpack.c.h.b16 %v561
    %v945 = vunpack.c.l.b16 %v562
    %v946 = vunpack.c.h.b16 %v562
    %v947 = vunpack.c.l.b16 %v563
    %v948 = vunpack.c.h.b16 %v563
    %v949 = vunpack.c.l.b16 %v564
    %v950 = vunpack.c.h.b16 %v564
    %v951 = vunpack.c.l.b16 %v565
    %v952 = vunpack.c.h.b16 %v565
    %v953 = vunpack.c.l.b16 %v566
    %v954 = vunpack.c.h.b16 %v566
    %v955 = vunpack.c.l.b16 %v567
    %v956 = vunpack.c.h.b16 %v567
    %v957 = vunpack.c.l.b16 %v568
    %v958 = vunpack.c.h.b16 %v568
    %v959 = vunpack.c.l.b16 %v569
    %v960 = vunpack.c.h.b16 %v569
    %v961 = vunpack.c.l.b16 %v570
    %v962 = vunpack.c.h.b16 %v570
    %v963 = vunpack.c.l.b16 %v571
    %v964 = vunpack.c.h.b16 %v571
    %v965 = vunpack.c.l.b16 %v572
    %v966 = vunpack.c.h.b16 %v572
    %v967 = vunpack.c.l.b16 %v573
    %v968 = vunpack.c.h.b16 %v573
    %v969 = vunpack.c.l.b16 %v574
    %v970 = vunpack.c.h.b16 %v574
    %v971 = vunpack.c.l.b16 %v575
    %v972 = vunpack.c.h.b16 %v575
    %v973 = vunpack.c.l.b16 %v576
    %v974 = vunpack.c.h.b16 %v576
    %v975 = vunpack.c.l.b16 %v577
    %v976 = vunpack.c.h.b16 %v577
    %v977 = vunpack.c.l.b16 %v578
    %v978 = vunpack.c.h.b16 %v578
    %v979 = vunpack.c.l.b16 %v579
    %v980 = vunpack.c.h.b16 %v579
    %v981 = vunpack.c.l.b16 %v580
    %v982 = vunpack.c.h.b16 %v580
    %v983 = vunpack.c.l.b16 %v581
    %v984 = vunpack.c.h.b16 %v581
    %v985 = vunpack.c.l.b16 %v582
    %v986 = vunpack.c.h.b16 %v582
    %v987 = vunpack.c.l.b16 %v583
    %v988 = vunpack.c.h.b16 %v583
    %v989 = vunpack.c.l.b16 %v584
    %v990 = vunpack.c.h.b16 %v584
    %v991 = vpack.c.b16 %v739, %v735
    %v992 = vpack.c.b16 %v740, %v736
    %v993 = vpack.c.b16 %v741, %v737
    %v994 = vpack.c.b16 %v742, %v738
    %v995 = vpack.c.b16 %v747, %v743
    %v996 = vpack.c.b16 %v748, %v744
    %v997 = vpack.c.b16 %v749, %v745
    %v998 = vpack.c.b16 %v750, %v746
    %v999 = vpack.c.b16 %v755, %v751
    %v1000 = vpack.c.b16 %v756, %v752
    %v1001 = vpack.c.b16 %v757, %v753
    %v1002 = vpack.c.b16 %v758, %v754
    %v1003 = vpack.c.b16 %v763, %v759
    %v1004 = vpack.c.b16 %v764, %v760
    %v1005 = vpack.c.b16 %v765, %v761
    %v1006 = vpack.c.b16 %v766, %v762
    %v1007 = vpack.c.b16 %v771, %v767
    %v1008 = vpack.c.b16 %v772, %v768
    %v1009 = vpack.c.b16 %v773, %v769
    %v1010 = vpack.c.b16 %v774, %v770
    %v1011 = vpack.c.b16 %v779, %v775
    %v1012 = vpack.c.b16 %v780, %v776
    %v1013 = vpack.c.b16 %v781, %v777
    %v1014 = vpack.c.b16 %v782, %v778
    %v1015 = vpack.c.b16 %v787, %v783
    %v1016 = vpack.c.b16 %v788, %v784
    %v1017 = vpack.c.b16 %v789, %v785
    %v1018 = vpack.c.b16 %v790, %v786
    %v1019 = vpack.c.b16 %v795, %v791
    %v1020 = vpack.c.b16 %v796, %v792
    %v1021 = vpack.c.b16 %v797, %v793
    %v1022 = vpack.c.b16 %v798, %v794
    %v1023 = vpack.c.b16 %v803, %v799
    %v1024 = vpack.c.b16 %v804, %v800
    %v1025 = vpack.c.b16 %v805, %v801
    %v1026 = vpack.c.b16 %v806, %v802
    %v1027 = vpack.c.b16 %v811, %v807
    %v1028 = vpack.c.b16 %v812, %v808
    %v1029 = vpack.c.b16 %v813, %v809
    %v1030 = vpack.c.b16 %v814, %v810
    %v1031 = vpack.c.b16 %v819, %v815
    %v1032 = vpack.c.b16 %v820, %v816
    %v1033 = vpack.c.b16 %v821, %v817
    %v1034 = vpack.c.b16 %v822, %v818
    %v1035 = vpack.c.b16 %v827, %v823
    %v1036 = vpack.c.b16 %v828, %v824
    %v1037 = vpack.c.b16 %v829, %v825
    %v1038 = vpack.c.b16 %v830, %v826
    %v1039 = vpack.c.b16 %v835, %v831
    %v1040 = vpack.c.b16 %v836, %v832
    %v1041 = vpack.c.b16 %v837, %v833
    %v1042 = vpack.c.b16 %v838, %v834
    %v1043 = vpack.c.b16 %v843, %v839
    %v1044 = vpack.c.b16 %v844, %v840
    %v1045 = vpack.c.b16 %v845, %v841
    %v1046 = vpack.c.b16 %v846, %v842
    %v1047 = vpack.c.b16 %v851, %v847
    %v1048 = vpack.c.b16 %v852, %v848
    %v1049 = vpack.c.b16 %v853, %v849
    %v1050 = vpack.c.b16 %v854, %v850
    %v1051 = vpack.c.b16 %v859, %v855
    %v1052 = vpack.c.b16 %v860, %v856
    %v1053 = vpack.c.b16 %v861, %v857
    %v1054 = vpack.c.b16 %v862, %v858
    %v1055 = vpack.c.b16 %v867, %v863
    %v1056 = vpack.c.b16 %v868, %v864
    %v1057 = vpack.c.b16 %v869, %v865
    %v1058 = vpack.c.b16 %v870, %v866
    %v1059 = vpack.c.b16 %v875, %v871
    %v1060 = vpack.c.b16 %v876, %v872
    %v1061 = vpack.c.b16 %v877, %v873
    %v1062 = vpack.c.b16 %v878, %v874
    %v1063 = vpack.c.b16 %v883, %v879
    %v1064 = vpack.c.b16 %v884, %v880
    %v1065 = vpack.c.b16 %v885, %v881
    %v1066 = vpack.c.b16 %v886, %v882
    %v1067 = vpack.c.b16 %v891, %v887
    %v1068 = vpack.c.b16 %v892, %v888
    %v1069 = vpack.c.b16 %v893, %v889
    %v1070 = vpack.c.b16 %v894, %v890
    %v1071 = vpack.c.b16 %v899, %v895
    %v1072 = vpack.c.b16 %v900, %v896
    %v1073 = vpack.c.b16 %v901, %v897
    %v1074 = vpack.c.b16 %v902, %v898
    %v1075 = vpack.c.b16 %v907, %v903
    %v1076 = vpack.c.b16 %v908, %v904
    %v1077 = vpack.c.b16 %v909, %v905
    %v1078 = vpack.c.b16 %v910, %v906
    %v1079 = vpack.c.b16 %v915, %v911
    %v1080 = vpack.c.b16 %v916, %v912
    %v1081 = vpack.c.b16 %v917, %v913
    %v1082 = vpack.c.b16 %v918, %v914
    %v1083 = vpack.c.b16 %v923, %v919
    %v1084 = vpack.c.b16 %v924, %v920
    %v1085 = vpack.c.b16 %v925, %v921
    %v1086 = vpack.c.b16 %v926, %v922
    %v1087 = vpack.c.b16 %v931, %v927
    %v1088 = vpack.c.b16 %v932, %v928
    %v1089 = vpack.c.b16 %v933, %v929
    %v1090 = vpack.c.b16 %v934, %v930
    %v1091 = vpack.c.b16 %v939, %v935
    %v1092 = vpack.c.b16 %v940, %v936
    %v1093 = vpack.c.b16 %v941, %v937
    %v1094 = vpack.c.b16 %v942, %v938
    %v1095 = vpack.c.b16 %v947, %v943
    %v1096 = vpack.c.b16 %v948, %v944
    %v1097 = vpack.c.b16 %v949, %v945
    %v1098 = vpack.c.b16 %v950, %v946
    %v1099 = vpack.c.b16 %v955, %v951
    %v1100 = vpack.c.b16 %v956, %v952
    %v1101 = vpack.c.b16 %v957, %v953
    %v1102 = vpack.c.b16 %v958, %v954
    %v1103 = vpack.c.b16 %v963, %v959
    %v1104 = vpack.c.b16 %v964, %v960
    %v1105 = vpack.c.b16 %v965, %v961
    %v1106 = vpack.c.b16 %v966, %v962
    %v1107 = vpack.c.b16 %v971, %v967
    %v1108 = vpack.c.b16 %v972, %v968
    %v1109 = vpack.c.b16 %v973, %v969
    %v1110 = vpack.c.b16 %v974, %v970
    %v1111 = vpack.c.b16 %v979, %v975
    %v1112 = vpack.c.b16 %v980, %v976
    %v1113 = vpack.c.b16 %v981, %v977
    %v1114 = vpack.c.b16 %v982, %v978
    %v1115 = vpack.c.b16 %v987, %v983
    %v1116 = vpack.c.b16 %v988, %v984
    %v1117 = vpack.c.b16 %v989, %v985
    %v1118 = vpack.c.b16 %v990, %v986
    %1247 = vmatprep.subr.bf16.mxu0 %v1020
    %1248 = vmatpush1.bf16.msra.mxu0 %v1019
    %1249 = vmatprep.subr.bf16.mxu0 %v1016
    %1250 = vmatpush1.bf16.msra.mxu0 %v1015
    %1251 = vmatprep.subr.bf16.mxu0 %v1012
    %1252 = vmatpush1.bf16.msra.mxu0 %v1011
    %1253 = vmatprep.subr.bf16.mxu0 %v1008
    %1254 = vmatpush1.bf16.msra.mxu0 %v1007
    %1255 = vmatprep.subr.bf16.mxu0 %v1004
    %1256 = vmatpush1.bf16.msra.mxu0 %v1003
    %1257 = vmatprep.subr.bf16.mxu0 %v1000
    %1258 = vmatpush1.bf16.msra.mxu0 %v999
    %1259 = vmatprep.subr.bf16.mxu0 %v996
    %1260 = vmatpush1.bf16.msra.mxu0 %v995
    %1261 = vmatprep.subr.bf16.mxu0 %v992
    %1262 = vmatpush1.bf16.msra.mxu0 %v991
    %1263 = vmatprep.subr.bf16.mxu0 %v1052
    %1264 = vmatpush2.bf16.msra.mxu0 %v1051
    %1265 = vmatprep.subr.bf16.mxu0 %v1048
    %1266 = vmatpush2.bf16.msra.mxu0 %v1047
    %1267 = vmatprep.subr.bf16.mxu0 %v1044
    %1268 = vmatpush2.bf16.msra.mxu0 %v1043
    %1269 = vmatprep.subr.bf16.mxu0 %v1040
    %1270 = vmatpush2.bf16.msra.mxu0 %v1039
    %1271 = vmatprep.subr.bf16.mxu0 %v1036
    %1272 = vmatpush2.bf16.msra.mxu0 %v1035
    %1273 = vmatprep.subr.bf16.mxu0 %v1032
    %1274 = vmatpush2.bf16.msra.mxu0 %v1031
    %1275 = vmatprep.subr.bf16.mxu0 %v1028
    %1276 = vmatpush2.bf16.msra.mxu0 %v1027
    %1277 = vmatprep.subr.bf16.mxu0 %v1024
    %1278 = vmatpush2.bf16.msra.mxu0 %v1023
    %1279 = vmatprep.mubr.bf16.mxu0 %v438
    %1280 = vmatmul.mubr.bf16.gmra.mxu0 %v437
    %v1281 = vpop.f32.mrf.mxu0
    %v1282 = vadd.f32 %v590, %v1281
    %v1283 = vpop.f32.mrf.mxu0
    %v1284 = vadd.f32 %v594, %v1283
    %v1285 = vpop.f32.mrf.mxu0
    %v1286 = vadd.f32 %v590, %v1285
    %v1287 = vpop.f32.mrf.mxu0
    %v1288 = vadd.f32 %v594, %v1287
    %1289 = vdwg.mxu0
    %1290 = vmatprep.subr.bf16.mxu0 %v1084
    %1291 = vmatpush1.bf16.msra.mxu0 %v1083
    %1292 = vmatprep.subr.bf16.mxu0 %v1080
    %1293 = vmatpush1.bf16.msra.mxu0 %v1079
    %1294 = vmatprep.subr.bf16.mxu0 %v1076
    %1295 = vmatpush1.bf16.msra.mxu0 %v1075
    %1296 = vmatprep.subr.bf16.mxu0 %v1072
    %1297 = vmatpush1.bf16.msra.mxu0 %v1071
    %1298 = vmatprep.subr.bf16.mxu0 %v1068
    %1299 = vmatpush1.bf16.msra.mxu0 %v1067
    %1300 = vmatprep.subr.bf16.mxu0 %v1064
    %1301 = vmatpush1.bf16.msra.mxu0 %v1063
    %1302 = vmatprep.subr.bf16.mxu0 %v1060
    %1303 = vmatpush1.bf16.msra.mxu0 %v1059
    %1304 = vmatprep.subr.bf16.mxu0 %v1056
    %1305 = vmatpush1.bf16.msra.mxu0 %v1055
    %1306 = vmatprep.subr.bf16.mxu0 %v1116
    %1307 = vmatpush2.bf16.msra.mxu0 %v1115
    %1308 = vmatprep.subr.bf16.mxu0 %v1112
    %1309 = vmatpush2.bf16.msra.mxu0 %v1111
    %1310 = vmatprep.subr.bf16.mxu0 %v1108
    %1311 = vmatpush2.bf16.msra.mxu0 %v1107
    %1312 = vmatprep.subr.bf16.mxu0 %v1104
    %1313 = vmatpush2.bf16.msra.mxu0 %v1103
    %1314 = vmatprep.subr.bf16.mxu0 %v1100
    %1315 = vmatpush2.bf16.msra.mxu0 %v1099
    %1316 = vmatprep.subr.bf16.mxu0 %v1096
    %1317 = vmatpush2.bf16.msra.mxu0 %v1095
    %1318 = vmatprep.subr.bf16.mxu0 %v1092
    %1319 = vmatpush2.bf16.msra.mxu0 %v1091
    %1320 = vmatprep.subr.bf16.mxu0 %v1088
    %1321 = vmatpush2.bf16.msra.mxu0 %v1087
    %1322 = vmatprep.mubr.bf16.mxu0 %v440
    %1323 = vmatmul.mubr.bf16.gmra.mxu0 %v439
    %v1324 = vpop.f32.mrf.mxu0
    %v1325 = vadd.f32 %v1282, %v1324
    %v1326 = vpop.f32.mrf.mxu0
    %v1327 = vadd.f32 %v1284, %v1326
    %v1328 = vpop.f32.mrf.mxu0
    %v1329 = vadd.f32 %v1286, %v1328
    %v1330 = vpop.f32.mrf.mxu0
    %v1331 = vadd.f32 %v1288, %v1330
    %1332 = vdwg.mxu0
    %1333 = vmatprep.subr.bf16.mxu0 %v1022
    %1334 = vmatpush1.bf16.msra.mxu0 %v1021
    %1335 = vmatprep.subr.bf16.mxu0 %v1018
    %1336 = vmatpush1.bf16.msra.mxu0 %v1017
    %1337 = vmatprep.subr.bf16.mxu0 %v1014
    %1338 = vmatpush1.bf16.msra.mxu0 %v1013
    %1339 = vmatprep.subr.bf16.mxu0 %v1010
    %1340 = vmatpush1.bf16.msra.mxu0 %v1009
    %1341 = vmatprep.subr.bf16.mxu0 %v1006
    %1342 = vmatpush1.bf16.msra.mxu0 %v1005
    %1343 = vmatprep.subr.bf16.mxu0 %v1002
    %1344 = vmatpush1.bf16.msra.mxu0 %v1001
    %1345 = vmatprep.subr.bf16.mxu0 %v998
    %1346 = vmatpush1.bf16.msra.mxu0 %v997
    %1347 = vmatprep.subr.bf16.mxu0 %v994
    %1348 = vmatpush1.bf16.msra.mxu0 %v993
    %1349 = vmatprep.subr.bf16.mxu0 %v1054
    %1350 = vmatpush2.bf16.msra.mxu0 %v1053
    %1351 = vmatprep.subr.bf16.mxu0 %v1050
    %1352 = vmatpush2.bf16.msra.mxu0 %v1049
    %1353 = vmatprep.subr.bf16.mxu0 %v1046
    %1354 = vmatpush2.bf16.msra.mxu0 %v1045
    %1355 = vmatprep.subr.bf16.mxu0 %v1042
    %1356 = vmatpush2.bf16.msra.mxu0 %v1041
    %1357 = vmatprep.subr.bf16.mxu0 %v1038
    %1358 = vmatpush2.bf16.msra.mxu0 %v1037
    %1359 = vmatprep.subr.bf16.mxu0 %v1034
    %1360 = vmatpush2.bf16.msra.mxu0 %v1033
    %1361 = vmatprep.subr.bf16.mxu0 %v1030
    %1362 = vmatpush2.bf16.msra.mxu0 %v1029
    %1363 = vmatprep.subr.bf16.mxu0 %v1026
    %1364 = vmatpush2.bf16.msra.mxu0 %v1025
    %1365 = vmatprep.mubr.bf16.mxu0 %v438
    %1366 = vmatmul.mubr.bf16.gmra.mxu0 %v437
    %v1367 = vpop.f32.mrf.mxu0
    %v1368 = vadd.f32 %v598, %v1367
    %v1369 = vpop.f32.mrf.mxu0
    %v1370 = vadd.f32 %v602, %v1369
    %v1371 = vpop.f32.mrf.mxu0
    %v1372 = vadd.f32 %v598, %v1371
    %v1373 = vpop.f32.mrf.mxu0
    %v1374 = vadd.f32 %v602, %v1373
    %1375 = vdwg.mxu0
    %1376 = vmatprep.subr.bf16.mxu0 %v1086
    %1377 = vmatpush1.bf16.msra.mxu0 %v1085
    %1378 = vmatprep.subr.bf16.mxu0 %v1082
    %1379 = vmatpush1.bf16.msra.mxu0 %v1081
    %1380 = vmatprep.subr.bf16.mxu0 %v1078
    %1381 = vmatpush1.bf16.msra.mxu0 %v1077
    %1382 = vmatprep.subr.bf16.mxu0 %v1074
    %1383 = vmatpush1.bf16.msra.mxu0 %v1073
    %1384 = vmatprep.subr.bf16.mxu0 %v1070
    %1385 = vmatpush1.bf16.msra.mxu0 %v1069
    %1386 = vmatprep.subr.bf16.mxu0 %v1066
    %1387 = vmatpush1.bf16.msra.mxu0 %v1065
    %1388 = vmatprep.subr.bf16.mxu0 %v1062
    %1389 = vmatpush1.bf16.msra.mxu0 %v1061
    %1390 = vmatprep.subr.bf16.mxu0 %v1058
    %1391 = vmatpush1.bf16.msra.mxu0 %v1057
    %1392 = vmatprep.subr.bf16.mxu0 %v1118
    %1393 = vmatpush2.bf16.msra.mxu0 %v1117
    %1394 = vmatprep.subr.bf16.mxu0 %v1114
    %1395 = vmatpush2.bf16.msra.mxu0 %v1113
    %1396 = vmatprep.subr.bf16.mxu0 %v1110
    %1397 = vmatpush2.bf16.msra.mxu0 %v1109
    %1398 = vmatprep.subr.bf16.mxu0 %v1106
    %1399 = vmatpush2.bf16.msra.mxu0 %v1105
    %1400 = vmatprep.subr.bf16.mxu0 %v1102
    %1401 = vmatpush2.bf16.msra.mxu0 %v1101
    %1402 = vmatprep.subr.bf16.mxu0 %v1098
    %1403 = vmatpush2.bf16.msra.mxu0 %v1097
    %1404 = vmatprep.subr.bf16.mxu0 %v1094
    %1405 = vmatpush2.bf16.msra.mxu0 %v1093
    %1406 = vmatprep.subr.bf16.mxu0 %v1090
    %1407 = vmatpush2.bf16.msra.mxu0 %v1089
    %1408 = vmatprep.mubr.bf16.mxu0 %v440
    %1409 = vmatmul.mubr.bf16.gmra.mxu0 %v439
    %v1410 = vpop.f32.mrf.mxu0
    %v1411 = vadd.f32 %v1368, %v1410
    %v1412 = vpop.f32.mrf.mxu0
    %v1413 = vadd.f32 %v1370, %v1412
    %v1414 = vpop.f32.mrf.mxu0
    %v1415 = vadd.f32 %v1372, %v1414
    %v1416 = vpop.f32.mrf.mxu0
    %v1417 = vadd.f32 %v1374, %v1416
    %1418 = vdwg.mxu0
    %v1419 = vpack.c.bf16 %v1329, %v1325
    %v1420 = vpack.c.bf16 %v1331, %v1327
    %v1421 = vpack.c.bf16 %v1415, %v1411
    %v1422 = vpack.c.bf16 %v1417, %v1413
    %vm1423 = vcmp.gt.bf16.partialorder %v1419, 0
    %vm1424 = vcmp.gt.bf16.partialorder %v1420, 0
    %vm1425 = vcmp.gt.bf16.partialorder %v1421, 0
    %vm1426 = vcmp.gt.bf16.partialorder %v1422, 0
    %v1428 = vmul.bf16 %v1419, 1069105081
    %v1429 = vpow.bf16.pop %v1428
    %v1431 = vmul.bf16 %v1420, 1069105081
    %v1432 = vpow.bf16.pop %v1431
    %v1434 = vmul.bf16 %v1421, 1069105081
    %v1435 = vpow.bf16.pop %v1434
    %v1437 = vmul.bf16 %v1422, 1069105081
    %v1438 = vpow.bf16.pop %v1437
    %v1439 = vsub.bf16 %v1429, 1065369472
    %v1440 = vsub.bf16 %v1432, 1065369472
    %v1441 = vsub.bf16 %v1435, 1065369472
    %v1442 = vsub.bf16 %v1438, 1065369472
    %v1443 = vmul.bf16 %v1439, 1071005654
    %v1444 = vmul.bf16 %v1440, 1071005654
    %v1445 = vmul.bf16 %v1441, 1071005654
    %v1446 = vmul.bf16 %v1442, 1071005654
    %v1447 = vsel %vm1423, %v1419, %v1443
    %v1448 = vsel %vm1424, %v1420, %v1444
    %v1449 = vsel %vm1425, %v1421, %v1445
    %v1450 = vsel %vm1426, %v1422, %v1446
    %s1451 = sshll.u32 %s442, 4
    %1452 = dma.done %s91, %s1451
    %s1453 = scalar_lea.sflag [#allocation8], 4
    // Predicated region
    $region54: #{tpu_custom_call.1} parent=1 // pred_check
      _
    $region55: #{tpu_custom_call.1} parent=1 // pred_check_branch
      %1455 = sbr.rel target = $region57
    $region56: #{tpu_custom_call.1} parent=1 // pred_region
      %1456 = sst [smem:[#allocation17]] [#allocation26]
      %1457 = sst [smem:[#allocation18]] [#allocation25]
    $region57: #{tpu_custom_call.1} parent=1 // pred_fallthru
      _
    %1459 = shalt.err (0)
    %s1461 = sshll.u32 [#allocation6], 4
    %s1462 = int_to_ptr.vmem [resolvable:$true] %s1461
    %1464 = dma.hbm_to_vmem [thread:$0]  %s9, 8192, %s1462, %s1453
    %v1465 = vld [vmem:[#allocation4] sm:$0xff]
    %v1466 = vld [vmem:[#allocation4 + $0x8] sm:$0xff]
    %v1467 = vld [vmem:[#allocation4 + $0x10] sm:$0xff]
    %v1468 = vld [vmem:[#allocation4 + $0x18] sm:$0xff]
    %v1469 = vld [vmem:[#allocation4 + $0x20] sm:$0xff]
    %v1470 = vld [vmem:[#allocation4 + $0x28] sm:$0xff]
    %v1471 = vld [vmem:[#allocation4 + $0x30] sm:$0xff]
    %v1472 = vld [vmem:[#allocation4 + $0x38] sm:$0xff]
    %v1473 = vld [vmem:[#allocation4 + $0x40] sm:$0xff]
    %v1474 = vld [vmem:[#allocation4 + $0x48] sm:$0xff]
    %v1475 = vld [vmem:[#allocation4 + $0x50] sm:$0xff]
    %v1476 = vld [vmem:[#allocation4 + $0x58] sm:$0xff]
    %v1477 = vld [vmem:[#allocation4 + $0x60] sm:$0xff]
    %v1478 = vld [vmem:[#allocation4 + $0x68] sm:$0xff]
    %v1479 = vld [vmem:[#allocation4 + $0x70] sm:$0xff]
    %v1480 = vld [vmem:[#allocation4 + $0x78] sm:$0xff]
    %v1481 = vld [vmem:[#allocation4 + $0x80] sm:$0xff]
    %v1482 = vld [vmem:[#allocation4 + $0x88] sm:$0xff]
    %v1483 = vld [vmem:[#allocation4 + $0x90] sm:$0xff]
    %v1484 = vld [vmem:[#allocation4 + $0x98] sm:$0xff]
    %v1485 = vld [vmem:[#allocation4 + $0xa0] sm:$0xff]
    %v1486 = vld [vmem:[#allocation4 + $0xa8] sm:$0xff]
    %v1487 = vld [vmem:[#allocation4 + $0xb0] sm:$0xff]
    %v1488 = vld [vmem:[#allocation4 + $0xb8] sm:$0xff]
    %v1489 = vld [vmem:[#allocation4 + $0xc0] sm:$0xff]
    %v1490 = vld [vmem:[#allocation4 + $0xc8] sm:$0xff]
    %v1491 = vld [vmem:[#allocation4 + $0xd0] sm:$0xff]
    %v1492 = vld [vmem:[#allocation4 + $0xd8] sm:$0xff]
    %v1493 = vld [vmem:[#allocation4 + $0xe0] sm:$0xff]
    %v1494 = vld [vmem:[#allocation4 + $0xe8] sm:$0xff]
    %v1495 = vld [vmem:[#allocation4 + $0xf0] sm:$0xff]
    %v1496 = vld [vmem:[#allocation4 + $0xf8] sm:$0xff]
    %v1497 = vld [vmem:[#allocation4 + $0x100] sm:$0xff]
    %v1498 = vld [vmem:[#allocation4 + $0x108] sm:$0xff]
    %v1499 = vld [vmem:[#allocation4 + $0x110] sm:$0xff]
    %v1500 = vld [vmem:[#allocation4 + $0x118] sm:$0xff]
    %v1501 = vld [vmem:[#allocation4 + $0x120] sm:$0xff]
    %v1502 = vld [vmem:[#allocation4 + $0x128] sm:$0xff]
    %v1503 = vld [vmem:[#allocation4 + $0x130] sm:$0xff]
    %v1504 = vld [vmem:[#allocation4 + $0x138] sm:$0xff]
    %v1505 = vld [vmem:[#allocation4 + $0x140] sm:$0xff]
    %v1506 = vld [vmem:[#allocation4 + $0x148] sm:$0xff]
    %v1507 = vld [vmem:[#allocation4 + $0x150] sm:$0xff]
    %v1508 = vld [vmem:[#allocation4 + $0x158] sm:$0xff]
    %v1509 = vld [vmem:[#allocation4 + $0x160] sm:$0xff]
    %v1510 = vld [vmem:[#allocation4 + $0x168] sm:$0xff]
    %v1511 = vld [vmem:[#allocation4 + $0x170] sm:$0xff]
    %v1512 = vld [vmem:[#allocation4 + $0x178] sm:$0xff]
    %v1513 = vld [vmem:[#allocation4 + $0x180] sm:$0xff]
    %v1514 = vld [vmem:[#allocation4 + $0x188] sm:$0xff]
    %v1515 = vld [vmem:[#allocation4 + $0x190] sm:$0xff]
    %v1516 = vld [vmem:[#allocation4 + $0x198] sm:$0xff]
    %v1517 = vld [vmem:[#allocation4 + $0x1a0] sm:$0xff]
    %v1518 = vld [vmem:[#allocation4 + $0x1a8] sm:$0xff]
    %v1519 = vld [vmem:[#allocation4 + $0x1b0] sm:$0xff]
    %v1520 = vld [vmem:[#allocation4 + $0x1b8] sm:$0xff]
    %v1521 = vld [vmem:[#allocation4 + $0x1c0] sm:$0xff]
    %v1522 = vld [vmem:[#allocation4 + $0x1c8] sm:$0xff]
    %v1523 = vld [vmem:[#allocation4 + $0x1d0] sm:$0xff]
    %v1524 = vld [vmem:[#allocation4 + $0x1d8] sm:$0xff]
    %v1525 = vld [vmem:[#allocation4 + $0x1e0] sm:$0xff]
    %v1526 = vld [vmem:[#allocation4 + $0x1e8] sm:$0xff]
    %v1527 = vld [vmem:[#allocation4 + $0x1f0] sm:$0xff]
    %v1528 = vld [vmem:[#allocation4 + $0x1f8] sm:$0xff]
    %v1529 = vld [vmem:[#allocation4 + $0x200] sm:$0xff]
    %v1530 = vld [vmem:[#allocation4 + $0x208] sm:$0xff]
    %v1531 = vld [vmem:[#allocation4 + $0x210] sm:$0xff]
    %v1532 = vld [vmem:[#allocation4 + $0x218] sm:$0xff]
    %v1533 = vld [vmem:[#allocation4 + $0x220] sm:$0xff]
    %v1534 = vld [vmem:[#allocation4 + $0x228] sm:$0xff]
    %v1535 = vld [vmem:[#allocation4 + $0x230] sm:$0xff]
    %v1536 = vld [vmem:[#allocation4 + $0x238] sm:$0xff]
    %v1537 = vld [vmem:[#allocation4 + $0x240] sm:$0xff]
    %v1538 = vld [vmem:[#allocation4 + $0x248] sm:$0xff]
    %v1539 = vld [vmem:[#allocation4 + $0x250] sm:$0xff]
    %v1540 = vld [vmem:[#allocation4 + $0x258] sm:$0xff]
    %v1541 = vld [vmem:[#allocation4 + $0x260] sm:$0xff]
    %v1542 = vld [vmem:[#allocation4 + $0x268] sm:$0xff]
    %v1543 = vld [vmem:[#allocation4 + $0x270] sm:$0xff]
    %v1544 = vld [vmem:[#allocation4 + $0x278] sm:$0xff]
    %v1545 = vld [vmem:[#allocation4 + $0x280] sm:$0xff]
    %v1546 = vld [vmem:[#allocation4 + $0x288] sm:$0xff]
    %v1547 = vld [vmem:[#allocation4 + $0x290] sm:$0xff]
    %v1548 = vld [vmem:[#allocation4 + $0x298] sm:$0xff]
    %v1549 = vld [vmem:[#allocation4 + $0x2a0] sm:$0xff]
    %v1550 = vld [vmem:[#allocation4 + $0x2a8] sm:$0xff]
    %v1551 = vld [vmem:[#allocation4 + $0x2b0] sm:$0xff]
    %v1552 = vld [vmem:[#allocation4 + $0x2b8] sm:$0xff]
    %v1553 = vld [vmem:[#allocation4 + $0x2c0] sm:$0xff]
    %v1554 = vld [vmem:[#allocation4 + $0x2c8] sm:$0xff]
    %v1555 = vld [vmem:[#allocation4 + $0x2d0] sm:$0xff]
    %v1556 = vld [vmem:[#allocation4 + $0x2d8] sm:$0xff]
    %v1557 = vld [vmem:[#allocation4 + $0x2e0] sm:$0xff]
    %v1558 = vld [vmem:[#allocation4 + $0x2e8] sm:$0xff]
    %v1559 = vld [vmem:[#allocation4 + $0x2f0] sm:$0xff]
    %v1560 = vld [vmem:[#allocation4 + $0x2f8] sm:$0xff]
    %v1561 = vld [vmem:[#allocation4 + $0x300] sm:$0xff]
    %v1562 = vld [vmem:[#allocation4 + $0x308] sm:$0xff]
    %v1563 = vld [vmem:[#allocation4 + $0x310] sm:$0xff]
    %v1564 = vld [vmem:[#allocation4 + $0x318] sm:$0xff]
    %v1565 = vld [vmem:[#allocation4 + $0x320] sm:$0xff]
    %v1566 = vld [vmem:[#allocation4 + $0x328] sm:$0xff]
    %v1567 = vld [vmem:[#allocation4 + $0x330] sm:$0xff]
    %v1568 = vld [vmem:[#allocation4 + $0x338] sm:$0xff]
    %v1569 = vld [vmem:[#allocation4 + $0x340] sm:$0xff]
    %v1570 = vld [vmem:[#allocation4 + $0x348] sm:$0xff]
    %v1571 = vld [vmem:[#allocation4 + $0x350] sm:$0xff]
    %v1572 = vld [vmem:[#allocation4 + $0x358] sm:$0xff]
    %v1573 = vld [vmem:[#allocation4 + $0x360] sm:$0xff]
    %v1574 = vld [vmem:[#allocation4 + $0x368] sm:$0xff]
    %v1575 = vld [vmem:[#allocation4 + $0x370] sm:$0xff]
    %v1576 = vld [vmem:[#allocation4 + $0x378] sm:$0xff]
    %v1577 = vld [vmem:[#allocation4 + $0x380] sm:$0xff]
    %v1578 = vld [vmem:[#allocation4 + $0x388] sm:$0xff]
    %v1579 = vld [vmem:[#allocation4 + $0x390] sm:$0xff]
    %v1580 = vld [vmem:[#allocation4 + $0x398] sm:$0xff]
    %v1581 = vld [vmem:[#allocation4 + $0x3a0] sm:$0xff]
    %v1582 = vld [vmem:[#allocation4 + $0x3a8] sm:$0xff]
    %v1583 = vld [vmem:[#allocation4 + $0x3b0] sm:$0xff]
    %v1584 = vld [vmem:[#allocation4 + $0x3b8] sm:$0xff]
    %v1585 = vld [vmem:[#allocation4 + $0x3c0] sm:$0xff]
    %v1586 = vld [vmem:[#allocation4 + $0x3c8] sm:$0xff]
    %v1587 = vld [vmem:[#allocation4 + $0x3d0] sm:$0xff]
    %v1588 = vld [vmem:[#allocation4 + $0x3d8] sm:$0xff]
    %v1589 = vld [vmem:[#allocation4 + $0x3e0] sm:$0xff]
    %v1590 = vld [vmem:[#allocation4 + $0x3e8] sm:$0xff]
    %v1591 = vld [vmem:[#allocation4 + $0x3f0] sm:$0xff]
    %v1592 = vld [vmem:[#allocation4 + $0x3f8] sm:$0xff]
    %v1593 = vld [vmem:[%s6] sm:$0xf]
    %v1595 = vlaneseq
    %v1596 = vshrl.u32 %v1595, 7
    %v1597 = vsub.s32 0, %v1596
    %v1598 = vrot.slane %v1593, %v1597
    %v1599 = vlaneseq
    %v1600 = vshrl.u32 %v1599, 7
    %v1601 = vsub.s32 1, %v1600
    %v1602 = vrot.slane %v1593, %v1601
    %v1603 = vlaneseq
    %v1604 = vshrl.u32 %v1603, 7
    %v1605 = vsub.s32 2, %v1604
    %v1606 = vrot.slane %v1593, %v1605
    %v1607 = vlaneseq
    %v1608 = vshrl.u32 %v1607, 7
    %v1609 = vsub.s32 3, %v1608
    %v1610 = vrot.slane %v1593, %v1609
    %v1743 = vunpack.c.l.b16 %v1465
    %v1744 = vunpack.c.h.b16 %v1465
    %v1745 = vunpack.c.l.b16 %v1466
    %v1746 = vunpack.c.h.b16 %v1466
    %v1747 = vunpack.c.l.b16 %v1467
    %v1748 = vunpack.c.h.b16 %v1467
    %v1749 = vunpack.c.l.b16 %v1468
    %v1750 = vunpack.c.h.b16 %v1468
    %v1751 = vunpack.c.l.b16 %v1469
    %v1752 = vunpack.c.h.b16 %v1469
    %v1753 = vunpack.c.l.b16 %v1470
    %v1754 = vunpack.c.h.b16 %v1470
    %v1755 = vunpack.c.l.b16 %v1471
    %v1756 = vunpack.c.h.b16 %v1471
    %v1757 = vunpack.c.l.b16 %v1472
    %v1758 = vunpack.c.h.b16 %v1472
    %v1759 = vunpack.c.l.b16 %v1473
    %v1760 = vunpack.c.h.b16 %v1473
    %v1761 = vunpack.c.l.b16 %v1474
    %v1762 = vunpack.c.h.b16 %v1474
    %v1763 = vunpack.c.l.b16 %v1475
    %v1764 = vunpack.c.h.b16 %v1475
    %v1765 = vunpack.c.l.b16 %v1476
    %v1766 = vunpack.c.h.b16 %v1476
    %v1767 = vunpack.c.l.b16 %v1477
    %v1768 = vunpack.c.h.b16 %v1477
    %v1769 = vunpack.c.l.b16 %v1478
    %v1770 = vunpack.c.h.b16 %v1478
    %v1771 = vunpack.c.l.b16 %v1479
    %v1772 = vunpack.c.h.b16 %v1479
    %v1773 = vunpack.c.l.b16 %v1480
    %v1774 = vunpack.c.h.b16 %v1480
    %v1775 = vunpack.c.l.b16 %v1481
    %v1776 = vunpack.c.h.b16 %v1481
    %v1777 = vunpack.c.l.b16 %v1482
    %v1778 = vunpack.c.h.b16 %v1482
    %v1779 = vunpack.c.l.b16 %v1483
    %v1780 = vunpack.c.h.b16 %v1483
    %v1781 = vunpack.c.l.b16 %v1484
    %v1782 = vunpack.c.h.b16 %v1484
    %v1783 = vunpack.c.l.b16 %v1485
    %v1784 = vunpack.c.h.b16 %v1485
    %v1785 = vunpack.c.l.b16 %v1486
    %v1786 = vunpack.c.h.b16 %v1486
    %v1787 = vunpack.c.l.b16 %v1487
    %v1788 = vunpack.c.h.b16 %v1487
    %v1789 = vunpack.c.l.b16 %v1488
    %v1790 = vunpack.c.h.b16 %v1488
    %v1791 = vunpack.c.l.b16 %v1489
    %v1792 = vunpack.c.h.b16 %v1489
    %v1793 = vunpack.c.l.b16 %v1490
    %v1794 = vunpack.c.h.b16 %v1490
    %v1795 = vunpack.c.l.b16 %v1491
    %v1796 = vunpack.c.h.b16 %v1491
    %v1797 = vunpack.c.l.b16 %v1492
    %v1798 = vunpack.c.h.b16 %v1492
    %v1799 = vunpack.c.l.b16 %v1493
    %v1800 = vunpack.c.h.b16 %v1493
    %v1801 = vunpack.c.l.b16 %v1494
    %v1802 = vunpack.c.h.b16 %v1494
    %v1803 = vunpack.c.l.b16 %v1495
    %v1804 = vunpack.c.h.b16 %v1495
    %v1805 = vunpack.c.l.b16 %v1496
    %v1806 = vunpack.c.h.b16 %v1496
    %v1807 = vunpack.c.l.b16 %v1497
    %v1808 = vunpack.c.h.b16 %v1497
    %v1809 = vunpack.c.l.b16 %v1498
    %v1810 = vunpack.c.h.b16 %v1498
    %v1811 = vunpack.c.l.b16 %v1499
    %v1812 = vunpack.c.h.b16 %v1499
    %v1813 = vunpack.c.l.b16 %v1500
    %v1814 = vunpack.c.h.b16 %v1500
    %v1815 = vunpack.c.l.b16 %v1501
    %v1816 = vunpack.c.h.b16 %v1501
    %v1817 = vunpack.c.l.b16 %v1502
    %v1818 = vunpack.c.h.b16 %v1502
    %v1819 = vunpack.c.l.b16 %v1503
    %v1820 = vunpack.c.h.b16 %v1503
    %v1821 = vunpack.c.l.b16 %v1504
    %v1822 = vunpack.c.h.b16 %v1504
    %v1823 = vunpack.c.l.b16 %v1505
    %v1824 = vunpack.c.h.b16 %v1505
    %v1825 = vunpack.c.l.b16 %v1506
    %v1826 = vunpack.c.h.b16 %v1506
    %v1827 = vunpack.c.l.b16 %v1507
    %v1828 = vunpack.c.h.b16 %v1507
    %v1829 = vunpack.c.l.b16 %v1508
    %v1830 = vunpack.c.h.b16 %v1508
    %v1831 = vunpack.c.l.b16 %v1509
    %v1832 = vunpack.c.h.b16 %v1509
    %v1833 = vunpack.c.l.b16 %v1510
    %v1834 = vunpack.c.h.b16 %v1510
    %v1835 = vunpack.c.l.b16 %v1511
    %v1836 = vunpack.c.h.b16 %v1511
    %v1837 = vunpack.c.l.b16 %v1512
    %v1838 = vunpack.c.h.b16 %v1512
    %v1839 = vunpack.c.l.b16 %v1513
    %v1840 = vunpack.c.h.b16 %v1513
    %v1841 = vunpack.c.l.b16 %v1514
    %v1842 = vunpack.c.h.b16 %v1514
    %v1843 = vunpack.c.l.b16 %v1515
    %v1844 = vunpack.c.h.b16 %v1515
    %v1845 = vunpack.c.l.b16 %v1516
    %v1846 = vunpack.c.h.b16 %v1516
    %v1847 = vunpack.c.l.b16 %v1517
    %v1848 = vunpack.c.h.b16 %v1517
    %v1849 = vunpack.c.l.b16 %v1518
    %v1850 = vunpack.c.h.b16 %v1518
    %v1851 = vunpack.c.l.b16 %v1519
    %v1852 = vunpack.c.h.b16 %v1519
    %v1853 = vunpack.c.l.b16 %v1520
    %v1854 = vunpack.c.h.b16 %v1520
    %v1855 = vunpack.c.l.b16 %v1521
    %v1856 = vunpack.c.h.b16 %v1521
    %v1857 = vunpack.c.l.b16 %v1522
    %v1858 = vunpack.c.h.b16 %v1522
    %v1859 = vunpack.c.l.b16 %v1523
    %v1860 = vunpack.c.h.b16 %v1523
    %v1861 = vunpack.c.l.b16 %v1524
    %v1862 = vunpack.c.h.b16 %v1524
    %v1863 = vunpack.c.l.b16 %v1525
    %v1864 = vunpack.c.h.b16 %v1525
    %v1865 = vunpack.c.l.b16 %v1526
    %v1866 = vunpack.c.h.b16 %v1526
    %v1867 = vunpack.c.l.b16 %v1527
    %v1868 = vunpack.c.h.b16 %v1527
    %v1869 = vunpack.c.l.b16 %v1528
    %v1870 = vunpack.c.h.b16 %v1528
    %v1871 = vunpack.c.l.b16 %v1529
    %v1872 = vunpack.c.h.b16 %v1529
    %v1873 = vunpack.c.l.b16 %v1530
    %v1874 = vunpack.c.h.b16 %v1530
    %v1875 = vunpack.c.l.b16 %v1531
    %v1876 = vunpack.c.h.b16 %v1531
    %v1877 = vunpack.c.l.b16 %v1532
    %v1878 = vunpack.c.h.b16 %v1532
    %v1879 = vunpack.c.l.b16 %v1533
    %v1880 = vunpack.c.h.b16 %v1533
    %v1881 = vunpack.c.l.b16 %v1534
    %v1882 = vunpack.c.h.b16 %v1534
    %v1883 = vunpack.c.l.b16 %v1535
    %v1884 = vunpack.c.h.b16 %v1535
    %v1885 = vunpack.c.l.b16 %v1536
    %v1886 = vunpack.c.h.b16 %v1536
    %v1887 = vunpack.c.l.b16 %v1537
    %v1888 = vunpack.c.h.b16 %v1537
    %v1889 = vunpack.c.l.b16 %v1538
    %v1890 = vunpack.c.h.b16 %v1538
    %v1891 = vunpack.c.l.b16 %v1539
    %v1892 = vunpack.c.h.b16 %v1539
    %v1893 = vunpack.c.l.b16 %v1540
    %v1894 = vunpack.c.h.b16 %v1540
    %v1895 = vunpack.c.l.b16 %v1541
    %v1896 = vunpack.c.h.b16 %v1541
    %v1897 = vunpack.c.l.b16 %v1542
    %v1898 = vunpack.c.h.b16 %v1542
    %v1899 = vunpack.c.l.b16 %v1543
    %v1900 = vunpack.c.h.b16 %v1543
    %v1901 = vunpack.c.l.b16 %v1544
    %v1902 = vunpack.c.h.b16 %v1544
    %v1903 = vunpack.c.l.b16 %v1545
    %v1904 = vunpack.c.h.b16 %v1545
    %v1905 = vunpack.c.l.b16 %v1546
    %v1906 = vunpack.c.h.b16 %v1546
    %v1907 = vunpack.c.l.b16 %v1547
    %v1908 = vunpack.c.h.b16 %v1547
    %v1909 = vunpack.c.l.b16 %v1548
    %v1910 = vunpack.c.h.b16 %v1548
    %v1911 = vunpack.c.l.b16 %v1549
    %v1912 = vunpack.c.h.b16 %v1549
    %v1913 = vunpack.c.l.b16 %v1550
    %v1914 = vunpack.c.h.b16 %v1550
    %v1915 = vunpack.c.l.b16 %v1551
    %v1916 = vunpack.c.h.b16 %v1551
    %v1917 = vunpack.c.l.b16 %v1552
    %v1918 = vunpack.c.h.b16 %v1552
    %v1919 = vunpack.c.l.b16 %v1553
    %v1920 = vunpack.c.h.b16 %v1553
    %v1921 = vunpack.c.l.b16 %v1554
    %v1922 = vunpack.c.h.b16 %v1554
    %v1923 = vunpack.c.l.b16 %v1555
    %v1924 = vunpack.c.h.b16 %v1555
    %v1925 = vunpack.c.l.b16 %v1556
    %v1926 = vunpack.c.h.b16 %v1556
    %v1927 = vunpack.c.l.b16 %v1557
    %v1928 = vunpack.c.h.b16 %v1557
    %v1929 = vunpack.c.l.b16 %v1558
    %v1930 = vunpack.c.h.b16 %v1558
    %v1931 = vunpack.c.l.b16 %v1559
    %v1932 = vunpack.c.h.b16 %v1559
    %v1933 = vunpack.c.l.b16 %v1560
    %v1934 = vunpack.c.h.b16 %v1560
    %v1935 = vunpack.c.l.b16 %v1561
    %v1936 = vunpack.c.h.b16 %v1561
    %v1937 = vunpack.c.l.b16 %v1562
    %v1938 = vunpack.c.h.b16 %v1562
    %v1939 = vunpack.c.l.b16 %v1563
    %v1940 = vunpack.c.h.b16 %v1563
    %v1941 = vunpack.c.l.b16 %v1564
    %v1942 = vunpack.c.h.b16 %v1564
    %v1943 = vunpack.c.l.b16 %v1565
    %v1944 = vunpack.c.h.b16 %v1565
    %v1945 = vunpack.c.l.b16 %v1566
    %v1946 = vunpack.c.h.b16 %v1566
    %v1947 = vunpack.c.l.b16 %v1567
    %v1948 = vunpack.c.h.b16 %v1567
    %v1949 = vunpack.c.l.b16 %v1568
    %v1950 = vunpack.c.h.b16 %v1568
    %v1951 = vunpack.c.l.b16 %v1569
    %v1952 = vunpack.c.h.b16 %v1569
    %v1953 = vunpack.c.l.b16 %v1570
    %v1954 = vunpack.c.h.b16 %v1570
    %v1955 = vunpack.c.l.b16 %v1571
    %v1956 = vunpack.c.h.b16 %v1571
    %v1957 = vunpack.c.l.b16 %v1572
    %v1958 = vunpack.c.h.b16 %v1572
    %v1959 = vunpack.c.l.b16 %v1573
    %v1960 = vunpack.c.h.b16 %v1573
    %v1961 = vunpack.c.l.b16 %v1574
    %v1962 = vunpack.c.h.b16 %v1574
    %v1963 = vunpack.c.l.b16 %v1575
    %v1964 = vunpack.c.h.b16 %v1575
    %v1965 = vunpack.c.l.b16 %v1576
    %v1966 = vunpack.c.h.b16 %v1576
    %v1967 = vunpack.c.l.b16 %v1577
    %v1968 = vunpack.c.h.b16 %v1577
    %v1969 = vunpack.c.l.b16 %v1578
    %v1970 = vunpack.c.h.b16 %v1578
    %v1971 = vunpack.c.l.b16 %v1579
    %v1972 = vunpack.c.h.b16 %v1579
    %v1973 = vunpack.c.l.b16 %v1580
    %v1974 = vunpack.c.h.b16 %v1580
    %v1975 = vunpack.c.l.b16 %v1581
    %v1976 = vunpack.c.h.b16 %v1581
    %v1977 = vunpack.c.l.b16 %v1582
    %v1978 = vunpack.c.h.b16 %v1582
    %v1979 = vunpack.c.l.b16 %v1583
    %v1980 = vunpack.c.h.b16 %v1583
    %v1981 = vunpack.c.l.b16 %v1584
    %v1982 = vunpack.c.h.b16 %v1584
    %v1983 = vunpack.c.l.b16 %v1585
    %v1984 = vunpack.c.h.b16 %v1585
    %v1985 = vunpack.c.l.b16 %v1586
    %v1986 = vunpack.c.h.b16 %v1586
    %v1987 = vunpack.c.l.b16 %v1587
    %v1988 = vunpack.c.h.b16 %v1587
    %v1989 = vunpack.c.l.b16 %v1588
    %v1990 = vunpack.c.h.b16 %v1588
    %v1991 = vunpack.c.l.b16 %v1589
    %v1992 = vunpack.c.h.b16 %v1589
    %v1993 = vunpack.c.l.b16 %v1590
    %v1994 = vunpack.c.h.b16 %v1590
    %v1995 = vunpack.c.l.b16 %v1591
    %v1996 = vunpack.c.h.b16 %v1591
    %v1997 = vunpack.c.l.b16 %v1592
    %v1998 = vunpack.c.h.b16 %v1592
    %v1999 = vpack.c.b16 %v1747, %v1743
    %v2000 = vpack.c.b16 %v1748, %v1744
    %v2001 = vpack.c.b16 %v1749, %v1745
    %v2002 = vpack.c.b16 %v1750, %v1746
    %v2003 = vpack.c.b16 %v1755, %v1751
    %v2004 = vpack.c.b16 %v1756, %v1752
    %v2005 = vpack.c.b16 %v1757, %v1753
    %v2006 = vpack.c.b16 %v1758, %v1754
    %v2007 = vpack.c.b16 %v1763, %v1759
    %v2008 = vpack.c.b16 %v1764, %v1760
    %v2009 = vpack.c.b16 %v1765, %v1761
    %v2010 = vpack.c.b16 %v1766, %v1762
    %v2011 = vpack.c.b16 %v1771, %v1767
    %v2012 = vpack.c.b16 %v1772, %v1768
    %v2013 = vpack.c.b16 %v1773, %v1769
    %v2014 = vpack.c.b16 %v1774, %v1770
    %v2015 = vpack.c.b16 %v1779, %v1775
    %v2016 = vpack.c.b16 %v1780, %v1776
    %v2017 = vpack.c.b16 %v1781, %v1777
    %v2018 = vpack.c.b16 %v1782, %v1778
    %v2019 = vpack.c.b16 %v1787, %v1783
    %v2020 = vpack.c.b16 %v1788, %v1784
    %v2021 = vpack.c.b16 %v1789, %v1785
    %v2022 = vpack.c.b16 %v1790, %v1786
    %v2023 = vpack.c.b16 %v1795, %v1791
    %v2024 = vpack.c.b16 %v1796, %v1792
    %v2025 = vpack.c.b16 %v1797, %v1793
    %v2026 = vpack.c.b16 %v1798, %v1794
    %v2027 = vpack.c.b16 %v1803, %v1799
    %v2028 = vpack.c.b16 %v1804, %v1800
    %v2029 = vpack.c.b16 %v1805, %v1801
    %v2030 = vpack.c.b16 %v1806, %v1802
    %v2031 = vpack.c.b16 %v1811, %v1807
    %v2032 = vpack.c.b16 %v1812, %v1808
    %v2033 = vpack.c.b16 %v1813, %v1809
    %v2034 = vpack.c.b16 %v1814, %v1810
    %v2035 = vpack.c.b16 %v1819, %v1815
    %v2036 = vpack.c.b16 %v1820, %v1816
    %v2037 = vpack.c.b16 %v1821, %v1817
    %v2038 = vpack.c.b16 %v1822, %v1818
    %v2039 = vpack.c.b16 %v1827, %v1823
    %v2040 = vpack.c.b16 %v1828, %v1824
    %v2041 = vpack.c.b16 %v1829, %v1825
    %v2042 = vpack.c.b16 %v1830, %v1826
    %v2043 = vpack.c.b16 %v1835, %v1831
    %v2044 = vpack.c.b16 %v1836, %v1832
    %v2045 = vpack.c.b16 %v1837, %v1833
    %v2046 = vpack.c.b16 %v1838, %v1834
    %v2047 = vpack.c.b16 %v1843, %v1839
    %v2048 = vpack.c.b16 %v1844, %v1840
    %v2049 = vpack.c.b16 %v1845, %v1841
    %v2050 = vpack.c.b16 %v1846, %v1842
    %v2051 = vpack.c.b16 %v1851, %v1847
    %v2052 = vpack.c.b16 %v1852, %v1848
    %v2053 = vpack.c.b16 %v1853, %v1849
    %v2054 = vpack.c.b16 %v1854, %v1850
    %v2055 = vpack.c.b16 %v1859, %v1855
    %v2056 = vpack.c.b16 %v1860, %v1856
    %v2057 = vpack.c.b16 %v1861, %v1857
    %v2058 = vpack.c.b16 %v1862, %v1858
    %v2059 = vpack.c.b16 %v1867, %v1863
    %v2060 = vpack.c.b16 %v1868, %v1864
    %v2061 = vpack.c.b16 %v1869, %v1865
    %v2062 = vpack.c.b16 %v1870, %v1866
    %v2063 = vpack.c.b16 %v1875, %v1871
    %v2064 = vpack.c.b16 %v1876, %v1872
    %v2065 = vpack.c.b16 %v1877, %v1873
    %v2066 = vpack.c.b16 %v1878, %v1874
    %v2067 = vpack.c.b16 %v1883, %v1879
    %v2068 = vpack.c.b16 %v1884, %v1880
    %v2069 = vpack.c.b16 %v1885, %v1881
    %v2070 = vpack.c.b16 %v1886, %v1882
    %v2071 = vpack.c.b16 %v1891, %v1887
    %v2072 = vpack.c.b16 %v1892, %v1888
    %v2073 = vpack.c.b16 %v1893, %v1889
    %v2074 = vpack.c.b16 %v1894, %v1890
    %v2075 = vpack.c.b16 %v1899, %v1895
    %v2076 = vpack.c.b16 %v1900, %v1896
    %v2077 = vpack.c.b16 %v1901, %v1897
    %v2078 = vpack.c.b16 %v1902, %v1898
    %v2079 = vpack.c.b16 %v1907, %v1903
    %v2080 = vpack.c.b16 %v1908, %v1904
    %v2081 = vpack.c.b16 %v1909, %v1905
    %v2082 = vpack.c.b16 %v1910, %v1906
    %v2083 = vpack.c.b16 %v1915, %v1911
    %v2084 = vpack.c.b16 %v1916, %v1912
    %v2085 = vpack.c.b16 %v1917, %v1913
    %v2086 = vpack.c.b16 %v1918, %v1914
    %v2087 = vpack.c.b16 %v1923, %v1919
    %v2088 = vpack.c.b16 %v1924, %v1920
    %v2089 = vpack.c.b16 %v1925, %v1921
    %v2090 = vpack.c.b16 %v1926, %v1922
    %v2091 = vpack.c.b16 %v1931, %v1927
    %v2092 = vpack.c.b16 %v1932, %v1928
    %v2093 = vpack.c.b16 %v1933, %v1929
    %v2094 = vpack.c.b16 %v1934, %v1930
    %v2095 = vpack.c.b16 %v1939, %v1935
    %v2096 = vpack.c.b16 %v1940, %v1936
    %v2097 = vpack.c.b16 %v1941, %v1937
    %v2098 = vpack.c.b16 %v1942, %v1938
    %v2099 = vpack.c.b16 %v1947, %v1943
    %v2100 = vpack.c.b16 %v1948, %v1944
    %v2101 = vpack.c.b16 %v1949, %v1945
    %v2102 = vpack.c.b16 %v1950, %v1946
    %v2103 = vpack.c.b16 %v1955, %v1951
    %v2104 = vpack.c.b16 %v1956, %v1952
    %v2105 = vpack.c.b16 %v1957, %v1953
    %v2106 = vpack.c.b16 %v1958, %v1954
    %v2107 = vpack.c.b16 %v1963, %v1959
    %v2108 = vpack.c.b16 %v1964, %v1960
    %v2109 = vpack.c.b16 %v1965, %v1961
    %v2110 = vpack.c.b16 %v1966, %v1962
    %v2111 = vpack.c.b16 %v1971, %v1967
    %v2112 = vpack.c.b16 %v1972, %v1968
    %v2113 = vpack.c.b16 %v1973, %v1969
    %v2114 = vpack.c.b16 %v1974, %v1970
    %v2115 = vpack.c.b16 %v1979, %v1975
    %v2116 = vpack.c.b16 %v1980, %v1976
    %v2117 = vpack.c.b16 %v1981, %v1977
    %v2118 = vpack.c.b16 %v1982, %v1978
    %v2119 = vpack.c.b16 %v1987, %v1983
    %v2120 = vpack.c.b16 %v1988, %v1984
    %v2121 = vpack.c.b16 %v1989, %v1985
    %v2122 = vpack.c.b16 %v1990, %v1986
    %v2123 = vpack.c.b16 %v1995, %v1991
    %v2124 = vpack.c.b16 %v1996, %v1992
    %v2125 = vpack.c.b16 %v1997, %v1993
    %v2126 = vpack.c.b16 %v1998, %v1994
    %2255 = vmatprep.subr.bf16.mxu0 %v2028
    %2256 = vmatpush1.bf16.msra.mxu0 %v2027
    %2257 = vmatprep.subr.bf16.mxu0 %v2024
    %2258 = vmatpush1.bf16.msra.mxu0 %v2023
    %2259 = vmatprep.subr.bf16.mxu0 %v2020
    %2260 = vmatpush1.bf16.msra.mxu0 %v2019
    %2261 = vmatprep.subr.bf16.mxu0 %v2016
    %2262 = vmatpush1.bf16.msra.mxu0 %v2015
    %2263 = vmatprep.subr.bf16.mxu0 %v2012
    %2264 = vmatpush1.bf16.msra.mxu0 %v2011
    %2265 = vmatprep.subr.bf16.mxu0 %v2008
    %2266 = vmatpush1.bf16.msra.mxu0 %v2007
    %2267 = vmatprep.subr.bf16.mxu0 %v2004
    %2268 = vmatpush1.bf16.msra.mxu0 %v2003
    %2269 = vmatprep.subr.bf16.mxu0 %v2000
    %2270 = vmatpush1.bf16.msra.mxu0 %v1999
    %2271 = vmatprep.subr.bf16.mxu0 %v2060
    %2272 = vmatpush2.bf16.msra.mxu0 %v2059
    %2273 = vmatprep.subr.bf16.mxu0 %v2056
    %2274 = vmatpush2.bf16.msra.mxu0 %v2055
    %2275 = vmatprep.subr.bf16.mxu0 %v2052
    %2276 = vmatpush2.bf16.msra.mxu0 %v2051
    %2277 = vmatprep.subr.bf16.mxu0 %v2048
    %2278 = vmatpush2.bf16.msra.mxu0 %v2047
    %2279 = vmatprep.subr.bf16.mxu0 %v2044
    %2280 = vmatpush2.bf16.msra.mxu0 %v2043
    %2281 = vmatprep.subr.bf16.mxu0 %v2040
    %2282 = vmatpush2.bf16.msra.mxu0 %v2039
    %2283 = vmatprep.subr.bf16.mxu0 %v2036
    %2284 = vmatpush2.bf16.msra.mxu0 %v2035
    %2285 = vmatprep.subr.bf16.mxu0 %v2032
    %2286 = vmatpush2.bf16.msra.mxu0 %v2031
    %2287 = vmatprep.mubr.bf16.mxu0 %v1448
    %2288 = vmatmul.mubr.bf16.gmra.mxu0 %v1447
    %v2289 = vpop.f32.mrf.mxu0
    %v2290 = vadd.f32 %v1598, %v2289
    %v2291 = vpop.f32.mrf.mxu0
    %v2292 = vadd.f32 %v1602, %v2291
    %v2293 = vpop.f32.mrf.mxu0
    %v2294 = vadd.f32 %v1598, %v2293
    %v2295 = vpop.f32.mrf.mxu0
    %v2296 = vadd.f32 %v1602, %v2295
    %2297 = vdwg.mxu0
    %2298 = vmatprep.subr.bf16.mxu0 %v2092
    %2299 = vmatpush1.bf16.msra.mxu0 %v2091
    %2300 = vmatprep.subr.bf16.mxu0 %v2088
    %2301 = vmatpush1.bf16.msra.mxu0 %v2087
    %2302 = vmatprep.subr.bf16.mxu0 %v2084
    %2303 = vmatpush1.bf16.msra.mxu0 %v2083
    %2304 = vmatprep.subr.bf16.mxu0 %v2080
    %2305 = vmatpush1.bf16.msra.mxu0 %v2079
    %2306 = vmatprep.subr.bf16.mxu0 %v2076
    %2307 = vmatpush1.bf16.msra.mxu0 %v2075
    %2308 = vmatprep.subr.bf16.mxu0 %v2072
    %2309 = vmatpush1.bf16.msra.mxu0 %v2071
    %2310 = vmatprep.subr.bf16.mxu0 %v2068
    %2311 = vmatpush1.bf16.msra.mxu0 %v2067
    %2312 = vmatprep.subr.bf16.mxu0 %v2064
    %2313 = vmatpush1.bf16.msra.mxu0 %v2063
    %2314 = vmatprep.subr.bf16.mxu0 %v2124
    %2315 = vmatpush2.bf16.msra.mxu0 %v2123
    %2316 = vmatprep.subr.bf16.mxu0 %v2120
    %2317 = vmatpush2.bf16.msra.mxu0 %v2119
    %2318 = vmatprep.subr.bf16.mxu0 %v2116
    %2319 = vmatpush2.bf16.msra.mxu0 %v2115
    %2320 = vmatprep.subr.bf16.mxu0 %v2112
    %2321 = vmatpush2.bf16.msra.mxu0 %v2111
    %2322 = vmatprep.subr.bf16.mxu0 %v2108
    %2323 = vmatpush2.bf16.msra.mxu0 %v2107
    %2324 = vmatprep.subr.bf16.mxu0 %v2104
    %2325 = vmatpush2.bf16.msra.mxu0 %v2103
    %2326 = vmatprep.subr.bf16.mxu0 %v2100
    %2327 = vmatpush2.bf16.msra.mxu0 %v2099
    %2328 = vmatprep.subr.bf16.mxu0 %v2096
    %2329 = vmatpush2.bf16.msra.mxu0 %v2095
    %2330 = vmatprep.mubr.bf16.mxu0 %v1450
    %2331 = vmatmul.mubr.bf16.gmra.mxu0 %v1449
    %v2332 = vpop.f32.mrf.mxu0
    %v2333 = vadd.f32 %v2290, %v2332
    %v2334 = vpop.f32.mrf.mxu0
    %v2335 = vadd.f32 %v2292, %v2334
    %v2336 = vpop.f32.mrf.mxu0
    %v2337 = vadd.f32 %v2294, %v2336
    %v2338 = vpop.f32.mrf.mxu0
    %v2339 = vadd.f32 %v2296, %v2338
    %2340 = vdwg.mxu0
    %2341 = vmatprep.subr.bf16.mxu0 %v2030
    %2342 = vmatpush1.bf16.msra.mxu0 %v2029
    %2343 = vmatprep.subr.bf16.mxu0 %v2026
    %2344 = vmatpush1.bf16.msra.mxu0 %v2025
    %2345 = vmatprep.subr.bf16.mxu0 %v2022
    %2346 = vmatpush1.bf16.msra.mxu0 %v2021
    %2347 = vmatprep.subr.bf16.mxu0 %v2018
    %2348 = vmatpush1.bf16.msra.mxu0 %v2017
    %2349 = vmatprep.subr.bf16.mxu0 %v2014
    %2350 = vmatpush1.bf16.msra.mxu0 %v2013
    %2351 = vmatprep.subr.bf16.mxu0 %v2010
    %2352 = vmatpush1.bf16.msra.mxu0 %v2009
    %2353 = vmatprep.subr.bf16.mxu0 %v2006
    %2354 = vmatpush1.bf16.msra.mxu0 %v2005
    %2355 = vmatprep.subr.bf16.mxu0 %v2002
    %2356 = vmatpush1.bf16.msra.mxu0 %v2001
    %2357 = vmatprep.subr.bf16.mxu0 %v2062
    %2358 = vmatpush2.bf16.msra.mxu0 %v2061
    %2359 = vmatprep.subr.bf16.mxu0 %v2058
    %2360 = vmatpush2.bf16.msra.mxu0 %v2057
    %2361 = vmatprep.subr.bf16.mxu0 %v2054
    %2362 = vmatpush2.bf16.msra.mxu0 %v2053
    %2363 = vmatprep.subr.bf16.mxu0 %v2050
    %2364 = vmatpush2.bf16.msra.mxu0 %v2049
    %2365 = vmatprep.subr.bf16.mxu0 %v2046
    %2366 = vmatpush2.bf16.msra.mxu0 %v2045
    %2367 = vmatprep.subr.bf16.mxu0 %v2042
    %2368 = vmatpush2.bf16.msra.mxu0 %v2041
    %2369 = vmatprep.subr.bf16.mxu0 %v2038
    %2370 = vmatpush2.bf16.msra.mxu0 %v2037
    %2371 = vmatprep.subr.bf16.mxu0 %v2034
    %2372 = vmatpush2.bf16.msra.mxu0 %v2033
    %2373 = vmatprep.mubr.bf16.mxu0 %v1448
    %2374 = vmatmul.mubr.bf16.gmra.mxu0 %v1447
    %v2375 = vpop.f32.mrf.mxu0
    %v2376 = vadd.f32 %v1606, %v2375
    %v2377 = vpop.f32.mrf.mxu0
    %v2378 = vadd.f32 %v1610, %v2377
    %v2379 = vpop.f32.mrf.mxu0
    %v2380 = vadd.f32 %v1606, %v2379
    %v2381 = vpop.f32.mrf.mxu0
    %v2382 = vadd.f32 %v1610, %v2381
    %2383 = vdwg.mxu0
    %2384 = vmatprep.subr.bf16.mxu0 %v2094
    %2385 = vmatpush1.bf16.msra.mxu0 %v2093
    %2386 = vmatprep.subr.bf16.mxu0 %v2090
    %2387 = vmatpush1.bf16.msra.mxu0 %v2089
    %2388 = vmatprep.subr.bf16.mxu0 %v2086
    %2389 = vmatpush1.bf16.msra.mxu0 %v2085
    %2390 = vmatprep.subr.bf16.mxu0 %v2082
    %2391 = vmatpush1.bf16.msra.mxu0 %v2081
    %2392 = vmatprep.subr.bf16.mxu0 %v2078
    %2393 = vmatpush1.bf16.msra.mxu0 %v2077
    %2394 = vmatprep.subr.bf16.mxu0 %v2074
    %2395 = vmatpush1.bf16.msra.mxu0 %v2073
    %2396 = vmatprep.subr.bf16.mxu0 %v2070
    %2397 = vmatpush1.bf16.msra.mxu0 %v2069
    %2398 = vmatprep.subr.bf16.mxu0 %v2066
    %2399 = vmatpush1.bf16.msra.mxu0 %v2065
    %2400 = vmatprep.subr.bf16.mxu0 %v2126
    %2401 = vmatpush2.bf16.msra.mxu0 %v2125
    %2402 = vmatprep.subr.bf16.mxu0 %v2122
    %2403 = vmatpush2.bf16.msra.mxu0 %v2121
    %2404 = vmatprep.subr.bf16.mxu0 %v2118
    %2405 = vmatpush2.bf16.msra.mxu0 %v2117
    %2406 = vmatprep.subr.bf16.mxu0 %v2114
    %2407 = vmatpush2.bf16.msra.mxu0 %v2113
    %2408 = vmatprep.subr.bf16.mxu0 %v2110
    %2409 = vmatpush2.bf16.msra.mxu0 %v2109
    %2410 = vmatprep.subr.bf16.mxu0 %v2106
    %2411 = vmatpush2.bf16.msra.mxu0 %v2105
    %2412 = vmatprep.subr.bf16.mxu0 %v2102
    %2413 = vmatpush2.bf16.msra.mxu0 %v2101
    %2414 = vmatprep.subr.bf16.mxu0 %v2098
    %2415 = vmatpush2.bf16.msra.mxu0 %v2097
    %2416 = vmatprep.mubr.bf16.mxu0 %v1450
    %2417 = vmatmul.mubr.bf16.gmra.mxu0 %v1449
    %v2418 = vpop.f32.mrf.mxu0
    %v2419 = vadd.f32 %v2376, %v2418
    %v2420 = vpop.f32.mrf.mxu0
    %v2421 = vadd.f32 %v2378, %v2420
    %v2422 = vpop.f32.mrf.mxu0
    %v2423 = vadd.f32 %v2380, %v2422
    %v2424 = vpop.f32.mrf.mxu0
    %v2425 = vadd.f32 %v2382, %v2424
    %2426 = vdwg.mxu0
    %v2427 = vpack.c.bf16 %v2337, %v2333
    %v2428 = vpack.c.bf16 %v2339, %v2335
    %v2429 = vpack.c.bf16 %v2423, %v2419
    %v2430 = vpack.c.bf16 %v2425, %v2421
    %vm2431 = vcmp.gt.bf16.partialorder %v2427, 0
    %vm2432 = vcmp.gt.bf16.partialorder %v2428, 0
    %vm2433 = vcmp.gt.bf16.partialorder %v2429, 0
    %vm2434 = vcmp.gt.bf16.partialorder %v2430, 0
    %v2436 = vmul.bf16 %v2427, 1069105081
    %v2437 = vpow.bf16.pop %v2436
    %v2439 = vmul.bf16 %v2428, 1069105081
    %v2440 = vpow.bf16.pop %v2439
    %v2442 = vmul.bf16 %v2429, 1069105081
    %v2443 = vpow.bf16.pop %v2442
    %v2445 = vmul.bf16 %v2430, 1069105081
    %v2446 = vpow.bf16.pop %v2445
    %v2447 = vsub.bf16 %v2437, 1065369472
    %v2448 = vsub.bf16 %v2440, 1065369472
    %v2449 = vsub.bf16 %v2443, 1065369472
    %v2450 = vsub.bf16 %v2446, 1065369472
    %v2451 = vmul.bf16 %v2447, 1071005654
    %v2452 = vmul.bf16 %v2448, 1071005654
    %v2453 = vmul.bf16 %v2449, 1071005654
    %v2454 = vmul.bf16 %v2450, 1071005654
    %v2455 = vsel %vm2431, %v2427, %v2451
    %v2456 = vsel %vm2432, %v2428, %v2452
    %v2457 = vsel %vm2433, %v2429, %v2453
    %v2458 = vsel %vm2434, %v2430, %v2454
    %s2459 = sshll.u32 %s442, 4
    %2460 = dma.done %s445, %s2459
    %s2461 = scalar_lea.sflag [#allocation8], 5
    // Predicated region
    $region58: #{tpu_custom_call.1} parent=1 // pred_check
      _
    $region59: #{tpu_custom_call.1} parent=1 // pred_check_branch
      %2463 = sbr.rel target = $region61
    $region60: #{tpu_custom_call.1} parent=1 // pred_region
      %2464 = sst [smem:[#allocation17]] [#allocation28]
      %2465 = sst [smem:[#allocation18]] [#allocation27]
    $region61: #{tpu_custom_call.1} parent=1 // pred_fallthru
      _
    %2467 = shalt.err (0)
    %s2469 = sshll.u32 [#allocation7], 4
    %s2470 = int_to_ptr.vmem [resolvable:$true] %s2469
    %2472 = dma.hbm_to_vmem [thread:$0]  %s11, 2048, %s2470, %s2461
    %v2473 = vld [vmem:[#allocation5] sm:$0xff]
    %v2474 = vld [vmem:[#allocation5 + $0x8] sm:$0xff]
    %v2475 = vld [vmem:[#allocation5 + $0x10] sm:$0xff]
    %v2476 = vld [vmem:[#allocation5 + $0x18] sm:$0xff]
    %v2477 = vld [vmem:[#allocation5 + $0x20] sm:$0xff]
    %v2478 = vld [vmem:[#allocation5 + $0x28] sm:$0xff]
    %v2479 = vld [vmem:[#allocation5 + $0x30] sm:$0xff]
    %v2480 = vld [vmem:[#allocation5 + $0x38] sm:$0xff]
    %v2481 = vld [vmem:[#allocation5 + $0x40] sm:$0xff]
    %v2482 = vld [vmem:[#allocation5 + $0x48] sm:$0xff]
    %v2483 = vld [vmem:[#allocation5 + $0x50] sm:$0xff]
    %v2484 = vld [vmem:[#allocation5 + $0x58] sm:$0xff]
    %v2485 = vld [vmem:[#allocation5 + $0x60] sm:$0xff]
    %v2486 = vld [vmem:[#allocation5 + $0x68] sm:$0xff]
    %v2487 = vld [vmem:[#allocation5 + $0x70] sm:$0xff]
    %v2488 = vld [vmem:[#allocation5 + $0x78] sm:$0xff]
    %v2489 = vld [vmem:[#allocation5 + $0x80] sm:$0xff]
    %v2490 = vld [vmem:[#allocation5 + $0x88] sm:$0xff]
    %v2491 = vld [vmem:[#allocation5 + $0x90] sm:$0xff]
    %v2492 = vld [vmem:[#allocation5 + $0x98] sm:$0xff]
    %v2493 = vld [vmem:[#allocation5 + $0xa0] sm:$0xff]
    %v2494 = vld [vmem:[#allocation5 + $0xa8] sm:$0xff]
    %v2495 = vld [vmem:[#allocation5 + $0xb0] sm:$0xff]
    %v2496 = vld [vmem:[#allocation5 + $0xb8] sm:$0xff]
    %v2497 = vld [vmem:[#allocation5 + $0xc0] sm:$0xff]
    %v2498 = vld [vmem:[#allocation5 + $0xc8] sm:$0xff]
    %v2499 = vld [vmem:[#allocation5 + $0xd0] sm:$0xff]
    %v2500 = vld [vmem:[#allocation5 + $0xd8] sm:$0xff]
    %v2501 = vld [vmem:[#allocation5 + $0xe0] sm:$0xff]
    %v2502 = vld [vmem:[#allocation5 + $0xe8] sm:$0xff]
    %v2503 = vld [vmem:[#allocation5 + $0xf0] sm:$0xff]
    %v2504 = vld [vmem:[#allocation5 + $0xf8] sm:$0xff]
    %v2505 = vld [vmem:[#allocation5 + $0x100] sm:$0xff]
    %v2506 = vld [vmem:[#allocation5 + $0x108] sm:$0xff]
    %v2507 = vld [vmem:[#allocation5 + $0x110] sm:$0xff]
    %v2508 = vld [vmem:[#allocation5 + $0x118] sm:$0xff]
    %v2509 = vld [vmem:[#allocation5 + $0x120] sm:$0xff]
    %v2510 = vld [vmem:[#allocation5 + $0x128] sm:$0xff]
    %v2511 = vld [vmem:[#allocation5 + $0x130] sm:$0xff]
    %v2512 = vld [vmem:[#allocation5 + $0x138] sm:$0xff]
    %v2513 = vld [vmem:[#allocation5 + $0x140] sm:$0xff]
    %v2514 = vld [vmem:[#allocation5 + $0x148] sm:$0xff]
    %v2515 = vld [vmem:[#allocation5 + $0x150] sm:$0xff]
    %v2516 = vld [vmem:[#allocation5 + $0x158] sm:$0xff]
    %v2517 = vld [vmem:[#allocation5 + $0x160] sm:$0xff]
    %v2518 = vld [vmem:[#allocation5 + $0x168] sm:$0xff]
    %v2519 = vld [vmem:[#allocation5 + $0x170] sm:$0xff]
    %v2520 = vld [vmem:[#allocation5 + $0x178] sm:$0xff]
    %v2521 = vld [vmem:[#allocation5 + $0x180] sm:$0xff]
    %v2522 = vld [vmem:[#allocation5 + $0x188] sm:$0xff]
    %v2523 = vld [vmem:[#allocation5 + $0x190] sm:$0xff]
    %v2524 = vld [vmem:[#allocation5 + $0x198] sm:$0xff]
    %v2525 = vld [vmem:[#allocation5 + $0x1a0] sm:$0xff]
    %v2526 = vld [vmem:[#allocation5 + $0x1a8] sm:$0xff]
    %v2527 = vld [vmem:[#allocation5 + $0x1b0] sm:$0xff]
    %v2528 = vld [vmem:[#allocation5 + $0x1b8] sm:$0xff]
    %v2529 = vld [vmem:[#allocation5 + $0x1c0] sm:$0xff]
    %v2530 = vld [vmem:[#allocation5 + $0x1c8] sm:$0xff]
    %v2531 = vld [vmem:[#allocation5 + $0x1d0] sm:$0xff]
    %v2532 = vld [vmem:[#allocation5 + $0x1d8] sm:$0xff]
    %v2533 = vld [vmem:[#allocation5 + $0x1e0] sm:$0xff]
    %v2534 = vld [vmem:[#allocation5 + $0x1e8] sm:$0xff]
    %v2535 = vld [vmem:[#allocation5 + $0x1f0] sm:$0xff]
    %v2536 = vld [vmem:[#allocation5 + $0x1f8] sm:$0xff]
    %v2537 = vld [vmem:[#allocation5 + $0x200] sm:$0xff]
    %v2538 = vld [vmem:[#allocation5 + $0x208] sm:$0xff]
    %v2539 = vld [vmem:[#allocation5 + $0x210] sm:$0xff]
    %v2540 = vld [vmem:[#allocation5 + $0x218] sm:$0xff]
    %v2541 = vld [vmem:[#allocation5 + $0x220] sm:$0xff]
    %v2542 = vld [vmem:[#allocation5 + $0x228] sm:$0xff]
    %v2543 = vld [vmem:[#allocation5 + $0x230] sm:$0xff]
    %v2544 = vld [vmem:[#allocation5 + $0x238] sm:$0xff]
    %v2545 = vld [vmem:[#allocation5 + $0x240] sm:$0xff]
    %v2546 = vld [vmem:[#allocation5 + $0x248] sm:$0xff]
    %v2547 = vld [vmem:[#allocation5 + $0x250] sm:$0xff]
    %v2548 = vld [vmem:[#allocation5 + $0x258] sm:$0xff]
    %v2549 = vld [vmem:[#allocation5 + $0x260] sm:$0xff]
    %v2550 = vld [vmem:[#allocation5 + $0x268] sm:$0xff]
    %v2551 = vld [vmem:[#allocation5 + $0x270] sm:$0xff]
    %v2552 = vld [vmem:[#allocation5 + $0x278] sm:$0xff]
    %v2553 = vld [vmem:[#allocation5 + $0x280] sm:$0xff]
    %v2554 = vld [vmem:[#allocation5 + $0x288] sm:$0xff]
    %v2555 = vld [vmem:[#allocation5 + $0x290] sm:$0xff]
    %v2556 = vld [vmem:[#allocation5 + $0x298] sm:$0xff]
    %v2557 = vld [vmem:[#allocation5 + $0x2a0] sm:$0xff]
    %v2558 = vld [vmem:[#allocation5 + $0x2a8] sm:$0xff]
    %v2559 = vld [vmem:[#allocation5 + $0x2b0] sm:$0xff]
    %v2560 = vld [vmem:[#allocation5 + $0x2b8] sm:$0xff]
    %v2561 = vld [vmem:[#allocation5 + $0x2c0] sm:$0xff]
    %v2562 = vld [vmem:[#allocation5 + $0x2c8] sm:$0xff]
    %v2563 = vld [vmem:[#allocation5 + $0x2d0] sm:$0xff]
    %v2564 = vld [vmem:[#allocation5 + $0x2d8] sm:$0xff]
    %v2565 = vld [vmem:[#allocation5 + $0x2e0] sm:$0xff]
    %v2566 = vld [vmem:[#allocation5 + $0x2e8] sm:$0xff]
    %v2567 = vld [vmem:[#allocation5 + $0x2f0] sm:$0xff]
    %v2568 = vld [vmem:[#allocation5 + $0x2f8] sm:$0xff]
    %v2569 = vld [vmem:[#allocation5 + $0x300] sm:$0xff]
    %v2570 = vld [vmem:[#allocation5 + $0x308] sm:$0xff]
    %v2571 = vld [vmem:[#allocation5 + $0x310] sm:$0xff]
    %v2572 = vld [vmem:[#allocation5 + $0x318] sm:$0xff]
    %v2573 = vld [vmem:[#allocation5 + $0x320] sm:$0xff]
    %v2574 = vld [vmem:[#allocation5 + $0x328] sm:$0xff]
    %v2575 = vld [vmem:[#allocation5 + $0x330] sm:$0xff]
    %v2576 = vld [vmem:[#allocation5 + $0x338] sm:$0xff]
    %v2577 = vld [vmem:[#allocation5 + $0x340] sm:$0xff]
    %v2578 = vld [vmem:[#allocation5 + $0x348] sm:$0xff]
    %v2579 = vld [vmem:[#allocation5 + $0x350] sm:$0xff]
    %v2580 = vld [vmem:[#allocation5 + $0x358] sm:$0xff]
    %v2581 = vld [vmem:[#allocation5 + $0x360] sm:$0xff]
    %v2582 = vld [vmem:[#allocation5 + $0x368] sm:$0xff]
    %v2583 = vld [vmem:[#allocation5 + $0x370] sm:$0xff]
    %v2584 = vld [vmem:[#allocation5 + $0x378] sm:$0xff]
    %v2585 = vld [vmem:[#allocation5 + $0x380] sm:$0xff]
    %v2586 = vld [vmem:[#allocation5 + $0x388] sm:$0xff]
    %v2587 = vld [vmem:[#allocation5 + $0x390] sm:$0xff]
    %v2588 = vld [vmem:[#allocation5 + $0x398] sm:$0xff]
    %v2589 = vld [vmem:[#allocation5 + $0x3a0] sm:$0xff]
    %v2590 = vld [vmem:[#allocation5 + $0x3a8] sm:$0xff]
    %v2591 = vld [vmem:[#allocation5 + $0x3b0] sm:$0xff]
    %v2592 = vld [vmem:[#allocation5 + $0x3b8] sm:$0xff]
    %v2593 = vld [vmem:[#allocation5 + $0x3c0] sm:$0xff]
    %v2594 = vld [vmem:[#allocation5 + $0x3c8] sm:$0xff]
    %v2595 = vld [vmem:[#allocation5 + $0x3d0] sm:$0xff]
    %v2596 = vld [vmem:[#allocation5 + $0x3d8] sm:$0xff]
    %v2597 = vld [vmem:[#allocation5 + $0x3e0] sm:$0xff]
    %v2598 = vld [vmem:[#allocation5 + $0x3e8] sm:$0xff]
    %v2599 = vld [vmem:[#allocation5 + $0x3f0] sm:$0xff]
    %v2600 = vld [vmem:[#allocation5 + $0x3f8] sm:$0xff]
    %v2601 = vld [vmem:[%s8] sm:$0xf]
    %v2603 = vlaneseq
    %v2604 = vshrl.u32 %v2603, 7
    %v2605 = vsub.s32 0, %v2604
    %v2606 = vrot.slane %v2601, %v2605
    %v2607 = vlaneseq
    %v2608 = vshrl.u32 %v2607, 7
    %v2609 = vsub.s32 1, %v2608
    %v2610 = vrot.slane %v2601, %v2609
    %v2611 = vlaneseq
    %v2612 = vshrl.u32 %v2611, 7
    %v2613 = vsub.s32 2, %v2612
    %v2614 = vrot.slane %v2601, %v2613
    %v2615 = vlaneseq
    %v2616 = vshrl.u32 %v2615, 7
    %v2617 = vsub.s32 3, %v2616
    %v2618 = vrot.slane %v2601, %v2617
    %v2751 = vunpack.c.l.b16 %v2473
    %v2752 = vunpack.c.h.b16 %v2473
    %v2753 = vunpack.c.l.b16 %v2474
    %v2754 = vunpack.c.h.b16 %v2474
    %v2755 = vunpack.c.l.b16 %v2475
    %v2756 = vunpack.c.h.b16 %v2475
    %v2757 = vunpack.c.l.b16 %v2476
    %v2758 = vunpack.c.h.b16 %v2476
    %v2759 = vunpack.c.l.b16 %v2477
    %v2760 = vunpack.c.h.b16 %v2477
    %v2761 = vunpack.c.l.b16 %v2478
    %v2762 = vunpack.c.h.b16 %v2478
    %v2763 = vunpack.c.l.b16 %v2479
    %v2764 = vunpack.c.h.b16 %v2479
    %v2765 = vunpack.c.l.b16 %v2480
    %v2766 = vunpack.c.h.b16 %v2480
    %v2767 = vunpack.c.l.b16 %v2481
    %v2768 = vunpack.c.h.b16 %v2481
    %v2769 = vunpack.c.l.b16 %v2482
    %v2770 = vunpack.c.h.b16 %v2482
    %v2771 = vunpack.c.l.b16 %v2483
    %v2772 = vunpack.c.h.b16 %v2483
    %v2773 = vunpack.c.l.b16 %v2484
    %v2774 = vunpack.c.h.b16 %v2484
    %v2775 = vunpack.c.l.b16 %v2485
    %v2776 = vunpack.c.h.b16 %v2485
    %v2777 = vunpack.c.l.b16 %v2486
    %v2778 = vunpack.c.h.b16 %v2486
    %v2779 = vunpack.c.l.b16 %v2487
    %v2780 = vunpack.c.h.b16 %v2487
    %v2781 = vunpack.c.l.b16 %v2488
    %v2782 = vunpack.c.h.b16 %v2488
    %v2783 = vunpack.c.l.b16 %v2489
    %v2784 = vunpack.c.h.b16 %v2489
    %v2785 = vunpack.c.l.b16 %v2490
    %v2786 = vunpack.c.h.b16 %v2490
    %v2787 = vunpack.c.l.b16 %v2491
    %v2788 = vunpack.c.h.b16 %v2491
    %v2789 = vunpack.c.l.b16 %v2492
    %v2790 = vunpack.c.h.b16 %v2492
    %v2791 = vunpack.c.l.b16 %v2493
    %v2792 = vunpack.c.h.b16 %v2493
    %v2793 = vunpack.c.l.b16 %v2494
    %v2794 = vunpack.c.h.b16 %v2494
    %v2795 = vunpack.c.l.b16 %v2495
    %v2796 = vunpack.c.h.b16 %v2495
    %v2797 = vunpack.c.l.b16 %v2496
    %v2798 = vunpack.c.h.b16 %v2496
    %v2799 = vunpack.c.l.b16 %v2497
    %v2800 = vunpack.c.h.b16 %v2497
    %v2801 = vunpack.c.l.b16 %v2498
    %v2802 = vunpack.c.h.b16 %v2498
    %v2803 = vunpack.c.l.b16 %v2499
    %v2804 = vunpack.c.h.b16 %v2499
    %v2805 = vunpack.c.l.b16 %v2500
    %v2806 = vunpack.c.h.b16 %v2500
    %v2807 = vunpack.c.l.b16 %v2501
    %v2808 = vunpack.c.h.b16 %v2501
    %v2809 = vunpack.c.l.b16 %v2502
    %v2810 = vunpack.c.h.b16 %v2502
    %v2811 = vunpack.c.l.b16 %v2503
    %v2812 = vunpack.c.h.b16 %v2503
    %v2813 = vunpack.c.l.b16 %v2504
    %v2814 = vunpack.c.h.b16 %v2504
    %v2815 = vunpack.c.l.b16 %v2505
    %v2816 = vunpack.c.h.b16 %v2505
    %v2817 = vunpack.c.l.b16 %v2506
    %v2818 = vunpack.c.h.b16 %v2506
    %v2819 = vunpack.c.l.b16 %v2507
    %v2820 = vunpack.c.h.b16 %v2507
    %v2821 = vunpack.c.l.b16 %v2508
    %v2822 = vunpack.c.h.b16 %v2508
    %v2823 = vunpack.c.l.b16 %v2509
    %v2824 = vunpack.c.h.b16 %v2509
    %v2825 = vunpack.c.l.b16 %v2510
    %v2826 = vunpack.c.h.b16 %v2510
    %v2827 = vunpack.c.l.b16 %v2511
    %v2828 = vunpack.c.h.b16 %v2511
    %v2829 = vunpack.c.l.b16 %v2512
    %v2830 = vunpack.c.h.b16 %v2512
    %v2831 = vunpack.c.l.b16 %v2513
    %v2832 = vunpack.c.h.b16 %v2513
    %v2833 = vunpack.c.l.b16 %v2514
    %v2834 = vunpack.c.h.b16 %v2514
    %v2835 = vunpack.c.l.b16 %v2515
    %v2836 = vunpack.c.h.b16 %v2515
    %v2837 = vunpack.c.l.b16 %v2516
    %v2838 = vunpack.c.h.b16 %v2516
    %v2839 = vunpack.c.l.b16 %v2517
    %v2840 = vunpack.c.h.b16 %v2517
    %v2841 = vunpack.c.l.b16 %v2518
    %v2842 = vunpack.c.h.b16 %v2518
    %v2843 = vunpack.c.l.b16 %v2519
    %v2844 = vunpack.c.h.b16 %v2519
    %v2845 = vunpack.c.l.b16 %v2520
    %v2846 = vunpack.c.h.b16 %v2520
    %v2847 = vunpack.c.l.b16 %v2521
    %v2848 = vunpack.c.h.b16 %v2521
    %v2849 = vunpack.c.l.b16 %v2522
    %v2850 = vunpack.c.h.b16 %v2522
    %v2851 = vunpack.c.l.b16 %v2523
    %v2852 = vunpack.c.h.b16 %v2523
    %v2853 = vunpack.c.l.b16 %v2524
    %v2854 = vunpack.c.h.b16 %v2524
    %v2855 = vunpack.c.l.b16 %v2525
    %v2856 = vunpack.c.h.b16 %v2525
    %v2857 = vunpack.c.l.b16 %v2526
    %v2858 = vunpack.c.h.b16 %v2526
    %v2859 = vunpack.c.l.b16 %v2527
    %v2860 = vunpack.c.h.b16 %v2527
    %v2861 = vunpack.c.l.b16 %v2528
    %v2862 = vunpack.c.h.b16 %v2528
    %v2863 = vunpack.c.l.b16 %v2529
    %v2864 = vunpack.c.h.b16 %v2529
    %v2865 = vunpack.c.l.b16 %v2530
    %v2866 = vunpack.c.h.b16 %v2530
    %v2867 = vunpack.c.l.b16 %v2531
    %v2868 = vunpack.c.h.b16 %v2531
    %v2869 = vunpack.c.l.b16 %v2532
    %v2870 = vunpack.c.h.b16 %v2532
    %v2871 = vunpack.c.l.b16 %v2533
    %v2872 = vunpack.c.h.b16 %v2533
    %v2873 = vunpack.c.l.b16 %v2534
    %v2874 = vunpack.c.h.b16 %v2534
    %v2875 = vunpack.c.l.b16 %v2535
    %v2876 = vunpack.c.h.b16 %v2535
    %v2877 = vunpack.c.l.b16 %v2536
    %v2878 = vunpack.c.h.b16 %v2536
    %v2879 = vunpack.c.l.b16 %v2537
    %v2880 = vunpack.c.h.b16 %v2537
    %v2881 = vunpack.c.l.b16 %v2538
    %v2882 = vunpack.c.h.b16 %v2538
    %v2883 = vunpack.c.l.b16 %v2539
    %v2884 = vunpack.c.h.b16 %v2539
    %v2885 = vunpack.c.l.b16 %v2540
    %v2886 = vunpack.c.h.b16 %v2540
    %v2887 = vunpack.c.l.b16 %v2541
    %v2888 = vunpack.c.h.b16 %v2541
    %v2889 = vunpack.c.l.b16 %v2542
    %v2890 = vunpack.c.h.b16 %v2542
    %v2891 = vunpack.c.l.b16 %v2543
    %v2892 = vunpack.c.h.b16 %v2543
    %v2893 = vunpack.c.l.b16 %v2544
    %v2894 = vunpack.c.h.b16 %v2544
    %v2895 = vunpack.c.l.b16 %v2545
    %v2896 = vunpack.c.h.b16 %v2545
    %v2897 = vunpack.c.l.b16 %v2546
    %v2898 = vunpack.c.h.b16 %v2546
    %v2899 = vunpack.c.l.b16 %v2547
    %v2900 = vunpack.c.h.b16 %v2547
    %v2901 = vunpack.c.l.b16 %v2548
    %v2902 = vunpack.c.h.b16 %v2548
    %v2903 = vunpack.c.l.b16 %v2549
    %v2904 = vunpack.c.h.b16 %v2549
    %v2905 = vunpack.c.l.b16 %v2550
    %v2906 = vunpack.c.h.b16 %v2550
    %v2907 = vunpack.c.l.b16 %v2551
    %v2908 = vunpack.c.h.b16 %v2551
    %v2909 = vunpack.c.l.b16 %v2552
    %v2910 = vunpack.c.h.b16 %v2552
    %v2911 = vunpack.c.l.b16 %v2553
    %v2912 = vunpack.c.h.b16 %v2553
    %v2913 = vunpack.c.l.b16 %v2554
    %v2914 = vunpack.c.h.b16 %v2554
    %v2915 = vunpack.c.l.b16 %v2555
    %v2916 = vunpack.c.h.b16 %v2555
    %v2917 = vunpack.c.l.b16 %v2556
    %v2918 = vunpack.c.h.b16 %v2556
    %v2919 = vunpack.c.l.b16 %v2557
    %v2920 = vunpack.c.h.b16 %v2557
    %v2921 = vunpack.c.l.b16 %v2558
    %v2922 = vunpack.c.h.b16 %v2558
    %v2923 = vunpack.c.l.b16 %v2559
    %v2924 = vunpack.c.h.b16 %v2559
    %v2925 = vunpack.c.l.b16 %v2560
    %v2926 = vunpack.c.h.b16 %v2560
    %v2927 = vunpack.c.l.b16 %v2561
    %v2928 = vunpack.c.h.b16 %v2561
    %v2929 = vunpack.c.l.b16 %v2562
    %v2930 = vunpack.c.h.b16 %v2562
    %v2931 = vunpack.c.l.b16 %v2563
    %v2932 = vunpack.c.h.b16 %v2563
    %v2933 = vunpack.c.l.b16 %v2564
    %v2934 = vunpack.c.h.b16 %v2564
    %v2935 = vunpack.c.l.b16 %v2565
    %v2936 = vunpack.c.h.b16 %v2565
    %v2937 = vunpack.c.l.b16 %v2566
    %v2938 = vunpack.c.h.b16 %v2566
    %v2939 = vunpack.c.l.b16 %v2567
    %v2940 = vunpack.c.h.b16 %v2567
    %v2941 = vunpack.c.l.b16 %v2568
    %v2942 = vunpack.c.h.b16 %v2568
    %v2943 = vunpack.c.l.b16 %v2569
    %v2944 = vunpack.c.h.b16 %v2569
    %v2945 = vunpack.c.l.b16 %v2570
    %v2946 = vunpack.c.h.b16 %v2570
    %v2947 = vunpack.c.l.b16 %v2571
    %v2948 = vunpack.c.h.b16 %v2571
    %v2949 = vunpack.c.l.b16 %v2572
    %v2950 = vunpack.c.h.b16 %v2572
    %v2951 = vunpack.c.l.b16 %v2573
    %v2952 = vunpack.c.h.b16 %v2573
    %v2953 = vunpack.c.l.b16 %v2574
    %v2954 = vunpack.c.h.b16 %v2574
    %v2955 = vunpack.c.l.b16 %v2575
    %v2956 = vunpack.c.h.b16 %v2575
    %v2957 = vunpack.c.l.b16 %v2576
    %v2958 = vunpack.c.h.b16 %v2576
    %v2959 = vunpack.c.l.b16 %v2577
    %v2960 = vunpack.c.h.b16 %v2577
    %v2961 = vunpack.c.l.b16 %v2578
    %v2962 = vunpack.c.h.b16 %v2578
    %v2963 = vunpack.c.l.b16 %v2579
    %v2964 = vunpack.c.h.b16 %v2579
    %v2965 = vunpack.c.l.b16 %v2580
    %v2966 = vunpack.c.h.b16 %v2580
    %v2967 = vunpack.c.l.b16 %v2581
    %v2968 = vunpack.c.h.b16 %v2581
    %v2969 = vunpack.c.l.b16 %v2582
    %v2970 = vunpack.c.h.b16 %v2582
    %v2971 = vunpack.c.l.b16 %v2583
    %v2972 = vunpack.c.h.b16 %v2583
    %v2973 = vunpack.c.l.b16 %v2584
    %v2974 = vunpack.c.h.b16 %v2584
    %v2975 = vunpack.c.l.b16 %v2585
    %v2976 = vunpack.c.h.b16 %v2585
    %v2977 = vunpack.c.l.b16 %v2586
    %v2978 = vunpack.c.h.b16 %v2586
    %v2979 = vunpack.c.l.b16 %v2587
    %v2980 = vunpack.c.h.b16 %v2587
    %v2981 = vunpack.c.l.b16 %v2588
    %v2982 = vunpack.c.h.b16 %v2588
    %v2983 = vunpack.c.l.b16 %v2589
    %v2984 = vunpack.c.h.b16 %v2589
    %v2985 = vunpack.c.l.b16 %v2590
    %v2986 = vunpack.c.h.b16 %v2590
    %v2987 = vunpack.c.l.b16 %v2591
    %v2988 = vunpack.c.h.b16 %v2591
    %v2989 = vunpack.c.l.b16 %v2592
    %v2990 = vunpack.c.h.b16 %v2592
    %v2991 = vunpack.c.l.b16 %v2593
    %v2992 = vunpack.c.h.b16 %v2593
    %v2993 = vunpack.c.l.b16 %v2594
    %v2994 = vunpack.c.h.b16 %v2594
    %v2995 = vunpack.c.l.b16 %v2595
    %v2996 = vunpack.c.h.b16 %v2595
    %v2997 = vunpack.c.l.b16 %v2596
    %v2998 = vunpack.c.h.b16 %v2596
    %v2999 = vunpack.c.l.b16 %v2597
    %v3000 = vunpack.c.h.b16 %v2597
    %v3001 = vunpack.c.l.b16 %v2598
    %v3002 = vunpack.c.h.b16 %v2598
    %v3003 = vunpack.c.l.b16 %v2599
    %v3004 = vunpack.c.h.b16 %v2599
    %v3005 = vunpack.c.l.b16 %v2600
    %v3006 = vunpack.c.h.b16 %v2600
    %v3007 = vpack.c.b16 %v2755, %v2751
    %v3008 = vpack.c.b16 %v2756, %v2752
    %v3009 = vpack.c.b16 %v2757, %v2753
    %v3010 = vpack.c.b16 %v2758, %v2754
    %v3011 = vpack.c.b16 %v2763, %v2759
    %v3012 = vpack.c.b16 %v2764, %v2760
    %v3013 = vpack.c.b16 %v2765, %v2761
    %v3014 = vpack.c.b16 %v2766, %v2762
    %v3015 = vpack.c.b16 %v2771, %v2767
    %v3016 = vpack.c.b16 %v2772, %v2768
    %v3017 = vpack.c.b16 %v2773, %v2769
    %v3018 = vpack.c.b16 %v2774, %v2770
    %v3019 = vpack.c.b16 %v2779, %v2775
    %v3020 = vpack.c.b16 %v2780, %v2776
    %v3021 = vpack.c.b16 %v2781, %v2777
    %v3022 = vpack.c.b16 %v2782, %v2778
    %v3023 = vpack.c.b16 %v2787, %v2783
    %v3024 = vpack.c.b16 %v2788, %v2784
    %v3025 = vpack.c.b16 %v2789, %v2785
    %v3026 = vpack.c.b16 %v2790, %v2786
    %v3027 = vpack.c.b16 %v2795, %v2791
    %v3028 = vpack.c.b16 %v2796, %v2792
    %v3029 = vpack.c.b16 %v2797, %v2793
    %v3030 = vpack.c.b16 %v2798, %v2794
    %v3031 = vpack.c.b16 %v2803, %v2799
    %v3032 = vpack.c.b16 %v2804, %v2800
    %v3033 = vpack.c.b16 %v2805, %v2801
    %v3034 = vpack.c.b16 %v2806, %v2802
    %v3035 = vpack.c.b16 %v2811, %v2807
    %v3036 = vpack.c.b16 %v2812, %v2808
    %v3037 = vpack.c.b16 %v2813, %v2809
    %v3038 = vpack.c.b16 %v2814, %v2810
    %v3039 = vpack.c.b16 %v2819, %v2815
    %v3040 = vpack.c.b16 %v2820, %v2816
    %v3041 = vpack.c.b16 %v2821, %v2817
    %v3042 = vpack.c.b16 %v2822, %v2818
    %v3043 = vpack.c.b16 %v2827, %v2823
    %v3044 = vpack.c.b16 %v2828, %v2824
    %v3045 = vpack.c.b16 %v2829, %v2825
    %v3046 = vpack.c.b16 %v2830, %v2826
    %v3047 = vpack.c.b16 %v2835, %v2831
    %v3048 = vpack.c.b16 %v2836, %v2832
    %v3049 = vpack.c.b16 %v2837, %v2833
    %v3050 = vpack.c.b16 %v2838, %v2834
    %v3051 = vpack.c.b16 %v2843, %v2839
    %v3052 = vpack.c.b16 %v2844, %v2840
    %v3053 = vpack.c.b16 %v2845, %v2841
    %v3054 = vpack.c.b16 %v2846, %v2842
    %v3055 = vpack.c.b16 %v2851, %v2847
    %v3056 = vpack.c.b16 %v2852, %v2848
    %v3057 = vpack.c.b16 %v2853, %v2849
    %v3058 = vpack.c.b16 %v2854, %v2850
    %v3059 = vpack.c.b16 %v2859, %v2855
    %v3060 = vpack.c.b16 %v2860, %v2856
    %v3061 = vpack.c.b16 %v2861, %v2857
    %v3062 = vpack.c.b16 %v2862, %v2858
    %v3063 = vpack.c.b16 %v2867, %v2863
    %v3064 = vpack.c.b16 %v2868, %v2864
    %v3065 = vpack.c.b16 %v2869, %v2865
    %v3066 = vpack.c.b16 %v2870, %v2866
    %v3067 = vpack.c.b16 %v2875, %v2871
    %v3068 = vpack.c.b16 %v2876, %v2872
    %v3069 = vpack.c.b16 %v2877, %v2873
    %v3070 = vpack.c.b16 %v2878, %v2874
    %v3071 = vpack.c.b16 %v2883, %v2879
    %v3072 = vpack.c.b16 %v2884, %v2880
    %v3073 = vpack.c.b16 %v2885, %v2881
    %v3074 = vpack.c.b16 %v2886, %v2882
    %v3075 = vpack.c.b16 %v2891, %v2887
    %v3076 = vpack.c.b16 %v2892, %v2888
    %v3077 = vpack.c.b16 %v2893, %v2889
    %v3078 = vpack.c.b16 %v2894, %v2890
    %v3079 = vpack.c.b16 %v2899, %v2895
    %v3080 = vpack.c.b16 %v2900, %v2896
    %v3081 = vpack.c.b16 %v2901, %v2897
    %v3082 = vpack.c.b16 %v2902, %v2898
    %v3083 = vpack.c.b16 %v2907, %v2903
    %v3084 = vpack.c.b16 %v2908, %v2904
    %v3085 = vpack.c.b16 %v2909, %v2905
    %v3086 = vpack.c.b16 %v2910, %v2906
    %v3087 = vpack.c.b16 %v2915, %v2911
    %v3088 = vpack.c.b16 %v2916, %v2912
    %v3089 = vpack.c.b16 %v2917, %v2913
    %v3090 = vpack.c.b16 %v2918, %v2914
    %v3091 = vpack.c.b16 %v2923, %v2919
    %v3092 = vpack.c.b16 %v2924, %v2920
    %v3093 = vpack.c.b16 %v2925, %v2921
    %v3094 = vpack.c.b16 %v2926, %v2922
    %v3095 = vpack.c.b16 %v2931, %v2927
    %v3096 = vpack.c.b16 %v2932, %v2928
    %v3097 = vpack.c.b16 %v2933, %v2929
    %v3098 = vpack.c.b16 %v2934, %v2930
    %v3099 = vpack.c.b16 %v2939, %v2935
    %v3100 = vpack.c.b16 %v2940, %v2936
    %v3101 = vpack.c.b16 %v2941, %v2937
    %v3102 = vpack.c.b16 %v2942, %v2938
    %v3103 = vpack.c.b16 %v2947, %v2943
    %v3104 = vpack.c.b16 %v2948, %v2944
    %v3105 = vpack.c.b16 %v2949, %v2945
    %v3106 = vpack.c.b16 %v2950, %v2946
    %v3107 = vpack.c.b16 %v2955, %v2951
    %v3108 = vpack.c.b16 %v2956, %v2952
    %v3109 = vpack.c.b16 %v2957, %v2953
    %v3110 = vpack.c.b16 %v2958, %v2954
    %v3111 = vpack.c.b16 %v2963, %v2959
    %v3112 = vpack.c.b16 %v2964, %v2960
    %v3113 = vpack.c.b16 %v2965, %v2961
    %v3114 = vpack.c.b16 %v2966, %v2962
    %v3115 = vpack.c.b16 %v2971, %v2967
    %v3116 = vpack.c.b16 %v2972, %v2968
    %v3117 = vpack.c.b16 %v2973, %v2969
    %v3118 = vpack.c.b16 %v2974, %v2970
    %v3119 = vpack.c.b16 %v2979, %v2975
    %v3120 = vpack.c.b16 %v2980, %v2976
    %v3121 = vpack.c.b16 %v2981, %v2977
    %v3122 = vpack.c.b16 %v2982, %v2978
    %v3123 = vpack.c.b16 %v2987, %v2983
    %v3124 = vpack.c.b16 %v2988, %v2984
    %v3125 = vpack.c.b16 %v2989, %v2985
    %v3126 = vpack.c.b16 %v2990, %v2986
    %v3127 = vpack.c.b16 %v2995, %v2991
    %v3128 = vpack.c.b16 %v2996, %v2992
    %v3129 = vpack.c.b16 %v2997, %v2993
    %v3130 = vpack.c.b16 %v2998, %v2994
    %v3131 = vpack.c.b16 %v3003, %v2999
    %v3132 = vpack.c.b16 %v3004, %v3000
    %v3133 = vpack.c.b16 %v3005, %v3001
    %v3134 = vpack.c.b16 %v3006, %v3002
    %3263 = vmatprep.subr.bf16.mxu0 %v3036
    %3264 = vmatpush1.bf16.msra.mxu0 %v3035
    %3265 = vmatprep.subr.bf16.mxu0 %v3032
    %3266 = vmatpush1.bf16.msra.mxu0 %v3031
    %3267 = vmatprep.subr.bf16.mxu0 %v3028
    %3268 = vmatpush1.bf16.msra.mxu0 %v3027
    %3269 = vmatprep.subr.bf16.mxu0 %v3024
    %3270 = vmatpush1.bf16.msra.mxu0 %v3023
    %3271 = vmatprep.subr.bf16.mxu0 %v3020
    %3272 = vmatpush1.bf16.msra.mxu0 %v3019
    %3273 = vmatprep.subr.bf16.mxu0 %v3016
    %3274 = vmatpush1.bf16.msra.mxu0 %v3015
    %3275 = vmatprep.subr.bf16.mxu0 %v3012
    %3276 = vmatpush1.bf16.msra.mxu0 %v3011
    %3277 = vmatprep.subr.bf16.mxu0 %v3008
    %3278 = vmatpush1.bf16.msra.mxu0 %v3007
    %3279 = vmatprep.subr.bf16.mxu0 %v3068
    %3280 = vmatpush2.bf16.msra.mxu0 %v3067
    %3281 = vmatprep.subr.bf16.mxu0 %v3064
    %3282 = vmatpush2.bf16.msra.mxu0 %v3063
    %3283 = vmatprep.subr.bf16.mxu0 %v3060
    %3284 = vmatpush2.bf16.msra.mxu0 %v3059
    %3285 = vmatprep.subr.bf16.mxu0 %v3056
    %3286 = vmatpush2.bf16.msra.mxu0 %v3055
    %3287 = vmatprep.subr.bf16.mxu0 %v3052
    %3288 = vmatpush2.bf16.msra.mxu0 %v3051
    %3289 = vmatprep.subr.bf16.mxu0 %v3048
    %3290 = vmatpush2.bf16.msra.mxu0 %v3047
    %3291 = vmatprep.subr.bf16.mxu0 %v3044
    %3292 = vmatpush2.bf16.msra.mxu0 %v3043
    %3293 = vmatprep.subr.bf16.mxu0 %v3040
    %3294 = vmatpush2.bf16.msra.mxu0 %v3039
    %3295 = vmatprep.mubr.bf16.mxu0 %v2456
    %3296 = vmatmul.mubr.bf16.gmra.mxu0 %v2455
    %v3297 = vpop.f32.mrf.mxu0
    %v3298 = vadd.f32 %v2606, %v3297
    %v3299 = vpop.f32.mrf.mxu0
    %v3300 = vadd.f32 %v2610, %v3299
    %v3301 = vpop.f32.mrf.mxu0
    %v3302 = vadd.f32 %v2606, %v3301
    %v3303 = vpop.f32.mrf.mxu0
    %v3304 = vadd.f32 %v2610, %v3303
    %3305 = vdwg.mxu0
    %3306 = vmatprep.subr.bf16.mxu0 %v3100
    %3307 = vmatpush1.bf16.msra.mxu0 %v3099
    %3308 = vmatprep.subr.bf16.mxu0 %v3096
    %3309 = vmatpush1.bf16.msra.mxu0 %v3095
    %3310 = vmatprep.subr.bf16.mxu0 %v3092
    %3311 = vmatpush1.bf16.msra.mxu0 %v3091
    %3312 = vmatprep.subr.bf16.mxu0 %v3088
    %3313 = vmatpush1.bf16.msra.mxu0 %v3087
    %3314 = vmatprep.subr.bf16.mxu0 %v3084
    %3315 = vmatpush1.bf16.msra.mxu0 %v3083
    %3316 = vmatprep.subr.bf16.mxu0 %v3080
    %3317 = vmatpush1.bf16.msra.mxu0 %v3079
    %3318 = vmatprep.subr.bf16.mxu0 %v3076
    %3319 = vmatpush1.bf16.msra.mxu0 %v3075
    %3320 = vmatprep.subr.bf16.mxu0 %v3072
    %3321 = vmatpush1.bf16.msra.mxu0 %v3071
    %3322 = vmatprep.subr.bf16.mxu0 %v3132
    %3323 = vmatpush2.bf16.msra.mxu0 %v3131
    %3324 = vmatprep.subr.bf16.mxu0 %v3128
    %3325 = vmatpush2.bf16.msra.mxu0 %v3127
    %3326 = vmatprep.subr.bf16.mxu0 %v3124
    %3327 = vmatpush2.bf16.msra.mxu0 %v3123
    %3328 = vmatprep.subr.bf16.mxu0 %v3120
    %3329 = vmatpush2.bf16.msra.mxu0 %v3119
    %3330 = vmatprep.subr.bf16.mxu0 %v3116
    %3331 = vmatpush2.bf16.msra.mxu0 %v3115
    %3332 = vmatprep.subr.bf16.mxu0 %v3112
    %3333 = vmatpush2.bf16.msra.mxu0 %v3111
    %3334 = vmatprep.subr.bf16.mxu0 %v3108
    %3335 = vmatpush2.bf16.msra.mxu0 %v3107
    %3336 = vmatprep.subr.bf16.mxu0 %v3104
    %3337 = vmatpush2.bf16.msra.mxu0 %v3103
    %3338 = vmatprep.mubr.bf16.mxu0 %v2458
    %3339 = vmatmul.mubr.bf16.gmra.mxu0 %v2457
    %v3340 = vpop.f32.mrf.mxu0
    %v3341 = vadd.f32 %v3298, %v3340
    %v3342 = vpop.f32.mrf.mxu0
    %v3343 = vadd.f32 %v3300, %v3342
    %v3344 = vpop.f32.mrf.mxu0
    %v3345 = vadd.f32 %v3302, %v3344
    %v3346 = vpop.f32.mrf.mxu0
    %v3347 = vadd.f32 %v3304, %v3346
    %3348 = vdwg.mxu0
    %3349 = vmatprep.subr.bf16.mxu0 %v3038
    %3350 = vmatpush1.bf16.msra.mxu0 %v3037
    %3351 = vmatprep.subr.bf16.mxu0 %v3034
    %3352 = vmatpush1.bf16.msra.mxu0 %v3033
    %3353 = vmatprep.subr.bf16.mxu0 %v3030
    %3354 = vmatpush1.bf16.msra.mxu0 %v3029
    %3355 = vmatprep.subr.bf16.mxu0 %v3026
    %3356 = vmatpush1.bf16.msra.mxu0 %v3025
    %3357 = vmatprep.subr.bf16.mxu0 %v3022
    %3358 = vmatpush1.bf16.msra.mxu0 %v3021
    %3359 = vmatprep.subr.bf16.mxu0 %v3018
    %3360 = vmatpush1.bf16.msra.mxu0 %v3017
    %3361 = vmatprep.subr.bf16.mxu0 %v3014
    %3362 = vmatpush1.bf16.msra.mxu0 %v3013
    %3363 = vmatprep.subr.bf16.mxu0 %v3010
    %3364 = vmatpush1.bf16.msra.mxu0 %v3009
    %3365 = vmatprep.subr.bf16.mxu0 %v3070
    %3366 = vmatpush2.bf16.msra.mxu0 %v3069
    %3367 = vmatprep.subr.bf16.mxu0 %v3066
    %3368 = vmatpush2.bf16.msra.mxu0 %v3065
    %3369 = vmatprep.subr.bf16.mxu0 %v3062
    %3370 = vmatpush2.bf16.msra.mxu0 %v3061
    %3371 = vmatprep.subr.bf16.mxu0 %v3058
    %3372 = vmatpush2.bf16.msra.mxu0 %v3057
    %3373 = vmatprep.subr.bf16.mxu0 %v3054
    %3374 = vmatpush2.bf16.msra.mxu0 %v3053
    %3375 = vmatprep.subr.bf16.mxu0 %v3050
    %3376 = vmatpush2.bf16.msra.mxu0 %v3049
    %3377 = vmatprep.subr.bf16.mxu0 %v3046
    %3378 = vmatpush2.bf16.msra.mxu0 %v3045
    %3379 = vmatprep.subr.bf16.mxu0 %v3042
    %3380 = vmatpush2.bf16.msra.mxu0 %v3041
    %3381 = vmatprep.mubr.bf16.mxu0 %v2456
    %3382 = vmatmul.mubr.bf16.gmra.mxu0 %v2455
    %v3383 = vpop.f32.mrf.mxu0
    %v3384 = vadd.f32 %v2614, %v3383
    %v3385 = vpop.f32.mrf.mxu0
    %v3386 = vadd.f32 %v2618, %v3385
    %v3387 = vpop.f32.mrf.mxu0
    %v3388 = vadd.f32 %v2614, %v3387
    %v3389 = vpop.f32.mrf.mxu0
    %v3390 = vadd.f32 %v2618, %v3389
    %3391 = vdwg.mxu0
    %3392 = vmatprep.subr.bf16.mxu0 %v3102
    %3393 = vmatpush1.bf16.msra.mxu0 %v3101
    %3394 = vmatprep.subr.bf16.mxu0 %v3098
    %3395 = vmatpush1.bf16.msra.mxu0 %v3097
    %3396 = vmatprep.subr.bf16.mxu0 %v3094
    %3397 = vmatpush1.bf16.msra.mxu0 %v3093
    %3398 = vmatprep.subr.bf16.mxu0 %v3090
    %3399 = vmatpush1.bf16.msra.mxu0 %v3089
    %3400 = vmatprep.subr.bf16.mxu0 %v3086
    %3401 = vmatpush1.bf16.msra.mxu0 %v3085
    %3402 = vmatprep.subr.bf16.mxu0 %v3082
    %3403 = vmatpush1.bf16.msra.mxu0 %v3081
    %3404 = vmatprep.subr.bf16.mxu0 %v3078
    %3405 = vmatpush1.bf16.msra.mxu0 %v3077
    %3406 = vmatprep.subr.bf16.mxu0 %v3074
    %3407 = vmatpush1.bf16.msra.mxu0 %v3073
    %3408 = vmatprep.subr.bf16.mxu0 %v3134
    %3409 = vmatpush2.bf16.msra.mxu0 %v3133
    %3410 = vmatprep.subr.bf16.mxu0 %v3130
    %3411 = vmatpush2.bf16.msra.mxu0 %v3129
    %3412 = vmatprep.subr.bf16.mxu0 %v3126
    %3413 = vmatpush2.bf16.msra.mxu0 %v3125
    %3414 = vmatprep.subr.bf16.mxu0 %v3122
    %3415 = vmatpush2.bf16.msra.mxu0 %v3121
    %3416 = vmatprep.subr.bf16.mxu0 %v3118
    %3417 = vmatpush2.bf16.msra.mxu0 %v3117
    %3418 = vmatprep.subr.bf16.mxu0 %v3114
    %3419 = vmatpush2.bf16.msra.mxu0 %v3113
    %3420 = vmatprep.subr.bf16.mxu0 %v3110
    %3421 = vmatpush2.bf16.msra.mxu0 %v3109
    %3422 = vmatprep.subr.bf16.mxu0 %v3106
    %3423 = vmatpush2.bf16.msra.mxu0 %v3105
    %3424 = vmatprep.mubr.bf16.mxu0 %v2458
    %3425 = vmatmul.mubr.bf16.gmra.mxu0 %v2457
    %v3426 = vpop.f32.mrf.mxu0
    %v3427 = vadd.f32 %v3384, %v3426
    %v3428 = vpop.f32.mrf.mxu0
    %v3429 = vadd.f32 %v3386, %v3428
    %v3430 = vpop.f32.mrf.mxu0
    %v3431 = vadd.f32 %v3388, %v3430
    %v3432 = vpop.f32.mrf.mxu0
    %v3433 = vadd.f32 %v3390, %v3432
    %3434 = vdwg.mxu0
    %v3435 = vpack.c.bf16 %v3345, %v3341
    %v3436 = vpack.c.bf16 %v3347, %v3343
    %v3437 = vpack.c.bf16 %v3431, %v3427
    %v3438 = vpack.c.bf16 %v3433, %v3429
    %vm3439 = vcmp.gt.bf16.partialorder %v3435, 0
    %vm3440 = vcmp.gt.bf16.partialorder %v3436, 0
    %vm3441 = vcmp.gt.bf16.partialorder %v3437, 0
    %vm3442 = vcmp.gt.bf16.partialorder %v3438, 0
    %v3444 = vmul.bf16 %v3435, 1069105081
    %v3445 = vpow.bf16.pop %v3444
    %v3447 = vmul.bf16 %v3436, 1069105081
    %v3448 = vpow.bf16.pop %v3447
    %v3450 = vmul.bf16 %v3437, 1069105081
    %v3451 = vpow.bf16.pop %v3450
    %v3453 = vmul.bf16 %v3438, 1069105081
    %v3454 = vpow.bf16.pop %v3453
    %v3455 = vsub.bf16 %v3445, 1065369472
    %v3456 = vsub.bf16 %v3448, 1065369472
    %v3457 = vsub.bf16 %v3451, 1065369472
    %v3458 = vsub.bf16 %v3454, 1065369472
    %v3459 = vmul.bf16 %v3455, 1071005654
    %v3460 = vmul.bf16 %v3456, 1071005654
    %v3461 = vmul.bf16 %v3457, 1071005654
    %v3462 = vmul.bf16 %v3458, 1071005654
    %v3463 = vsel %vm3439, %v3435, %v3459
    %v3464 = vsel %vm3440, %v3436, %v3460
    %v3465 = vsel %vm3441, %v3437, %v3461
    %v3466 = vsel %vm3442, %v3438, %v3462
    %s3467 = smul.u32 %s441, 2
    %s3468 = sshll.u32 %s3467, 4
    %3469 = dma.done %s1453, %s3468
    %v3470 = vld [vmem:[#allocation6] sm:$0xff]
    %v3471 = vld [vmem:[#allocation6 + $0x8] sm:$0xff]
    %v3472 = vld [vmem:[#allocation6 + $0x10] sm:$0xff]
    %v3473 = vld [vmem:[#allocation6 + $0x18] sm:$0xff]
    %v3474 = vld [vmem:[#allocation6 + $0x20] sm:$0xff]
    %v3475 = vld [vmem:[#allocation6 + $0x28] sm:$0xff]
    %v3476 = vld [vmem:[#allocation6 + $0x30] sm:$0xff]
    %v3477 = vld [vmem:[#allocation6 + $0x38] sm:$0xff]
    %v3478 = vld [vmem:[#allocation6 + $0x40] sm:$0xff]
    %v3479 = vld [vmem:[#allocation6 + $0x48] sm:$0xff]
    %v3480 = vld [vmem:[#allocation6 + $0x50] sm:$0xff]
    %v3481 = vld [vmem:[#allocation6 + $0x58] sm:$0xff]
    %v3482 = vld [vmem:[#allocation6 + $0x60] sm:$0xff]
    %v3483 = vld [vmem:[#allocation6 + $0x68] sm:$0xff]
    %v3484 = vld [vmem:[#allocation6 + $0x70] sm:$0xff]
    %v3485 = vld [vmem:[#allocation6 + $0x78] sm:$0xff]
    %v3486 = vld [vmem:[#allocation6 + $0x80] sm:$0xff]
    %v3487 = vld [vmem:[#allocation6 + $0x88] sm:$0xff]
    %v3488 = vld [vmem:[#allocation6 + $0x90] sm:$0xff]
    %v3489 = vld [vmem:[#allocation6 + $0x98] sm:$0xff]
    %v3490 = vld [vmem:[#allocation6 + $0xa0] sm:$0xff]
    %v3491 = vld [vmem:[#allocation6 + $0xa8] sm:$0xff]
    %v3492 = vld [vmem:[#allocation6 + $0xb0] sm:$0xff]
    %v3493 = vld [vmem:[#allocation6 + $0xb8] sm:$0xff]
    %v3494 = vld [vmem:[#allocation6 + $0xc0] sm:$0xff]
    %v3495 = vld [vmem:[#allocation6 + $0xc8] sm:$0xff]
    %v3496 = vld [vmem:[#allocation6 + $0xd0] sm:$0xff]
    %v3497 = vld [vmem:[#allocation6 + $0xd8] sm:$0xff]
    %v3498 = vld [vmem:[#allocation6 + $0xe0] sm:$0xff]
    %v3499 = vld [vmem:[#allocation6 + $0xe8] sm:$0xff]
    %v3500 = vld [vmem:[#allocation6 + $0xf0] sm:$0xff]
    %v3501 = vld [vmem:[#allocation6 + $0xf8] sm:$0xff]
    %v3502 = vld [vmem:[#allocation6 + $0x100] sm:$0xff]
    %v3503 = vld [vmem:[#allocation6 + $0x108] sm:$0xff]
    %v3504 = vld [vmem:[#allocation6 + $0x110] sm:$0xff]
    %v3505 = vld [vmem:[#allocation6 + $0x118] sm:$0xff]
    %v3506 = vld [vmem:[#allocation6 + $0x120] sm:$0xff]
    %v3507 = vld [vmem:[#allocation6 + $0x128] sm:$0xff]
    %v3508 = vld [vmem:[#allocation6 + $0x130] sm:$0xff]
    %v3509 = vld [vmem:[#allocation6 + $0x138] sm:$0xff]
    %v3510 = vld [vmem:[#allocation6 + $0x140] sm:$0xff]
    %v3511 = vld [vmem:[#allocation6 + $0x148] sm:$0xff]
    %v3512 = vld [vmem:[#allocation6 + $0x150] sm:$0xff]
    %v3513 = vld [vmem:[#allocation6 + $0x158] sm:$0xff]
    %v3514 = vld [vmem:[#allocation6 + $0x160] sm:$0xff]
    %v3515 = vld [vmem:[#allocation6 + $0x168] sm:$0xff]
    %v3516 = vld [vmem:[#allocation6 + $0x170] sm:$0xff]
    %v3517 = vld [vmem:[#allocation6 + $0x178] sm:$0xff]
    %v3518 = vld [vmem:[#allocation6 + $0x180] sm:$0xff]
    %v3519 = vld [vmem:[#allocation6 + $0x188] sm:$0xff]
    %v3520 = vld [vmem:[#allocation6 + $0x190] sm:$0xff]
    %v3521 = vld [vmem:[#allocation6 + $0x198] sm:$0xff]
    %v3522 = vld [vmem:[#allocation6 + $0x1a0] sm:$0xff]
    %v3523 = vld [vmem:[#allocation6 + $0x1a8] sm:$0xff]
    %v3524 = vld [vmem:[#allocation6 + $0x1b0] sm:$0xff]
    %v3525 = vld [vmem:[#allocation6 + $0x1b8] sm:$0xff]
    %v3526 = vld [vmem:[#allocation6 + $0x1c0] sm:$0xff]
    %v3527 = vld [vmem:[#allocation6 + $0x1c8] sm:$0xff]
    %v3528 = vld [vmem:[#allocation6 + $0x1d0] sm:$0xff]
    %v3529 = vld [vmem:[#allocation6 + $0x1d8] sm:$0xff]
    %v3530 = vld [vmem:[#allocation6 + $0x1e0] sm:$0xff]
    %v3531 = vld [vmem:[#allocation6 + $0x1e8] sm:$0xff]
    %v3532 = vld [vmem:[#allocation6 + $0x1f0] sm:$0xff]
    %v3533 = vld [vmem:[#allocation6 + $0x1f8] sm:$0xff]
    %v3534 = vld [vmem:[%s10] sm:$0x3]
    %v3536 = vlaneseq
    %v3537 = vshrl.u32 %v3536, 7
    %v3538 = vsub.s32 0, %v3537
    %v3539 = vrot.slane %v3534, %v3538
    %v3540 = vlaneseq
    %v3541 = vshrl.u32 %v3540, 7
    %v3542 = vsub.s32 1, %v3541
    %v3543 = vrot.slane %v3534, %v3542
    %v3610 = vunpack.c.l.b16 %v3470
    %v3611 = vunpack.c.h.b16 %v3470
    %v3612 = vunpack.c.l.b16 %v3471
    %v3613 = vunpack.c.h.b16 %v3471
    %v3614 = vunpack.c.l.b16 %v3472
    %v3615 = vunpack.c.h.b16 %v3472
    %v3616 = vunpack.c.l.b16 %v3473
    %v3617 = vunpack.c.h.b16 %v3473
    %v3618 = vunpack.c.l.b16 %v3474
    %v3619 = vunpack.c.h.b16 %v3474
    %v3620 = vunpack.c.l.b16 %v3475
    %v3621 = vunpack.c.h.b16 %v3475
    %v3622 = vunpack.c.l.b16 %v3476
    %v3623 = vunpack.c.h.b16 %v3476
    %v3624 = vunpack.c.l.b16 %v3477
    %v3625 = vunpack.c.h.b16 %v3477
    %v3626 = vunpack.c.l.b16 %v3478
    %v3627 = vunpack.c.h.b16 %v3478
    %v3628 = vunpack.c.l.b16 %v3479
    %v3629 = vunpack.c.h.b16 %v3479
    %v3630 = vunpack.c.l.b16 %v3480
    %v3631 = vunpack.c.h.b16 %v3480
    %v3632 = vunpack.c.l.b16 %v3481
    %v3633 = vunpack.c.h.b16 %v3481
    %v3634 = vunpack.c.l.b16 %v3482
    %v3635 = vunpack.c.h.b16 %v3482
    %v3636 = vunpack.c.l.b16 %v3483
    %v3637 = vunpack.c.h.b16 %v3483
    %v3638 = vunpack.c.l.b16 %v3484
    %v3639 = vunpack.c.h.b16 %v3484
    %v3640 = vunpack.c.l.b16 %v3485
    %v3641 = vunpack.c.h.b16 %v3485
    %v3642 = vunpack.c.l.b16 %v3486
    %v3643 = vunpack.c.h.b16 %v3486
    %v3644 = vunpack.c.l.b16 %v3487
    %v3645 = vunpack.c.h.b16 %v3487
    %v3646 = vunpack.c.l.b16 %v3488
    %v3647 = vunpack.c.h.b16 %v3488
    %v3648 = vunpack.c.l.b16 %v3489
    %v3649 = vunpack.c.h.b16 %v3489
    %v3650 = vunpack.c.l.b16 %v3490
    %v3651 = vunpack.c.h.b16 %v3490
    %v3652 = vunpack.c.l.b16 %v3491
    %v3653 = vunpack.c.h.b16 %v3491
    %v3654 = vunpack.c.l.b16 %v3492
    %v3655 = vunpack.c.h.b16 %v3492
    %v3656 = vunpack.c.l.b16 %v3493
    %v3657 = vunpack.c.h.b16 %v3493
    %v3658 = vunpack.c.l.b16 %v3494
    %v3659 = vunpack.c.h.b16 %v3494
    %v3660 = vunpack.c.l.b16 %v3495
    %v3661 = vunpack.c.h.b16 %v3495
    %v3662 = vunpack.c.l.b16 %v3496
    %v3663 = vunpack.c.h.b16 %v3496
    %v3664 = vunpack.c.l.b16 %v3497
    %v3665 = vunpack.c.h.b16 %v3497
    %v3666 = vunpack.c.l.b16 %v3498
    %v3667 = vunpack.c.h.b16 %v3498
    %v3668 = vunpack.c.l.b16 %v3499
    %v3669 = vunpack.c.h.b16 %v3499
    %v3670 = vunpack.c.l.b16 %v3500
    %v3671 = vunpack.c.h.b16 %v3500
    %v3672 = vunpack.c.l.b16 %v3501
    %v3673 = vunpack.c.h.b16 %v3501
    %v3674 = vunpack.c.l.b16 %v3502
    %v3675 = vunpack.c.h.b16 %v3502
    %v3676 = vunpack.c.l.b16 %v3503
    %v3677 = vunpack.c.h.b16 %v3503
    %v3678 = vunpack.c.l.b16 %v3504
    %v3679 = vunpack.c.h.b16 %v3504
    %v3680 = vunpack.c.l.b16 %v3505
    %v3681 = vunpack.c.h.b16 %v3505
    %v3682 = vunpack.c.l.b16 %v3506
    %v3683 = vunpack.c.h.b16 %v3506
    %v3684 = vunpack.c.l.b16 %v3507
    %v3685 = vunpack.c.h.b16 %v3507
    %v3686 = vunpack.c.l.b16 %v3508
    %v3687 = vunpack.c.h.b16 %v3508
    %v3688 = vunpack.c.l.b16 %v3509
    %v3689 = vunpack.c.h.b16 %v3509
    %v3690 = vunpack.c.l.b16 %v3510
    %v3691 = vunpack.c.h.b16 %v3510
    %v3692 = vunpack.c.l.b16 %v3511
    %v3693 = vunpack.c.h.b16 %v3511
    %v3694 = vunpack.c.l.b16 %v3512
    %v3695 = vunpack.c.h.b16 %v3512
    %v3696 = vunpack.c.l.b16 %v3513
    %v3697 = vunpack.c.h.b16 %v3513
    %v3698 = vunpack.c.l.b16 %v3514
    %v3699 = vunpack.c.h.b16 %v3514
    %v3700 = vunpack.c.l.b16 %v3515
    %v3701 = vunpack.c.h.b16 %v3515
    %v3702 = vunpack.c.l.b16 %v3516
    %v3703 = vunpack.c.h.b16 %v3516
    %v3704 = vunpack.c.l.b16 %v3517
    %v3705 = vunpack.c.h.b16 %v3517
    %v3706 = vunpack.c.l.b16 %v3518
    %v3707 = vunpack.c.h.b16 %v3518
    %v3708 = vunpack.c.l.b16 %v3519
    %v3709 = vunpack.c.h.b16 %v3519
    %v3710 = vunpack.c.l.b16 %v3520
    %v3711 = vunpack.c.h.b16 %v3520
    %v3712 = vunpack.c.l.b16 %v3521
    %v3713 = vunpack.c.h.b16 %v3521
    %v3714 = vunpack.c.l.b16 %v3522
    %v3715 = vunpack.c.h.b16 %v3522
    %v3716 = vunpack.c.l.b16 %v3523
    %v3717 = vunpack.c.h.b16 %v3523
    %v3718 = vunpack.c.l.b16 %v3524
    %v3719 = vunpack.c.h.b16 %v3524
    %v3720 = vunpack.c.l.b16 %v3525
    %v3721 = vunpack.c.h.b16 %v3525
    %v3722 = vunpack.c.l.b16 %v3526
    %v3723 = vunpack.c.h.b16 %v3526
    %v3724 = vunpack.c.l.b16 %v3527
    %v3725 = vunpack.c.h.b16 %v3527
    %v3726 = vunpack.c.l.b16 %v3528
    %v3727 = vunpack.c.h.b16 %v3528
    %v3728 = vunpack.c.l.b16 %v3529
    %v3729 = vunpack.c.h.b16 %v3529
    %v3730 = vunpack.c.l.b16 %v3530
    %v3731 = vunpack.c.h.b16 %v3530
    %v3732 = vunpack.c.l.b16 %v3531
    %v3733 = vunpack.c.h.b16 %v3531
    %v3734 = vunpack.c.l.b16 %v3532
    %v3735 = vunpack.c.h.b16 %v3532
    %v3736 = vunpack.c.l.b16 %v3533
    %v3737 = vunpack.c.h.b16 %v3533
    %v3738 = vpack.c.b16 %v3612, %v3610
    %v3739 = vpack.c.b16 %v3613, %v3611
    %v3740 = vpack.c.b16 %v3616, %v3614
    %v3741 = vpack.c.b16 %v3617, %v3615
    %v3742 = vpack.c.b16 %v3620, %v3618
    %v3743 = vpack.c.b16 %v3621, %v3619
    %v3744 = vpack.c.b16 %v3624, %v3622
    %v3745 = vpack.c.b16 %v3625, %v3623
    %v3746 = vpack.c.b16 %v3628, %v3626
    %v3747 = vpack.c.b16 %v3629, %v3627
    %v3748 = vpack.c.b16 %v3632, %v3630
    %v3749 = vpack.c.b16 %v3633, %v3631
    %v3750 = vpack.c.b16 %v3636, %v3634
    %v3751 = vpack.c.b16 %v3637, %v3635
    %v3752 = vpack.c.b16 %v3640, %v3638
    %v3753 = vpack.c.b16 %v3641, %v3639
    %v3754 = vpack.c.b16 %v3644, %v3642
    %v3755 = vpack.c.b16 %v3645, %v3643
    %v3756 = vpack.c.b16 %v3648, %v3646
    %v3757 = vpack.c.b16 %v3649, %v3647
    %v3758 = vpack.c.b16 %v3652, %v3650
    %v3759 = vpack.c.b16 %v3653, %v3651
    %v3760 = vpack.c.b16 %v3656, %v3654
    %v3761 = vpack.c.b16 %v3657, %v3655
    %v3762 = vpack.c.b16 %v3660, %v3658
    %v3763 = vpack.c.b16 %v3661, %v3659
    %v3764 = vpack.c.b16 %v3664, %v3662
    %v3765 = vpack.c.b16 %v3665, %v3663
    %v3766 = vpack.c.b16 %v3668, %v3666
    %v3767 = vpack.c.b16 %v3669, %v3667
    %v3768 = vpack.c.b16 %v3672, %v3670
    %v3769 = vpack.c.b16 %v3673, %v3671
    %v3770 = vpack.c.b16 %v3676, %v3674
    %v3771 = vpack.c.b16 %v3677, %v3675
    %v3772 = vpack.c.b16 %v3680, %v3678
    %v3773 = vpack.c.b16 %v3681, %v3679
    %v3774 = vpack.c.b16 %v3684, %v3682
    %v3775 = vpack.c.b16 %v3685, %v3683
    %v3776 = vpack.c.b16 %v3688, %v3686
    %v3777 = vpack.c.b16 %v3689, %v3687
    %v3778 = vpack.c.b16 %v3692, %v3690
    %v3779 = vpack.c.b16 %v3693, %v3691
    %v3780 = vpack.c.b16 %v3696, %v3694
    %v3781 = vpack.c.b16 %v3697, %v3695
    %v3782 = vpack.c.b16 %v3700, %v3698
    %v3783 = vpack.c.b16 %v3701, %v3699
    %v3784 = vpack.c.b16 %v3704, %v3702
    %v3785 = vpack.c.b16 %v3705, %v3703
    %v3786 = vpack.c.b16 %v3708, %v3706
    %v3787 = vpack.c.b16 %v3709, %v3707
    %v3788 = vpack.c.b16 %v3712, %v3710
    %v3789 = vpack.c.b16 %v3713, %v3711
    %v3790 = vpack.c.b16 %v3716, %v3714
    %v3791 = vpack.c.b16 %v3717, %v3715
    %v3792 = vpack.c.b16 %v3720, %v3718
    %v3793 = vpack.c.b16 %v3721, %v3719
    %v3794 = vpack.c.b16 %v3724, %v3722
    %v3795 = vpack.c.b16 %v3725, %v3723
    %v3796 = vpack.c.b16 %v3728, %v3726
    %v3797 = vpack.c.b16 %v3729, %v3727
    %v3798 = vpack.c.b16 %v3732, %v3730
    %v3799 = vpack.c.b16 %v3733, %v3731
    %v3800 = vpack.c.b16 %v3736, %v3734
    %v3801 = vpack.c.b16 %v3737, %v3735
    %3866 = vmatprep.subr.bf16.mxu0 %v3753
    %3867 = vmatpush1.bf16.msra.mxu0 %v3752
    %3868 = vmatprep.subr.bf16.mxu0 %v3751
    %3869 = vmatpush1.bf16.msra.mxu0 %v3750
    %3870 = vmatprep.subr.bf16.mxu0 %v3749
    %3871 = vmatpush1.bf16.msra.mxu0 %v3748
    %3872 = vmatprep.subr.bf16.mxu0 %v3747
    %3873 = vmatpush1.bf16.msra.mxu0 %v3746
    %3874 = vmatprep.subr.bf16.mxu0 %v3745
    %3875 = vmatpush1.bf16.msra.mxu0 %v3744
    %3876 = vmatprep.subr.bf16.mxu0 %v3743
    %3877 = vmatpush1.bf16.msra.mxu0 %v3742
    %3878 = vmatprep.subr.bf16.mxu0 %v3741
    %3879 = vmatpush1.bf16.msra.mxu0 %v3740
    %3880 = vmatprep.subr.bf16.mxu0 %v3739
    %3881 = vmatpush1.bf16.msra.mxu0 %v3738
    %3882 = vmatprep.subr.bf16.mxu0 %v3769
    %3883 = vmatpush2.bf16.msra.mxu0 %v3768
    %3884 = vmatprep.subr.bf16.mxu0 %v3767
    %3885 = vmatpush2.bf16.msra.mxu0 %v3766
    %3886 = vmatprep.subr.bf16.mxu0 %v3765
    %3887 = vmatpush2.bf16.msra.mxu0 %v3764
    %3888 = vmatprep.subr.bf16.mxu0 %v3763
    %3889 = vmatpush2.bf16.msra.mxu0 %v3762
    %3890 = vmatprep.subr.bf16.mxu0 %v3761
    %3891 = vmatpush2.bf16.msra.mxu0 %v3760
    %3892 = vmatprep.subr.bf16.mxu0 %v3759
    %3893 = vmatpush2.bf16.msra.mxu0 %v3758
    %3894 = vmatprep.subr.bf16.mxu0 %v3757
    %3895 = vmatpush2.bf16.msra.mxu0 %v3756
    %3896 = vmatprep.subr.bf16.mxu0 %v3755
    %3897 = vmatpush2.bf16.msra.mxu0 %v3754
    %3898 = vmatprep.mubr.bf16.mxu0 %v3464
    %3899 = vmatmul.mubr.bf16.gmra.mxu0 %v3463
    %v3900 = vpop.f32.mrf.mxu0
    %v3901 = vadd.f32 %v3539, %v3900
    %v3902 = vpop.f32.mrf.mxu0
    %v3903 = vadd.f32 %v3543, %v3902
    %v3904 = vpop.f32.mrf.mxu0
    %v3905 = vadd.f32 %v3539, %v3904
    %v3906 = vpop.f32.mrf.mxu0
    %v3907 = vadd.f32 %v3543, %v3906
    %3908 = vdwg.mxu0
    %3909 = vmatprep.subr.bf16.mxu0 %v3785
    %3910 = vmatpush1.bf16.msra.mxu0 %v3784
    %3911 = vmatprep.subr.bf16.mxu0 %v3783
    %3912 = vmatpush1.bf16.msra.mxu0 %v3782
    %3913 = vmatprep.subr.bf16.mxu0 %v3781
    %3914 = vmatpush1.bf16.msra.mxu0 %v3780
    %3915 = vmatprep.subr.bf16.mxu0 %v3779
    %3916 = vmatpush1.bf16.msra.mxu0 %v3778
    %3917 = vmatprep.subr.bf16.mxu0 %v3777
    %3918 = vmatpush1.bf16.msra.mxu0 %v3776
    %3919 = vmatprep.subr.bf16.mxu0 %v3775
    %3920 = vmatpush1.bf16.msra.mxu0 %v3774
    %3921 = vmatprep.subr.bf16.mxu0 %v3773
    %3922 = vmatpush1.bf16.msra.mxu0 %v3772
    %3923 = vmatprep.subr.bf16.mxu0 %v3771
    %3924 = vmatpush1.bf16.msra.mxu0 %v3770
    %3925 = vmatprep.subr.bf16.mxu0 %v3801
    %3926 = vmatpush2.bf16.msra.mxu0 %v3800
    %3927 = vmatprep.subr.bf16.mxu0 %v3799
    %3928 = vmatpush2.bf16.msra.mxu0 %v3798
    %3929 = vmatprep.subr.bf16.mxu0 %v3797
    %3930 = vmatpush2.bf16.msra.mxu0 %v3796
    %3931 = vmatprep.subr.bf16.mxu0 %v3795
    %3932 = vmatpush2.bf16.msra.mxu0 %v3794
    %3933 = vmatprep.subr.bf16.mxu0 %v3793
    %3934 = vmatpush2.bf16.msra.mxu0 %v3792
    %3935 = vmatprep.subr.bf16.mxu0 %v3791
    %3936 = vmatpush2.bf16.msra.mxu0 %v3790
    %3937 = vmatprep.subr.bf16.mxu0 %v3789
    %3938 = vmatpush2.bf16.msra.mxu0 %v3788
    %3939 = vmatprep.subr.bf16.mxu0 %v3787
    %3940 = vmatpush2.bf16.msra.mxu0 %v3786
    %3941 = vmatprep.mubr.bf16.mxu0 %v3466
    %3942 = vmatmul.mubr.bf16.gmra.mxu0 %v3465
    %v3943 = vpop.f32.mrf.mxu0
    %v3944 = vadd.f32 %v3901, %v3943
    %v3945 = vpop.f32.mrf.mxu0
    %v3946 = vadd.f32 %v3903, %v3945
    %v3947 = vpop.f32.mrf.mxu0
    %v3948 = vadd.f32 %v3905, %v3947
    %v3949 = vpop.f32.mrf.mxu0
    %v3950 = vadd.f32 %v3907, %v3949
    %3951 = vdwg.mxu0
    %v3952 = vpack.c.bf16 %v3948, %v3944
    %v3953 = vpack.c.bf16 %v3950, %v3946
    %vm3954 = vcmp.gt.bf16.partialorder %v3952, 0
    %vm3955 = vcmp.gt.bf16.partialorder %v3953, 0
    %v3957 = vmul.bf16 %v3952, 1069105081
    %v3958 = vpow.bf16.pop %v3957
    %v3960 = vmul.bf16 %v3953, 1069105081
    %v3961 = vpow.bf16.pop %v3960
    %v3962 = vsub.bf16 %v3958, 1065369472
    %v3963 = vsub.bf16 %v3961, 1065369472
    %v3964 = vmul.bf16 %v3962, 1071005654
    %v3965 = vmul.bf16 %v3963, 1071005654
    %v3966 = vsel %vm3954, %v3952, %v3964
    %v3967 = vsel %vm3955, %v3953, %v3965
    %s3968 = smul.u32 4, 32
    %s3969 = smul.u32 %s3968, 1
    %s3970 = sshll.u32 %s3969, 4
    %3971 = dma.done %s2461, %s3970
    %v3972 = vld [vmem:[#allocation7] sm:$0xf]
    %v3973 = vld [vmem:[#allocation7 + $0x4] sm:$0xf]
    %v3974 = vld [vmem:[#allocation7 + $0x8] sm:$0xf]
    %v3975 = vld [vmem:[#allocation7 + $0xc] sm:$0xf]
    %v3976 = vld [vmem:[#allocation7 + $0x10] sm:$0xf]
    %v3977 = vld [vmem:[#allocation7 + $0x14] sm:$0xf]
    %v3978 = vld [vmem:[#allocation7 + $0x18] sm:$0xf]
    %v3979 = vld [vmem:[#allocation7 + $0x1c] sm:$0xf]
    %v3980 = vld [vmem:[#allocation7 + $0x20] sm:$0xf]
    %v3981 = vld [vmem:[#allocation7 + $0x24] sm:$0xf]
    %v3982 = vld [vmem:[#allocation7 + $0x28] sm:$0xf]
    %v3983 = vld [vmem:[#allocation7 + $0x2c] sm:$0xf]
    %v3984 = vld [vmem:[#allocation7 + $0x30] sm:$0xf]
    %v3985 = vld [vmem:[#allocation7 + $0x34] sm:$0xf]
    %v3986 = vld [vmem:[#allocation7 + $0x38] sm:$0xf]
    %v3987 = vld [vmem:[#allocation7 + $0x3c] sm:$0xf]
    %v3988 = vld [vmem:[#allocation7 + $0x40] sm:$0xf]
    %v3989 = vld [vmem:[#allocation7 + $0x44] sm:$0xf]
    %v3990 = vld [vmem:[#allocation7 + $0x48] sm:$0xf]
    %v3991 = vld [vmem:[#allocation7 + $0x4c] sm:$0xf]
    %v3992 = vld [vmem:[#allocation7 + $0x50] sm:$0xf]
    %v3993 = vld [vmem:[#allocation7 + $0x54] sm:$0xf]
    %v3994 = vld [vmem:[#allocation7 + $0x58] sm:$0xf]
    %v3995 = vld [vmem:[#allocation7 + $0x5c] sm:$0xf]
    %v3996 = vld [vmem:[#allocation7 + $0x60] sm:$0xf]
    %v3997 = vld [vmem:[#allocation7 + $0x64] sm:$0xf]
    %v3998 = vld [vmem:[#allocation7 + $0x68] sm:$0xf]
    %v3999 = vld [vmem:[#allocation7 + $0x6c] sm:$0xf]
    %v4000 = vld [vmem:[#allocation7 + $0x70] sm:$0xf]
    %v4001 = vld [vmem:[#allocation7 + $0x74] sm:$0xf]
    %v4002 = vld [vmem:[#allocation7 + $0x78] sm:$0xf]
    %v4003 = vld [vmem:[#allocation7 + $0x7c] sm:$0xf]
    %v4004 = vld [vmem:[%s12] sm:$0x1]
    %v4006 = vlaneseq
    %v4007 = vshrl.u32 %v4006, 7
    %v4008 = vsub.s32 0, %v4007
    %v4009 = vrot.slane %v4004, %v4008
    %v4043 = vunpack.c.l.b16 %v3972
    %v4044 = vunpack.c.l.b16 %v3973
    %v4045 = vunpack.c.l.b16 %v3974
    %v4046 = vunpack.c.l.b16 %v3975
    %v4047 = vunpack.c.l.b16 %v3976
    %v4048 = vunpack.c.l.b16 %v3977
    %v4049 = vunpack.c.l.b16 %v3978
    %v4050 = vunpack.c.l.b16 %v3979
    %v4051 = vunpack.c.l.b16 %v3980
    %v4052 = vunpack.c.l.b16 %v3981
    %v4053 = vunpack.c.l.b16 %v3982
    %v4054 = vunpack.c.l.b16 %v3983
    %v4055 = vunpack.c.l.b16 %v3984
    %v4056 = vunpack.c.l.b16 %v3985
    %v4057 = vunpack.c.l.b16 %v3986
    %v4058 = vunpack.c.l.b16 %v3987
    %v4059 = vunpack.c.l.b16 %v3988
    %v4060 = vunpack.c.l.b16 %v3989
    %v4061 = vunpack.c.l.b16 %v3990
    %v4062 = vunpack.c.l.b16 %v3991
    %v4063 = vunpack.c.l.b16 %v3992
    %v4064 = vunpack.c.l.b16 %v3993
    %v4065 = vunpack.c.l.b16 %v3994
    %v4066 = vunpack.c.l.b16 %v3995
    %v4067 = vunpack.c.l.b16 %v3996
    %v4068 = vunpack.c.l.b16 %v3997
    %v4069 = vunpack.c.l.b16 %v3998
    %v4070 = vunpack.c.l.b16 %v3999
    %v4071 = vunpack.c.l.b16 %v4000
    %v4072 = vunpack.c.l.b16 %v4001
    %v4073 = vunpack.c.l.b16 %v4002
    %v4074 = vunpack.c.l.b16 %v4003
    %v4075 = vpack.c.b16 %v4044, %v4043
    %v4076 = vpack.c.b16 %v4046, %v4045
    %v4077 = vpack.c.b16 %v4048, %v4047
    %v4078 = vpack.c.b16 %v4050, %v4049
    %v4079 = vpack.c.b16 %v4052, %v4051
    %v4080 = vpack.c.b16 %v4054, %v4053
    %v4081 = vpack.c.b16 %v4056, %v4055
    %v4082 = vpack.c.b16 %v4058, %v4057
    %v4083 = vpack.c.b16 %v4060, %v4059
    %v4084 = vpack.c.b16 %v4062, %v4061
    %v4085 = vpack.c.b16 %v4064, %v4063
    %v4086 = vpack.c.b16 %v4066, %v4065
    %v4087 = vpack.c.b16 %v4068, %v4067
    %v4088 = vpack.c.b16 %v4070, %v4069
    %v4089 = vpack.c.b16 %v4072, %v4071
    %v4090 = vpack.c.b16 %v4074, %v4073
    %4107 = vmatprep.subr.bf16.mxu0 0
    %4108 = vmatpush1.bf16.msra.mxu0 %v4082
    %4109 = vmatprep.subr.bf16.mxu0 0
    %4110 = vmatpush1.bf16.msra.mxu0 %v4081
    %4111 = vmatprep.subr.bf16.mxu0 0
    %4112 = vmatpush1.bf16.msra.mxu0 %v4080
    %4113 = vmatprep.subr.bf16.mxu0 0
    %4114 = vmatpush1.bf16.msra.mxu0 %v4079
    %4115 = vmatprep.subr.bf16.mxu0 0
    %4116 = vmatpush1.bf16.msra.mxu0 %v4078
    %4117 = vmatprep.subr.bf16.mxu0 0
    %4118 = vmatpush1.bf16.msra.mxu0 %v4077
    %4119 = vmatprep.subr.bf16.mxu0 0
    %4120 = vmatpush1.bf16.msra.mxu0 %v4076
    %4121 = vmatprep.subr.bf16.mxu0 0
    %4122 = vmatpush1.bf16.msra.mxu0 %v4075
    %4123 = vmatprep.subr.bf16.mxu0 0
    %4124 = vmatpush2.bf16.msra.mxu0 %v4090
    %4125 = vmatprep.subr.bf16.mxu0 0
    %4126 = vmatpush2.bf16.msra.mxu0 %v4089
    %4127 = vmatprep.subr.bf16.mxu0 0
    %4128 = vmatpush2.bf16.msra.mxu0 %v4088
    %4129 = vmatprep.subr.bf16.mxu0 0
    %4130 = vmatpush2.bf16.msra.mxu0 %v4087
    %4131 = vmatprep.subr.bf16.mxu0 0
    %4132 = vmatpush2.bf16.msra.mxu0 %v4086
    %4133 = vmatprep.subr.bf16.mxu0 0
    %4134 = vmatpush2.bf16.msra.mxu0 %v4085
    %4135 = vmatprep.subr.bf16.mxu0 0
    %4136 = vmatpush2.bf16.msra.mxu0 %v4084
    %4137 = vmatprep.subr.bf16.mxu0 0
    %4138 = vmatpush2.bf16.msra.mxu0 %v4083
    %4139 = vmatprep.mubr.bf16.mxu0 %v3967
    %4140 = vmatmul.mubr.bf16.gmra.mxu0 %v3966
    %v4141 = vpop.f32.mrf.mxu0
    %v4142 = vadd.f32 %v4009, %v4141
    %v4143 = vpop.f32.mrf.mxu0
    %v4144 = vpop.f32.mrf.mxu0
    %v4145 = vadd.f32 %v4009, %v4144
    %v4146 = vpop.f32.mrf.mxu0
    %4147 = vdwg.mxu0
    %4148 = vmax.xlane.f32.xlu0 %v4142
    %v4149 = vpop.xlane.xlu0 %4148
    %4150 = vmax.xlane.f32.xlu0 %v4145
    %v4151 = vpop.xlane.xlu0 %4150
    %v4152 = vsub.f32 %v4142, %v4149
    %v4153 = vsub.f32 %v4145, %v4151
    %v4154 = vmul.f32 %v4152, 1.442695
    %v4155 = vpow.pop %v4154
    %v4156 = vmul.f32 %v4153, 1.442695
    %v4157 = vpow.pop %v4156
    %4158 = vadd.xlane.f32.xlu0 %v4155
    %v4159 = vpop.xlane.xlu0 %4158
    %4160 = vadd.xlane.f32.xlu0 %v4157
    %v4161 = vpop.xlane.xlu0 %4160
    %v4162 = vrcp.pop %v4159
    %v4163 = vrcp.pop %v4161
    %v4164 = vmul.f32 %v4155, %v4162
    %v4165 = vmul.f32 %v4157, %v4163
    %4166 = vst [vmem:[#allocation14] sm:$0xff] %v4164
    %4167 = vst [vmem:[#allocation14 + $0x8] sm:$0xff] %v4165
    // Predicated region
    $region62: #{tpu_custom_call.1} parent=1 // pred_check
      _
    $region63: #{tpu_custom_call.1} parent=1 // pred_check_branch
      %4169 = sbr.rel (0) target = $region65
    $region64: #{tpu_custom_call.1} parent=1 // pred_region
      %s4171 = ssub.s32 256, 256
      %4172 = vsyncadd [#allocation11], %s4171
      %s4173 = sshll.u32 [#allocation14], 4
      %s4174 = int_to_ptr.vmem [resolvable:$true] %s4173
      %4179 = dma.vmem_to_hbm [thread:$0]  %s4174, 256, %s13, [#allocation11], 128, 128, 8
    $region65: #{tpu_custom_call.1} parent=1 // pred_fallthru
      _
    // Predicated region
    $region66: #{tpu_custom_call.1} parent=1 // pred_check
      _
    $region67: #{tpu_custom_call.1} parent=1 // pred_check_branch
      %4181 = sbr.rel (0) target = $region69
    $region68: #{tpu_custom_call.1} parent=1 // pred_region
      %4182 = dma.done [#allocation11], 256
    $region69: #{tpu_custom_call.1} parent=1 // pred_fallthru
      _
    %4183 = vsyncpa [#allocation10], 1
    %4184 = vsyncpa [#allocation13], 1
    %4185 = vsyncpa [#allocation11], 1
  %4186 = vsyncmov [#allocation8]
  %s4187 = vpop.sfrf %4186
  %p4188 = scmp.eq.s32.totalorder %s4187, 0
  %p4189 = pneg %p4188
  %4191 = shalt.err (%p4189)
  %s4192 = scalar_lea.sflag [#allocation8], 1
  %4193 = vsyncmov %s4192
  %s4194 = vpop.sfrf %4193
  %p4195 = scmp.eq.s32.totalorder %s4194, 0
  %p4196 = pneg %p4195
  %4198 = shalt.err (%p4196)
  %s4199 = scalar_lea.sflag [#allocation8], 2
  %4200 = vsyncmov %s4199
  %s4201 = vpop.sfrf %4200
  %p4202 = scmp.eq.s32.totalorder %s4201, 0
  %p4203 = pneg %p4202
  %4205 = shalt.err (%p4203)
  %s4206 = scalar_lea.sflag [#allocation8], 3
  %4207 = vsyncmov %s4206
  %s4208 = vpop.sfrf %4207
  %p4209 = scmp.eq.s32.totalorder %s4208, 0
  %p4210 = pneg %p4209
  %4212 = shalt.err (%p4210)
  %s4213 = scalar_lea.sflag [#allocation8], 4
  %4214 = vsyncmov %s4213
  %s4215 = vpop.sfrf %4214
  %p4216 = scmp.eq.s32.totalorder %s4215, 0
  %p4217 = pneg %p4216
  %4219 = shalt.err (%p4217)
  %s4220 = scalar_lea.sflag [#allocation8], 5
  %4221 = vsyncmov %s4220
  %s4222 = vpop.sfrf %4221
  %p4223 = scmp.eq.s32.totalorder %s4222, 0
  %p4224 = pneg %p4223
  %4226 = shalt.err (%p4224)

</llo_original>
